<compile_context>
chip_gen: v7x
topology: tpu7x:2x2x1
jax: 0.10.0
libtpu: 0.0.40
codegen_flags: <defaults>
</compile_context>

<pallas_src>
import math

import numpy as np

import jax
import jax.numpy as jnp
from jax import lax
from jax.experimental import pallas as pl
from jax.experimental.pallas import tpu as pltpu

_K = 5                      # conv kernel size
_H0, _W0 = 32, 32           # input spatial
_C0, _C1, _C2 = 3, 6, 16    # channels
_H1, _W1 = 28, 28           # conv1 output spatial
_HP1, _WP1 = 14, 14         # after pool1
_H2, _W2 = 10, 10           # conv2 output spatial
_HP2, _WP2 = 5, 5           # after pool2
_F1, _F2, _F3 = 120, 84, 10
_OUT_LANES = 128            # lane-dense logits store (sliced to 10 outside)


# --------------------------------- kernel -----------------------------------

def _lenet_kernel(x_ref, m1_ref, b1_ref, ce1_ref, re1_ref,
                  m2_ref, b2_ref, ce2_ref, re2_ref,
                  rsel_ref, w1y_ref, fc1b_ref, fc2w_ref, fc2b_ref,
                  fc3w_ref, fc3b_ref, out_ref,
                  xpad_ref, p1pad_ref):
    f32 = jnp.float32
    rows1 = xpad_ref.shape[0] - 8       # block_b * 32 (conv1 row pitch)
    rows2 = p1pad_ref.shape[0] - 8      # block_b * 14 (conv2 row pitch)
    blk = rows1 // _H0                  # images per grid step

    # Stage the input block into a zero-tail-padded scratch so every ky tap is
    # a plain, in-bounds sublane-offset read (finite values everywhere ->
    # "garbage" rows are safely zeroed out later by the 0/1 selector matmuls).
    xpad_ref[pl.ds(0, rows1), :] = x_ref[...]
    xpad_ref[pl.ds(rows1, 8), :] = jnp.zeros((8, xpad_ref.shape[1]), f32)

    # conv1 (3->6, 5x5, valid): 5 banded MXU matmuls, + bias, + ReLU.
    # acc1[b*32 + y, co*28 + x] = conv1 output (y < 28 valid, rest ignored).
    acc1 = jnp.zeros((rows1, _C1 * _W1), f32)
    for ky in range(_K):
        acc1 = acc1 + jnp.dot(xpad_ref[pl.ds(ky, rows1), :], m1_ref[ky],
                              preferred_element_type=f32)
    a1 = jnp.maximum(acc1 + b1_ref[...], 0.0)

    # 2x2 max-pool, batched over channels (column selectors) and over the
    # whole batch block (row selectors).
    pc1 = jnp.maximum(jnp.dot(a1, ce1_ref[0], preferred_element_type=f32),
                      jnp.dot(a1, ce1_ref[1], preferred_element_type=f32))
    p1 = jnp.maximum(jnp.dot(re1_ref[0], pc1, preferred_element_type=f32),
                     jnp.dot(re1_ref[1], pc1, preferred_element_type=f32))
    # p1: [blk*14, 6*14], rows = b*14 + y, lanes = ci*14 + x.

    p1pad_ref[pl.ds(0, rows2), :] = p1
    p1pad_ref[pl.ds(rows2, 8), :] = jnp.zeros((8, p1pad_ref.shape[1]), f32)

    # conv2 (6->16, 5x5, valid): 5 banded MXU matmuls, + bias, + ReLU.
    acc2 = jnp.zeros((rows2, _C2 * _W2), f32)
    for ky in range(_K):
        acc2 = acc2 + jnp.dot(p1pad_ref[pl.ds(ky, rows2), :], m2_ref[ky],
                              preferred_element_type=f32)
    a2 = jnp.maximum(acc2 + b2_ref[...], 0.0)

    pc2 = jnp.maximum(jnp.dot(a2, ce2_ref[0], preferred_element_type=f32),
                      jnp.dot(a2, ce2_ref[1], preferred_element_type=f32))
    p2 = jnp.maximum(jnp.dot(re2_ref[0], pc2, preferred_element_type=f32),
                     jnp.dot(re2_ref[1], pc2, preferred_element_type=f32))
    # p2: [blk*5, 16*5], rows = b*5 + y, lanes = co*5 + x.

    # fc1: the torch .view (co, y, x) flatten order is absorbed offline into
    # the per-y weight slices w1y; rsel[y] gathers row y of every image.
    h1 = jnp.zeros((blk, _F1), f32)
    for y in range(_HP2):
        rows_y = jnp.dot(rsel_ref[y], p2, preferred_element_type=f32)  # [blk,80]
        h1 = h1 + jnp.dot(rows_y, w1y_ref[y], preferred_element_type=f32)
    h1 = jnp.maximum(h1 + fc1b_ref[...], 0.0)

    # TODO(synk): nn.Dropout(0.5) is the identity in eval/inference mode;
    # training-mode dropout would mask h1 using pltpu.prng_seed /
    # pltpu.prng_random_bits here.

    h2 = jnp.maximum(
        jnp.dot(h1, fc2w_ref[...], preferred_element_type=f32) + fc2b_ref[...],
        0.0)
    # fc3 weights/bias are pre-padded to 128 lanes -> lane-dense output store.
    out_ref[...] = (jnp.dot(h2, fc3w_ref[...], preferred_element_type=f32)
                    + fc3b_ref[...])


# -------------------------------- wrapper ------------------------------------

def net_forward(kp, x, *, block_b=2):
    """x: [B, 3, 32, 32] float32 (NCHW) -> logits [B, 10]."""
    B = x.shape[0]
    bp = pl.cdiv(B, block_b) * block_b
    # Layout plumbing (once per call, tiny): NCHW -> rows = b*32+y, lanes = ci*32+x.
    xr = jnp.transpose(x, (0, 2, 1, 3)).reshape(B * _H0, _C0 * _W0)
    if bp != B:
        xr = jnp.pad(xr, ((0, (bp - B) * _H0), (0, 0)))

    steps = bp // block_b
    vmem = pl.BlockSpec(memory_space=pltpu.MemorySpace.VMEM)

    out = pl.pallas_call(
        _lenet_kernel,
        out_shape=jax.ShapeDtypeStruct((steps, block_b, _OUT_LANES),
                                       jnp.float32),
        grid=(steps,),
        in_specs=[pl.BlockSpec((block_b * _H0, _C0 * _W0), lambda i: (i, 0))]
                 + [vmem] * 15,
        out_specs=pl.BlockSpec((None, block_b, _OUT_LANES),
                               lambda i: (i, 0, 0)),
        scratch_shapes=[
            pltpu.VMEM((block_b * _H0 + 8, _C0 * _W0), jnp.float32),  # x pad
            pltpu.VMEM((block_b * _HP1 + 8, _C1 * _WP1), jnp.float32),  # p1 pad
        ],
        compiler_params=pltpu.CompilerParams(
            dimension_semantics=("parallel",),
            vmem_limit_bytes=32 * 1024 * 1024),
    )(xr, kp["m1"], kp["b1"], kp["ce1"], kp["re1"],
      kp["m2"], kp["b2"], kp["ce2"], kp["re2"],
      kp["rsel"], kp["w1y"], kp["fc1_b"], kp["fc2_w"], kp["fc2_b"],
      kp["fc3_w"], kp["fc3_b"])
    return out.reshape(bp, _OUT_LANES)[:B, :_F3]


# ---------------------------- parameter prep ---------------------------------

def init_params(key):
    """Deterministic PyTorch-layout parameters (uniform +-1/sqrt(fan_in))."""
    def uniform(k, shape, fan_in):
        bound = 1.0 / math.sqrt(fan_in)
        return jax.random.uniform(k, shape, jnp.float32, -bound, bound)

    ks = jax.random.split(key, 10)
    return {
        "conv1_w": uniform(ks[0], (_C1, _C0, _K, _K), _C0 * _K * _K),
        "conv1_b": uniform(ks[1], (_C1,), _C0 * _K * _K),
        "conv2_w": uniform(ks[2], (_C2, _C1, _K, _K), _C1 * _K * _K),
        "conv2_b": uniform(ks[3], (_C2,), _C1 * _K * _K),
        "fc1_w": uniform(ks[4], (_F1, _C2 * _HP2 * _WP2), 400),
        "fc1_b": uniform(ks[5], (_F1,), 400),
        "fc2_w": uniform(ks[6], (_F2, _F1), _F1),
        "fc2_b": uniform(ks[7], (_F2,), _F1),
        "fc3_w": uniform(ks[8], (_F3, _F2), _F2),
        "fc3_b": uniform(ks[9], (_F3,), _F2),
    }


def prepare_params(params, *, block_b=2):
    """One-time repack of PyTorch-layout weights into kernel-ready operands."""
    w1 = np.asarray(params["conv1_w"], np.float32)
    w2 = np.asarray(params["conv2_w"], np.float32)
    fc1_w = np.asarray(params["fc1_w"], np.float32)
    fc2_w = np.asarray(params["fc2_w"], np.float32)
    fc3_w = np.asarray(params["fc3_w"], np.float32)

    def band(w, w_in, w_out):
        # [cout, cin, 5, 5] -> 5 banded matrices [cin*w_in, cout*w_out] so that
        # (row[y+ky] @ band[ky])[co*w_out + xo] accumulates the (ky,*) taps.
        cout, cin, k, _ = w.shape
        m = np.zeros((k, cin * w_in, cout * w_out), np.float32)
        xo = np.arange(w_out)
        for ky in range(k):
            for kx in range(k):
                for ci in range(cin):
                    for co in range(cout):
                        m[ky, ci * w_in + xo + kx, co * w_out + xo] = (
                            w[co, ci, ky, kx])
        return m

    def col_pool_sel(cout, w_in):
        w_out = w_in // 2
        e = np.zeros((2, cout * w_in, cout * w_out), np.float32)
        for p in range(2):
            for co in range(cout):
                for xo in range(w_out):
                    e[p, co * w_in + 2 * xo + p, co * w_out + xo] = 1.0
        return e

    def row_pool_sel(blk, src_pitch, h_out):
        r = np.zeros((2, blk * h_out, blk * src_pitch), np.float32)
        for p in range(2):
            for b in range(blk):
                for yo in range(h_out):
                    r[p, b * h_out + yo, b * src_pitch + 2 * yo + p] = 1.0
        return r

    # fc1: absorb the torch .view flatten order (co, y, x) into per-y slices.
    w1y = np.zeros((_HP2, _C2 * _WP2, _F1), np.float32)
    for y in range(_HP2):
        for co in range(_C2):
            for x in range(_WP2):
                w1y[y, co * _WP2 + x, :] = fc1_w[:, co * _HP2 * _WP2
                                                 + y * _WP2 + x]

    rsel = np.zeros((_HP2, block_b, block_b * _HP2), np.float32)
    for y in range(_HP2):
        for b in range(block_b):
            rsel[y, b, b * _HP2 + y] = 1.0

    fc3_w_pad = np.zeros((_F2, _OUT_LANES), np.float32)
    fc3_w_pad[:, :_F3] = fc3_w.T
    fc3_b_pad = np.zeros((1, _OUT_LANES), np.float32)
    fc3_b_pad[0, :_F3] = np.asarray(params["fc3_b"], np.float32)

    return {
        "m1": jnp.asarray(band(w1, _W0, _W1)),                   # [5, 96, 168]
        "b1": jnp.asarray(np.repeat(np.asarray(params["conv1_b"], np.float32),
                                    _W1)[None, :]),              # [1, 168]
        "ce1": jnp.asarray(col_pool_sel(_C1, _W1)),              # [2, 168, 84]
        "re1": jnp.asarray(row_pool_sel(block_b, _H0, _HP1)),    # [2, b*14, b*32]
        "m2": jnp.asarray(band(w2, _WP1, _W2)),                  # [5, 84, 160]
        "b2": jnp.asarray(np.repeat(np.asarray(params["conv2_b"], np.float32),
                                    _W2)[None, :]),              # [1, 160]
        "ce2": jnp.asarray(col_pool_sel(_C2, _W2)),              # [2, 160, 80]
        "re2": jnp.asarray(row_pool_sel(block_b, _HP1, _HP2)),   # [2, b*5, b*14]
        "rsel": jnp.asarray(rsel),                               # [5, b, b*5]
        "w1y": jnp.asarray(w1y),                                 # [5, 80, 120]
        "fc1_b": jnp.asarray(params["fc1_b"]).reshape(1, -1),    # [1, 120]
        "fc2_w": jnp.asarray(fc2_w.T),                           # [120, 84]
        "fc2_b": jnp.asarray(params["fc2_b"]).reshape(1, -1),    # [1, 84]
        "fc3_w": jnp.asarray(fc3_w_pad),                         # [84, 128]
        "fc3_b": jnp.asarray(fc3_b_pad),                         # [1, 128]
    }


# --------------------------- pure-JAX reference -------------------------------

def reference_forward(params, x):
    dn = ("NCHW", "OIHW", "NCHW")
    y = lax.conv_general_dilated(x, params["conv1_w"], (1, 1), "VALID",
                                 dimension_numbers=dn)
    y = jax.nn.relu(y + params["conv1_b"][None, :, None, None])
    y = lax.reduce_window(y, -jnp.inf, lax.max, (1, 1, 2, 2), (1, 1, 2, 2),
                          "VALID")
    y = lax.conv_general_dilated(y, params["conv2_w"], (1, 1), "VALID",
                                 dimension_numbers=dn)
    y = jax.nn.relu(y + params["conv2_b"][None, :, None, None])
    y = lax.reduce_window(y, -jnp.inf, lax.max, (1, 1, 2, 2), (1, 1, 2, 2),
                          "VALID")
    y = y.reshape(y.shape[0], -1)                      # torch .view order
    y = jax.nn.relu(y @ params["fc1_w"].T + params["fc1_b"])
    y = jax.nn.relu(y @ params["fc2_w"].T + params["fc2_b"])   # dropout = id
    return y @ params["fc3_w"].T + params["fc3_b"]


# ----------------------------------- main -------------------------------------

if __name__ == "__main__":
    key = jax.random.PRNGKey(0)
    pkey, xkey = jax.random.split(key)

    B, BLK = 4, 2                      # 2 grid steps -> parallel across cores
    params = init_params(pkey)
    kparams = prepare_params(params, block_b=BLK)   # one-time repack

    # LeNet geometry requires 32x32 spatial input (16*5*5 flatten).
    x = jax.random.normal(xkey, (B, _C0, _H0, _W0), jnp.float32)

    fwd = jax.jit(net_forward, static_argnames=("block_b",))
    out = fwd(kparams, x, block_b=BLK)
    out = jax.block_until_ready(out)
    assert out.shape == (B, _F3) and out.dtype == jnp.float32

    ref = jax.block_until_ready(reference_forward(params, x))
    err = float(jnp.max(jnp.abs(out - ref)))
    assert err < 5e-2, f"kernel/reference mismatch: max abs err {err}"

    print("KERNEL_OK")
</pallas_src>

<mosaic_0001>
module attributes {stable_mosaic.version = 11 : i64} {
  func.func @_lenet_kernel(%arg0: i32, %arg1: memref<64x96xf32, #tpu.memory_space<vmem>>, %arg2: memref<5x96x168xf32, #tpu.memory_space<vmem>>, %arg3: memref<1x168xf32, #tpu.memory_space<vmem>>, %arg4: memref<2x168x84xf32, #tpu.memory_space<vmem>>, %arg5: memref<2x28x64xf32, #tpu.memory_space<vmem>>, %arg6: memref<5x84x160xf32, #tpu.memory_space<vmem>>, %arg7: memref<1x160xf32, #tpu.memory_space<vmem>>, %arg8: memref<2x160x80xf32, #tpu.memory_space<vmem>>, %arg9: memref<2x10x28xf32, #tpu.memory_space<vmem>>, %arg10: memref<5x2x10xf32, #tpu.memory_space<vmem>>, %arg11: memref<5x80x120xf32, #tpu.memory_space<vmem>>, %arg12: memref<1x120xf32, #tpu.memory_space<vmem>>, %arg13: memref<120x84xf32, #tpu.memory_space<vmem>>, %arg14: memref<1x84xf32, #tpu.memory_space<vmem>>, %arg15: memref<84x128xf32, #tpu.memory_space<vmem>>, %arg16: memref<1x128xf32, #tpu.memory_space<vmem>>, %arg17: memref<1x2x128xf32, #tpu.memory_space<vmem>>, %arg18: memref<72x96xf32, #tpu.memory_space<vmem>>, %arg19: memref<36x84xf32, #tpu.memory_space<vmem>>) attributes {dimension_semantics = [#tpu.dimension_semantics<parallel>], iteration_bounds = array<i64: 2>, scalar_prefetch = 0 : i64, scratch_operands = 2 : i64, tpu.core_type = #tpu.core_type<tc>, window_params = [{transform_indices = @transform_0, window_bounds = array<i64: 64, 96>}, {pipeline_mode = #tpu.pipeline_mode<synchronous>, transform_indices = @transform_1, window_bounds = array<i64: 5, 96, 168>}, {pipeline_mode = #tpu.pipeline_mode<synchronous>, transform_indices = @transform_2, window_bounds = array<i64: 1, 168>}, {pipeline_mode = #tpu.pipeline_mode<synchronous>, transform_indices = @transform_3, window_bounds = array<i64: 2, 168, 84>}, {pipeline_mode = #tpu.pipeline_mode<synchronous>, transform_indices = @transform_4, window_bounds = array<i64: 2, 28, 64>}, {pipeline_mode = #tpu.pipeline_mode<synchronous>, transform_indices = @transform_5, window_bounds = array<i64: 5, 84, 160>}, {pipeline_mode = #tpu.pipeline_mode<synchronous>, transform_indices = @transform_6, window_bounds = array<i64: 1, 160>}, {pipeline_mode = #tpu.pipeline_mode<synchronous>, transform_indices = @transform_7, window_bounds = array<i64: 2, 160, 80>}, {pipeline_mode = #tpu.pipeline_mode<synchronous>, transform_indices = @transform_8, window_bounds = array<i64: 2, 10, 28>}, {pipeline_mode = #tpu.pipeline_mode<synchronous>, transform_indices = @transform_9, window_bounds = array<i64: 5, 2, 10>}, {pipeline_mode = #tpu.pipeline_mode<synchronous>, transform_indices = @transform_10, window_bounds = array<i64: 5, 80, 120>}, {pipeline_mode = #tpu.pipeline_mode<synchronous>, transform_indices = @transform_11, window_bounds = array<i64: 1, 120>}, {pipeline_mode = #tpu.pipeline_mode<synchronous>, transform_indices = @transform_12, window_bounds = array<i64: 120, 84>}, {pipeline_mode = #tpu.pipeline_mode<synchronous>, transform_indices = @transform_13, window_bounds = array<i64: 1, 84>}, {pipeline_mode = #tpu.pipeline_mode<synchronous>, transform_indices = @transform_14, window_bounds = array<i64: 84, 128>}, {pipeline_mode = #tpu.pipeline_mode<synchronous>, transform_indices = @transform_15, window_bounds = array<i64: 1, 128>}, {transform_indices = @transform_16, window_bounds = array<i64: 1, 2, 128>}]} {
    %c0 = arith.constant 0 : index
    %c0_0 = arith.constant 0 : index
    %0 = vector.load %arg1[%c0, %c0_0] : memref<64x96xf32, #tpu.memory_space<vmem>>, vector<64x96xf32>
    %c0_1 = arith.constant 0 : index
    %c0_2 = arith.constant 0 : index
    %1 = vector.load %arg18[%c0_1, %c0_2] : memref<72x96xf32, #tpu.memory_space<vmem>>, vector<64x96xf32>
    tpu.vector_store %arg18[%c0_1, %c0_2], %0 {strides = array<i32>} : memref<72x96xf32, #tpu.memory_space<vmem>>, vector<64x96xf32>,
    %cst = arith.constant 0.000000e+00 : f32
    %2 = vector.broadcast %cst : f32 to vector<8x96xf32>
    %c64 = arith.constant 64 : index
    %c0_3 = arith.constant 0 : index
    %3 = vector.load %arg18[%c64, %c0_3] : memref<72x96xf32, #tpu.memory_space<vmem>>, vector<8x96xf32>
    tpu.vector_store %arg18[%c64, %c0_3], %2 {strides = array<i32>} : memref<72x96xf32, #tpu.memory_space<vmem>>, vector<8x96xf32>,
    %cst_4 = arith.constant 0.000000e+00 : f32
    %4 = vector.broadcast %cst_4 : f32 to vector<64x168xf32>
    %c0_5 = arith.constant 0 : index
    %c0_6 = arith.constant 0 : index
    %5 = vector.load %arg18[%c0_5, %c0_6] : memref<72x96xf32, #tpu.memory_space<vmem>>, vector<64x96xf32>
    %c0_7 = arith.constant 0 : index
    %c0_8 = arith.constant 0 : index
    %c0_9 = arith.constant 0 : index
    %6 = vector.load %arg2[%c0_7, %c0_8, %c0_9] : memref<5x96x168xf32, #tpu.memory_space<vmem>>, vector<1x96x168xf32>
    %7 = vector.shape_cast %6 : vector<1x96x168xf32> to vector<96x168xf32>
    %cst_10 = arith.constant dense<0.000000e+00> : vector<64x168xf32>
    %8 = tpu.matmul %5, %7, %cst_10 {dimension_numbers = #tpu.dot_dimension_numbers<[1], [0], [0], [1], [0, 0, 1, 1], [], []>} : vector<64x96xf32>, vector<96x168xf32>, vector<64x168xf32> -> vector<64x168xf32>
    %9 = arith.addf %4, %8 : vector<64x168xf32>
    %c1 = arith.constant 1 : index
    %c0_11 = arith.constant 0 : index
    %10 = vector.load %arg18[%c1, %c0_11] : memref<72x96xf32, #tpu.memory_space<vmem>>, vector<64x96xf32>
    %c1_12 = arith.constant 1 : index
    %c0_13 = arith.constant 0 : index
    %c0_14 = arith.constant 0 : index
    %11 = vector.load %arg2[%c1_12, %c0_13, %c0_14] : memref<5x96x168xf32, #tpu.memory_space<vmem>>, vector<1x96x168xf32>
    %12 = vector.shape_cast %11 : vector<1x96x168xf32> to vector<96x168xf32>
    %cst_15 = arith.constant dense<0.000000e+00> : vector<64x168xf32>
    %13 = tpu.matmul %10, %12, %cst_15 {dimension_numbers = #tpu.dot_dimension_numbers<[1], [0], [0], [1], [0, 0, 1, 1], [], []>} : vector<64x96xf32>, vector<96x168xf32>, vector<64x168xf32> -> vector<64x168xf32>
    %14 = arith.addf %9, %13 : vector<64x168xf32>
    %c2 = arith.constant 2 : index
    %c0_16 = arith.constant 0 : index
    %15 = vector.load %arg18[%c2, %c0_16] : memref<72x96xf32, #tpu.memory_space<vmem>>, vector<64x96xf32>
    %c2_17 = arith.constant 2 : index
    %c0_18 = arith.constant 0 : index
    %c0_19 = arith.constant 0 : index
    %16 = vector.load %arg2[%c2_17, %c0_18, %c0_19] : memref<5x96x168xf32, #tpu.memory_space<vmem>>, vector<1x96x168xf32>
    %17 = vector.shape_cast %16 : vector<1x96x168xf32> to vector<96x168xf32>
    %cst_20 = arith.constant dense<0.000000e+00> : vector<64x168xf32>
    %18 = tpu.matmul %15, %17, %cst_20 {dimension_numbers = #tpu.dot_dimension_numbers<[1], [0], [0], [1], [0, 0, 1, 1], [], []>} : vector<64x96xf32>, vector<96x168xf32>, vector<64x168xf32> -> vector<64x168xf32>
    %19 = arith.addf %14, %18 : vector<64x168xf32>
    %c3 = arith.constant 3 : index
    %c0_21 = arith.constant 0 : index
    %20 = vector.load %arg18[%c3, %c0_21] : memref<72x96xf32, #tpu.memory_space<vmem>>, vector<64x96xf32>
    %c3_22 = arith.constant 3 : index
    %c0_23 = arith.constant 0 : index
    %c0_24 = arith.constant 0 : index
    %21 = vector.load %arg2[%c3_22, %c0_23, %c0_24] : memref<5x96x168xf32, #tpu.memory_space<vmem>>, vector<1x96x168xf32>
    %22 = vector.shape_cast %21 : vector<1x96x168xf32> to vector<96x168xf32>
    %cst_25 = arith.constant dense<0.000000e+00> : vector<64x168xf32>
    %23 = tpu.matmul %20, %22, %cst_25 {dimension_numbers = #tpu.dot_dimension_numbers<[1], [0], [0], [1], [0, 0, 1, 1], [], []>} : vector<64x96xf32>, vector<96x168xf32>, vector<64x168xf32> -> vector<64x168xf32>
    %24 = arith.addf %19, %23 : vector<64x168xf32>
    %c4 = arith.constant 4 : index
    %c0_26 = arith.constant 0 : index
    %25 = vector.load %arg18[%c4, %c0_26] : memref<72x96xf32, #tpu.memory_space<vmem>>, vector<64x96xf32>
    %c4_27 = arith.constant 4 : index
    %c0_28 = arith.constant 0 : index
    %c0_29 = arith.constant 0 : index
    %26 = vector.load %arg2[%c4_27, %c0_28, %c0_29] : memref<5x96x168xf32, #tpu.memory_space<vmem>>, vector<1x96x168xf32>
    %27 = vector.shape_cast %26 : vector<1x96x168xf32> to vector<96x168xf32>
    %cst_30 = arith.constant dense<0.000000e+00> : vector<64x168xf32>
    %28 = tpu.matmul %25, %27, %cst_30 {dimension_numbers = #tpu.dot_dimension_numbers<[1], [0], [0], [1], [0, 0, 1, 1], [], []>} : vector<64x96xf32>, vector<96x168xf32>, vector<64x168xf32> -> vector<64x168xf32>
    %29 = arith.addf %24, %28 : vector<64x168xf32>
    %c0_31 = arith.constant 0 : index
    %c0_32 = arith.constant 0 : index
    %30 = vector.load %arg3[%c0_31, %c0_32] : memref<1x168xf32, #tpu.memory_space<vmem>>, vector<1x168xf32>
    %31 = vector.broadcast %30 : vector<1x168xf32> to vector<64x168xf32>
    %32 = arith.addf %29, %31 : vector<64x168xf32>
    %cst_33 = arith.constant 0.000000e+00 : f32
    %33 = vector.broadcast %cst_33 : f32 to vector<64x168xf32>
    %34 = arith.maximumf %32, %33 : vector<64x168xf32>
    %c0_34 = arith.constant 0 : index
    %c0_35 = arith.constant 0 : index
    %c0_36 = arith.constant 0 : index
    %35 = vector.load %arg4[%c0_34, %c0_35, %c0_36] : memref<2x168x84xf32, #tpu.memory_space<vmem>>, vector<1x168x84xf32>
    %36 = vector.shape_cast %35 : vector<1x168x84xf32> to vector<168x84xf32>
    %cst_37 = arith.constant dense<0.000000e+00> : vector<64x84xf32>
    %37 = tpu.matmul %34, %36, %cst_37 {dimension_numbers = #tpu.dot_dimension_numbers<[1], [0], [0], [1], [0, 0, 1, 1], [], []>} : vector<64x168xf32>, vector<168x84xf32>, vector<64x84xf32> -> vector<64x84xf32>
    %c1_38 = arith.constant 1 : index
    %c0_39 = arith.constant 0 : index
    %c0_40 = arith.constant 0 : index
    %38 = vector.load %arg4[%c1_38, %c0_39, %c0_40] : memref<2x168x84xf32, #tpu.memory_space<vmem>>, vector<1x168x84xf32>
    %39 = vector.shape_cast %38 : vector<1x168x84xf32> to vector<168x84xf32>
    %cst_41 = arith.constant dense<0.000000e+00> : vector<64x84xf32>
    %40 = tpu.matmul %34, %39, %cst_41 {dimension_numbers = #tpu.dot_dimension_numbers<[1], [0], [0], [1], [0, 0, 1, 1], [], []>} : vector<64x168xf32>, vector<168x84xf32>, vector<64x84xf32> -> vector<64x84xf32>
    %41 = arith.maximumf %37, %40 : vector<64x84xf32>
    %c0_42 = arith.constant 0 : index
    %c0_43 = arith.constant 0 : index
    %c0_44 = arith.constant 0 : index
    %42 = vector.load %arg5[%c0_42, %c0_43, %c0_44] : memref<2x28x64xf32, #tpu.memory_space<vmem>>, vector<1x28x64xf32>
    %43 = vector.shape_cast %42 : vector<1x28x64xf32> to vector<28x64xf32>
    %cst_45 = arith.constant dense<0.000000e+00> : vector<28x84xf32>
    %44 = tpu.matmul %43, %41, %cst_45 {dimension_numbers = #tpu.dot_dimension_numbers<[1], [0], [0], [1], [0, 0, 1, 1], [], []>} : vector<28x64xf32>, vector<64x84xf32>, vector<28x84xf32> -> vector<28x84xf32>
    %c1_46 = arith.constant 1 : index
    %c0_47 = arith.constant 0 : index
    %c0_48 = arith.constant 0 : index
    %45 = vector.load %arg5[%c1_46, %c0_47, %c0_48] : memref<2x28x64xf32, #tpu.memory_space<vmem>>, vector<1x28x64xf32>
    %46 = vector.shape_cast %45 : vector<1x28x64xf32> to vector<28x64xf32>
    %cst_49 = arith.constant dense<0.000000e+00> : vector<28x84xf32>
    %47 = tpu.matmul %46, %41, %cst_49 {dimension_numbers = #tpu.dot_dimension_numbers<[1], [0], [0], [1], [0, 0, 1, 1], [], []>} : vector<28x64xf32>, vector<64x84xf32>, vector<28x84xf32> -> vector<28x84xf32>
    %48 = arith.maximumf %44, %47 : vector<28x84xf32>
    %c0_50 = arith.constant 0 : index
    %c0_51 = arith.constant 0 : index
    %49 = vector.load %arg19[%c0_50, %c0_51] : memref<36x84xf32, #tpu.memory_space<vmem>>, vector<28x84xf32>
    tpu.vector_store %arg19[%c0_50, %c0_51], %48 {strides = array<i32>} : memref<36x84xf32, #tpu.memory_space<vmem>>, vector<28x84xf32>,
    %cst_52 = arith.constant 0.000000e+00 : f32
    %50 = vector.broadcast %cst_52 : f32 to vector<8x84xf32>
    %c28 = arith.constant 28 : index
    %c0_53 = arith.constant 0 : index
    %51 = vector.load %arg19[%c28, %c0_53] : memref<36x84xf32, #tpu.memory_space<vmem>>, vector<8x84xf32>
    tpu.vector_store %arg19[%c28, %c0_53], %50 {strides = array<i32>} : memref<36x84xf32, #tpu.memory_space<vmem>>, vector<8x84xf32>,
    %cst_54 = arith.constant 0.000000e+00 : f32
    %52 = vector.broadcast %cst_54 : f32 to vector<28x160xf32>
    %c0_55 = arith.constant 0 : index
    %c0_56 = arith.constant 0 : index
    %53 = vector.load %arg19[%c0_55, %c0_56] : memref<36x84xf32, #tpu.memory_space<vmem>>, vector<28x84xf32>
    %c0_57 = arith.constant 0 : index
    %c0_58 = arith.constant 0 : index
    %c0_59 = arith.constant 0 : index
    %54 = vector.load %arg6[%c0_57, %c0_58, %c0_59] : memref<5x84x160xf32, #tpu.memory_space<vmem>>, vector<1x84x160xf32>
    %55 = vector.shape_cast %54 : vector<1x84x160xf32> to vector<84x160xf32>
    %cst_60 = arith.constant dense<0.000000e+00> : vector<28x160xf32>
    %56 = tpu.matmul %53, %55, %cst_60 {dimension_numbers = #tpu.dot_dimension_numbers<[1], [0], [0], [1], [0, 0, 1, 1], [], []>} : vector<28x84xf32>, vector<84x160xf32>, vector<28x160xf32> -> vector<28x160xf32>
    %57 = arith.addf %52, %56 : vector<28x160xf32>
    %c1_61 = arith.constant 1 : index
    %c0_62 = arith.constant 0 : index
    %58 = vector.load %arg19[%c1_61, %c0_62] : memref<36x84xf32, #tpu.memory_space<vmem>>, vector<28x84xf32>
    %c1_63 = arith.constant 1 : index
    %c0_64 = arith.constant 0 : index
    %c0_65 = arith.constant 0 : index
    %59 = vector.load %arg6[%c1_63, %c0_64, %c0_65] : memref<5x84x160xf32, #tpu.memory_space<vmem>>, vector<1x84x160xf32>
    %60 = vector.shape_cast %59 : vector<1x84x160xf32> to vector<84x160xf32>
    %cst_66 = arith.constant dense<0.000000e+00> : vector<28x160xf32>
    %61 = tpu.matmul %58, %60, %cst_66 {dimension_numbers = #tpu.dot_dimension_numbers<[1], [0], [0], [1], [0, 0, 1, 1], [], []>} : vector<28x84xf32>, vector<84x160xf32>, vector<28x160xf32> -> vector<28x160xf32>
    %62 = arith.addf %57, %61 : vector<28x160xf32>
    %c2_67 = arith.constant 2 : index
    %c0_68 = arith.constant 0 : index
    %63 = vector.load %arg19[%c2_67, %c0_68] : memref<36x84xf32, #tpu.memory_space<vmem>>, vector<28x84xf32>
    %c2_69 = arith.constant 2 : index
    %c0_70 = arith.constant 0 : index
    %c0_71 = arith.constant 0 : index
    %64 = vector.load %arg6[%c2_69, %c0_70, %c0_71] : memref<5x84x160xf32, #tpu.memory_space<vmem>>, vector<1x84x160xf32>
    %65 = vector.shape_cast %64 : vector<1x84x160xf32> to vector<84x160xf32>
    %cst_72 = arith.constant dense<0.000000e+00> : vector<28x160xf32>
    %66 = tpu.matmul %63, %65, %cst_72 {dimension_numbers = #tpu.dot_dimension_numbers<[1], [0], [0], [1], [0, 0, 1, 1], [], []>} : vector<28x84xf32>, vector<84x160xf32>, vector<28x160xf32> -> vector<28x160xf32>
    %67 = arith.addf %62, %66 : vector<28x160xf32>
    %c3_73 = arith.constant 3 : index
    %c0_74 = arith.constant 0 : index
    %68 = vector.load %arg19[%c3_73, %c0_74] : memref<36x84xf32, #tpu.memory_space<vmem>>, vector<28x84xf32>
    %c3_75 = arith.constant 3 : index
    %c0_76 = arith.constant 0 : index
    %c0_77 = arith.constant 0 : index
    %69 = vector.load %arg6[%c3_75, %c0_76, %c0_77] : memref<5x84x160xf32, #tpu.memory_space<vmem>>, vector<1x84x160xf32>
    %70 = vector.shape_cast %69 : vector<1x84x160xf32> to vector<84x160xf32>
    %cst_78 = arith.constant dense<0.000000e+00> : vector<28x160xf32>
    %71 = tpu.matmul %68, %70, %cst_78 {dimension_numbers = #tpu.dot_dimension_numbers<[1], [0], [0], [1], [0, 0, 1, 1], [], []>} : vector<28x84xf32>, vector<84x160xf32>, vector<28x160xf32> -> vector<28x160xf32>
    %72 = arith.addf %67, %71 : vector<28x160xf32>
    %c4_79 = arith.constant 4 : index
    %c0_80 = arith.constant 0 : index
    %73 = vector.load %arg19[%c4_79, %c0_80] : memref<36x84xf32, #tpu.memory_space<vmem>>, vector<28x84xf32>
    %c4_81 = arith.constant 4 : index
    %c0_82 = arith.constant 0 : index
    %c0_83 = arith.constant 0 : index
    %74 = vector.load %arg6[%c4_81, %c0_82, %c0_83] : memref<5x84x160xf32, #tpu.memory_space<vmem>>, vector<1x84x160xf32>
    %75 = vector.shape_cast %74 : vector<1x84x160xf32> to vector<84x160xf32>
    %cst_84 = arith.constant dense<0.000000e+00> : vector<28x160xf32>
    %76 = tpu.matmul %73, %75, %cst_84 {dimension_numbers = #tpu.dot_dimension_numbers<[1], [0], [0], [1], [0, 0, 1, 1], [], []>} : vector<28x84xf32>, vector<84x160xf32>, vector<28x160xf32> -> vector<28x160xf32>
    %77 = arith.addf %72, %76 : vector<28x160xf32>
    %c0_85 = arith.constant 0 : index
    %c0_86 = arith.constant 0 : index
    %78 = vector.load %arg7[%c0_85, %c0_86] : memref<1x160xf32, #tpu.memory_space<vmem>>, vector<1x160xf32>
    %79 = vector.broadcast %78 : vector<1x160xf32> to vector<28x160xf32>
    %80 = arith.addf %77, %79 : vector<28x160xf32>
    %cst_87 = arith.constant 0.000000e+00 : f32
    %81 = vector.broadcast %cst_87 : f32 to vector<28x160xf32>
    %82 = arith.maximumf %80, %81 : vector<28x160xf32>
    %c0_88 = arith.constant 0 : index
    %c0_89 = arith.constant 0 : index
    %c0_90 = arith.constant 0 : index
    %83 = vector.load %arg8[%c0_88, %c0_89, %c0_90] : memref<2x160x80xf32, #tpu.memory_space<vmem>>, vector<1x160x80xf32>
    %84 = vector.shape_cast %83 : vector<1x160x80xf32> to vector<160x80xf32>
    %cst_91 = arith.constant dense<0.000000e+00> : vector<28x80xf32>
    %85 = tpu.matmul %82, %84, %cst_91 {dimension_numbers = #tpu.dot_dimension_numbers<[1], [0], [0], [1], [0, 0, 1, 1], [], []>} : vector<28x160xf32>, vector<160x80xf32>, vector<28x80xf32> -> vector<28x80xf32>
    %c1_92 = arith.constant 1 : index
    %c0_93 = arith.constant 0 : index
    %c0_94 = arith.constant 0 : index
    %86 = vector.load %arg8[%c1_92, %c0_93, %c0_94] : memref<2x160x80xf32, #tpu.memory_space<vmem>>, vector<1x160x80xf32>
    %87 = vector.shape_cast %86 : vector<1x160x80xf32> to vector<160x80xf32>
    %cst_95 = arith.constant dense<0.000000e+00> : vector<28x80xf32>
    %88 = tpu.matmul %82, %87, %cst_95 {dimension_numbers = #tpu.dot_dimension_numbers<[1], [0], [0], [1], [0, 0, 1, 1], [], []>} : vector<28x160xf32>, vector<160x80xf32>, vector<28x80xf32> -> vector<28x80xf32>
    %89 = arith.maximumf %85, %88 : vector<28x80xf32>
    %c0_96 = arith.constant 0 : index
    %c0_97 = arith.constant 0 : index
    %c0_98 = arith.constant 0 : index
    %90 = vector.load %arg9[%c0_96, %c0_97, %c0_98] : memref<2x10x28xf32, #tpu.memory_space<vmem>>, vector<1x10x28xf32>
    %91 = vector.shape_cast %90 : vector<1x10x28xf32> to vector<10x28xf32>
    %cst_99 = arith.constant dense<0.000000e+00> : vector<10x80xf32>
    %92 = tpu.matmul %91, %89, %cst_99 {dimension_numbers = #tpu.dot_dimension_numbers<[1], [0], [0], [1], [0, 0, 1, 1], [], []>} : vector<10x28xf32>, vector<28x80xf32>, vector<10x80xf32> -> vector<10x80xf32>
    %c1_100 = arith.constant 1 : index
    %c0_101 = arith.constant 0 : index
    %c0_102 = arith.constant 0 : index
    %93 = vector.load %arg9[%c1_100, %c0_101, %c0_102] : memref<2x10x28xf32, #tpu.memory_space<vmem>>, vector<1x10x28xf32>
    %94 = vector.shape_cast %93 : vector<1x10x28xf32> to vector<10x28xf32>
    %cst_103 = arith.constant dense<0.000000e+00> : vector<10x80xf32>
    %95 = tpu.matmul %94, %89, %cst_103 {dimension_numbers = #tpu.dot_dimension_numbers<[1], [0], [0], [1], [0, 0, 1, 1], [], []>} : vector<10x28xf32>, vector<28x80xf32>, vector<10x80xf32> -> vector<10x80xf32>
    %96 = arith.maximumf %92, %95 : vector<10x80xf32>
    %cst_104 = arith.constant 0.000000e+00 : f32
    %97 = vector.broadcast %cst_104 : f32 to vector<2x120xf32>
    %c0_105 = arith.constant 0 : index
    %c0_106 = arith.constant 0 : index
    %c0_107 = arith.constant 0 : index
    %98 = vector.load %arg10[%c0_105, %c0_106, %c0_107] : memref<5x2x10xf32, #tpu.memory_space<vmem>>, vector<1x2x10xf32>
    %99 = vector.shape_cast %98 : vector<1x2x10xf32> to vector<2x10xf32>
    %cst_108 = arith.constant dense<0.000000e+00> : vector<2x80xf32>
    %100 = tpu.matmul %99, %96, %cst_108 {dimension_numbers = #tpu.dot_dimension_numbers<[1], [0], [0], [1], [0, 0, 1, 1], [], []>} : vector<2x10xf32>, vector<10x80xf32>, vector<2x80xf32> -> vector<2x80xf32>
    %c0_109 = arith.constant 0 : index
    %c0_110 = arith.constant 0 : index
    %c0_111 = arith.constant 0 : index
    %101 = vector.load %arg11[%c0_109, %c0_110, %c0_111] : memref<5x80x120xf32, #tpu.memory_space<vmem>>, vector<1x80x120xf32>
    %102 = vector.shape_cast %101 : vector<1x80x120xf32> to vector<80x120xf32>
    %cst_112 = arith.constant dense<0.000000e+00> : vector<2x120xf32>
    %103 = tpu.matmul %100, %102, %cst_112 {dimension_numbers = #tpu.dot_dimension_numbers<[1], [0], [0], [1], [0, 0, 1, 1], [], []>} : vector<2x80xf32>, vector<80x120xf32>, vector<2x120xf32> -> vector<2x120xf32>
    %104 = arith.addf %97, %103 : vector<2x120xf32>
    %c1_113 = arith.constant 1 : index
    %c0_114 = arith.constant 0 : index
    %c0_115 = arith.constant 0 : index
    %105 = vector.load %arg10[%c1_113, %c0_114, %c0_115] : memref<5x2x10xf32, #tpu.memory_space<vmem>>, vector<1x2x10xf32>
    %106 = vector.shape_cast %105 : vector<1x2x10xf32> to vector<2x10xf32>
    %cst_116 = arith.constant dense<0.000000e+00> : vector<2x80xf32>
    %107 = tpu.matmul %106, %96, %cst_116 {dimension_numbers = #tpu.dot_dimension_numbers<[1], [0], [0], [1], [0, 0, 1, 1], [], []>} : vector<2x10xf32>, vector<10x80xf32>, vector<2x80xf32> -> vector<2x80xf32>
    %c1_117 = arith.constant 1 : index
    %c0_118 = arith.constant 0 : index
    %c0_119 = arith.constant 0 : index
    %108 = vector.load %arg11[%c1_117, %c0_118, %c0_119] : memref<5x80x120xf32, #tpu.memory_space<vmem>>, vector<1x80x120xf32>
    %109 = vector.shape_cast %108 : vector<1x80x120xf32> to vector<80x120xf32>
    %cst_120 = arith.constant dense<0.000000e+00> : vector<2x120xf32>
    %110 = tpu.matmul %107, %109, %cst_120 {dimension_numbers = #tpu.dot_dimension_numbers<[1], [0], [0], [1], [0, 0, 1, 1], [], []>} : vector<2x80xf32>, vector<80x120xf32>, vector<2x120xf32> -> vector<2x120xf32>
    %111 = arith.addf %104, %110 : vector<2x120xf32>
    %c2_121 = arith.constant 2 : index
    %c0_122 = arith.constant 0 : index
    %c0_123 = arith.constant 0 : index
    %112 = vector.load %arg10[%c2_121, %c0_122, %c0_123] : memref<5x2x10xf32, #tpu.memory_space<vmem>>, vector<1x2x10xf32>
    %113 = vector.shape_cast %112 : vector<1x2x10xf32> to vector<2x10xf32>
    %cst_124 = arith.constant dense<0.000000e+00> : vector<2x80xf32>
    %114 = tpu.matmul %113, %96, %cst_124 {dimension_numbers = #tpu.dot_dimension_numbers<[1], [0], [0], [1], [0, 0, 1, 1], [], []>} : vector<2x10xf32>, vector<10x80xf32>, vector<2x80xf32> -> vector<2x80xf32>
    %c2_125 = arith.constant 2 : index
    %c0_126 = arith.constant 0 : index
    %c0_127 = arith.constant 0 : index
    %115 = vector.load %arg11[%c2_125, %c0_126, %c0_127] : memref<5x80x120xf32, #tpu.memory_space<vmem>>, vector<1x80x120xf32>
    %116 = vector.shape_cast %115 : vector<1x80x120xf32> to vector<80x120xf32>
    %cst_128 = arith.constant dense<0.000000e+00> : vector<2x120xf32>
    %117 = tpu.matmul %114, %116, %cst_128 {dimension_numbers = #tpu.dot_dimension_numbers<[1], [0], [0], [1], [0, 0, 1, 1], [], []>} : vector<2x80xf32>, vector<80x120xf32>, vector<2x120xf32> -> vector<2x120xf32>
    %118 = arith.addf %111, %117 : vector<2x120xf32>
    %c3_129 = arith.constant 3 : index
    %c0_130 = arith.constant 0 : index
    %c0_131 = arith.constant 0 : index
    %119 = vector.load %arg10[%c3_129, %c0_130, %c0_131] : memref<5x2x10xf32, #tpu.memory_space<vmem>>, vector<1x2x10xf32>
    %120 = vector.shape_cast %119 : vector<1x2x10xf32> to vector<2x10xf32>
    %cst_132 = arith.constant dense<0.000000e+00> : vector<2x80xf32>
    %121 = tpu.matmul %120, %96, %cst_132 {dimension_numbers = #tpu.dot_dimension_numbers<[1], [0], [0], [1], [0, 0, 1, 1], [], []>} : vector<2x10xf32>, vector<10x80xf32>, vector<2x80xf32> -> vector<2x80xf32>
    %c3_133 = arith.constant 3 : index
    %c0_134 = arith.constant 0 : index
    %c0_135 = arith.constant 0 : index
    %122 = vector.load %arg11[%c3_133, %c0_134, %c0_135] : memref<5x80x120xf32, #tpu.memory_space<vmem>>, vector<1x80x120xf32>
    %123 = vector.shape_cast %122 : vector<1x80x120xf32> to vector<80x120xf32>
    %cst_136 = arith.constant dense<0.000000e+00> : vector<2x120xf32>
    %124 = tpu.matmul %121, %123, %cst_136 {dimension_numbers = #tpu.dot_dimension_numbers<[1], [0], [0], [1], [0, 0, 1, 1], [], []>} : vector<2x80xf32>, vector<80x120xf32>, vector<2x120xf32> -> vector<2x120xf32>
    %125 = arith.addf %118, %124 : vector<2x120xf32>
    %c4_137 = arith.constant 4 : index
    %c0_138 = arith.constant 0 : index
    %c0_139 = arith.constant 0 : index
    %126 = vector.load %arg10[%c4_137, %c0_138, %c0_139] : memref<5x2x10xf32, #tpu.memory_space<vmem>>, vector<1x2x10xf32>
    %127 = vector.shape_cast %126 : vector<1x2x10xf32> to vector<2x10xf32>
    %cst_140 = arith.constant dense<0.000000e+00> : vector<2x80xf32>
    %128 = tpu.matmul %127, %96, %cst_140 {dimension_numbers = #tpu.dot_dimension_numbers<[1], [0], [0], [1], [0, 0, 1, 1], [], []>} : vector<2x10xf32>, vector<10x80xf32>, vector<2x80xf32> -> vector<2x80xf32>
    %c4_141 = arith.constant 4 : index
    %c0_142 = arith.constant 0 : index
    %c0_143 = arith.constant 0 : index
    %129 = vector.load %arg11[%c4_141, %c0_142, %c0_143] : memref<5x80x120xf32, #tpu.memory_space<vmem>>, vector<1x80x120xf32>
    %130 = vector.shape_cast %129 : vector<1x80x120xf32> to vector<80x120xf32>
    %cst_144 = arith.constant dense<0.000000e+00> : vector<2x120xf32>
    %131 = tpu.matmul %128, %130, %cst_144 {dimension_numbers = #tpu.dot_dimension_numbers<[1], [0], [0], [1], [0, 0, 1, 1], [], []>} : vector<2x80xf32>, vector<80x120xf32>, vector<2x120xf32> -> vector<2x120xf32>
    %132 = arith.addf %125, %131 : vector<2x120xf32>
    %c0_145 = arith.constant 0 : index
    %c0_146 = arith.constant 0 : index
    %133 = vector.load %arg12[%c0_145, %c0_146] : memref<1x120xf32, #tpu.memory_space<vmem>>, vector<1x120xf32>
    %134 = vector.broadcast %133 : vector<1x120xf32> to vector<2x120xf32>
    %135 = arith.addf %132, %134 : vector<2x120xf32>
    %cst_147 = arith.constant 0.000000e+00 : f32
    %136 = vector.broadcast %cst_147 : f32 to vector<2x120xf32>
    %137 = arith.maximumf %135, %136 : vector<2x120xf32>
    %c0_148 = arith.constant 0 : index
    %c0_149 = arith.constant 0 : index
    %138 = vector.load %arg13[%c0_148, %c0_149] : memref<120x84xf32, #tpu.memory_space<vmem>>, vector<120x84xf32>
    %cst_150 = arith.constant dense<0.000000e+00> : vector<2x84xf32>
    %139 = tpu.matmul %137, %138, %cst_150 {dimension_numbers = #tpu.dot_dimension_numbers<[1], [0], [0], [1], [0, 0, 1, 1], [], []>} : vector<2x120xf32>, vector<120x84xf32>, vector<2x84xf32> -> vector<2x84xf32>
    %c0_151 = arith.constant 0 : index
    %c0_152 = arith.constant 0 : index
    %140 = vector.load %arg14[%c0_151, %c0_152] : memref<1x84xf32, #tpu.memory_space<vmem>>, vector<1x84xf32>
    %141 = vector.broadcast %140 : vector<1x84xf32> to vector<2x84xf32>
    %142 = arith.addf %139, %141 : vector<2x84xf32>
    %cst_153 = arith.constant 0.000000e+00 : f32
    %143 = vector.broadcast %cst_153 : f32 to vector<2x84xf32>
    %144 = arith.maximumf %142, %143 : vector<2x84xf32>
    %c0_154 = arith.constant 0 : index
    %c0_155 = arith.constant 0 : index
    %145 = vector.load %arg15[%c0_154, %c0_155] : memref<84x128xf32, #tpu.memory_space<vmem>>, vector<84x128xf32>
    %cst_156 = arith.constant dense<0.000000e+00> : vector<2x128xf32>
    %146 = tpu.matmul %144, %145, %cst_156 {dimension_numbers = #tpu.dot_dimension_numbers<[1], [0], [0], [1], [0, 0, 1, 1], [], []>} : vector<2x84xf32>, vector<84x128xf32>, vector<2x128xf32> -> vector<2x128xf32>
    %c0_157 = arith.constant 0 : index
    %c0_158 = arith.constant 0 : index
    %147 = vector.load %arg16[%c0_157, %c0_158] : memref<1x128xf32, #tpu.memory_space<vmem>>, vector<1x128xf32>
    %148 = vector.broadcast %147 : vector<1x128xf32> to vector<2x128xf32>
    %149 = arith.addf %146, %148 : vector<2x128xf32>
    %c0_159 = arith.constant 0 : index
    %c0_160 = arith.constant 0 : index
    %c0_161 = arith.constant 0 : index
    %150 = vector.load %arg17[%c0_159, %c0_160, %c0_161] : memref<1x2x128xf32, #tpu.memory_space<vmem>>, vector<1x2x128xf32>
    %151 = vector.shape_cast %150 : vector<1x2x128xf32> to vector<2x128xf32>
    %152 = vector.shape_cast %149 : vector<2x128xf32> to vector<1x2x128xf32>
    tpu.vector_store %arg17[%c0_159, %c0_160, %c0_161], %152 {strides = array<i32>} : memref<1x2x128xf32, #tpu.memory_space<vmem>>, vector<1x2x128xf32>,
    return
  }
  func.func @transform_0(%arg0: i32) -> (i32, i32) {
    %c0_i32 = arith.constant 0 : i32
    %c0_i32_0 = arith.constant 0 : i32
    return %arg0, %c0_i32 : i32, i32
  }
  func.func @transform_1(%arg0: i32) -> (i32, i32, i32) {
    %c0_i32 = arith.constant 0 : i32
    %c0_i32_0 = arith.constant 0 : i32
    %c0_i32_1 = arith.constant 0 : i32
    %c0_i32_2 = arith.constant 0 : i32
    return %c0_i32, %c0_i32_0, %c0_i32_1 : i32, i32, i32
  }
  func.func @transform_2(%arg0: i32) -> (i32, i32) {
    %c0_i32 = arith.constant 0 : i32
    %c0_i32_0 = arith.constant 0 : i32
    %c0_i32_1 = arith.constant 0 : i32
    return %c0_i32, %c0_i32_0 : i32, i32
  }
  func.func @transform_3(%arg0: i32) -> (i32, i32, i32) {
    %c0_i32 = arith.constant 0 : i32
    %c0_i32_0 = arith.constant 0 : i32
    %c0_i32_1 = arith.constant 0 : i32
    %c0_i32_2 = arith.constant 0 : i32
    return %c0_i32, %c0_i32_0, %c0_i32_1 : i32, i32, i32
  }
  func.func @transform_4(%arg0: i32) -> (i32, i32, i32) {
    %c0_i32 = arith.constant 0 : i32
    %c0_i32_0 = arith.constant 0 : i32
    %c0_i32_1 = arith.constant 0 : i32
    %c0_i32_2 = arith.constant 0 : i32
    return %c0_i32, %c0_i32_0, %c0_i32_1 : i32, i32, i32
  }
  func.func @transform_5(%arg0: i32) -> (i32, i32, i32) {
    %c0_i32 = arith.constant 0 : i32
    %c0_i32_0 = arith.constant 0 : i32
    %c0_i32_1 = arith.constant 0 : i32
    %c0_i32_2 = arith.constant 0 : i32
    return %c0_i32, %c0_i32_0, %c0_i32_1 : i32, i32, i32
  }
  func.func @transform_6(%arg0: i32) -> (i32, i32) {
    %c0_i32 = arith.constant 0 : i32
    %c0_i32_0 = arith.constant 0 : i32
    %c0_i32_1 = arith.constant 0 : i32
    return %c0_i32, %c0_i32_0 : i32, i32
  }
  func.func @transform_7(%arg0: i32) -> (i32, i32, i32) {
    %c0_i32 = arith.constant 0 : i32
    %c0_i32_0 = arith.constant 0 : i32
    %c0_i32_1 = arith.constant 0 : i32
    %c0_i32_2 = arith.constant 0 : i32
    return %c0_i32, %c0_i32_0, %c0_i32_1 : i32, i32, i32
  }
  func.func @transform_8(%arg0: i32) -> (i32, i32, i32) {
    %c0_i32 = arith.constant 0 : i32
    %c0_i32_0 = arith.constant 0 : i32
    %c0_i32_1 = arith.constant 0 : i32
    %c0_i32_2 = arith.constant 0 : i32
    return %c0_i32, %c0_i32_0, %c0_i32_1 : i32, i32, i32
  }
  func.func @transform_9(%arg0: i32) -> (i32, i32, i32) {
    %c0_i32 = arith.constant 0 : i32
    %c0_i32_0 = arith.constant 0 : i32
    %c0_i32_1 = arith.constant 0 : i32
    %c0_i32_2 = arith.constant 0 : i32
    return %c0_i32, %c0_i32_0, %c0_i32_1 : i32, i32, i32
  }
  func.func @transform_10(%arg0: i32) -> (i32, i32, i32) {
    %c0_i32 = arith.constant 0 : i32
    %c0_i32_0 = arith.constant 0 : i32
    %c0_i32_1 = arith.constant 0 : i32
    %c0_i32_2 = arith.constant 0 : i32
    return %c0_i32, %c0_i32_0, %c0_i32_1 : i32, i32, i32
  }
  func.func @transform_11(%arg0: i32) -> (i32, i32) {
    %c0_i32 = arith.constant 0 : i32
    %c0_i32_0 = arith.constant 0 : i32
    %c0_i32_1 = arith.constant 0 : i32
    return %c0_i32, %c0_i32_0 : i32, i32
  }
  func.func @transform_12(%arg0: i32) -> (i32, i32) {
    %c0_i32 = arith.constant 0 : i32
    %c0_i32_0 = arith.constant 0 : i32
    %c0_i32_1 = arith.constant 0 : i32
    return %c0_i32, %c0_i32_0 : i32, i32
  }
  func.func @transform_13(%arg0: i32) -> (i32, i32) {
    %c0_i32 = arith.constant 0 : i32
    %c0_i32_0 = arith.constant 0 : i32
    %c0_i32_1 = arith.constant 0 : i32
    return %c0_i32, %c0_i32_0 : i32, i32
  }
  func.func @transform_14(%arg0: i32) -> (i32, i32) {
    %c0_i32 = arith.constant 0 : i32
    %c0_i32_0 = arith.constant 0 : i32
    %c0_i32_1 = arith.constant 0 : i32
    return %c0_i32, %c0_i32_0 : i32, i32
  }
  func.func @transform_15(%arg0: i32) -> (i32, i32) {
    %c0_i32 = arith.constant 0 : i32
    %c0_i32_0 = arith.constant 0 : i32
    %c0_i32_1 = arith.constant 0 : i32
    return %c0_i32, %c0_i32_0 : i32, i32
  }
  func.func @transform_16(%arg0: i32) -> (i32, i32, i32) {
    %c0_i32 = arith.constant 0 : i32
    %c0_i32_0 = arith.constant 0 : i32
    %c0_i32_1 = arith.constant 0 : i32
    return %arg0, %c0_i32, %c0_i32_0 : i32, i32, i32
  }
}

</mosaic_0001>

<llo_original>
// kernel: net_forward.1
$region0: #{net_forward.1}
  #allocation0 [shape = 'u32[]', space=smem, size = 0x4, offset = 0x4, fixed_abs, tag = 'smem constant byte address 0x4 - core index']
  #allocation1 [shape = 'u32[144,128]{1,0:T(1,128)}', space=vmem, size = 0x12000, scoped, tag = 'internal scratch']
  #allocation2 [shape = 'f32[72,96]{1,0:T(8,128)}', space=vmem, size = 0x9000, scoped, tag = 'scratch operand']
  #allocation3 [shape = 'f32[36,84]{1,0:T(8,128)}', space=vmem, size = 0x5000, scoped, tag = 'scratch operand']
  %s0 = inlined_call_operand.vmem [shape: f32[128,96], index: 0, kind: input, shape index: {}]
  %s1 = inlined_call_operand.vmem [shape: f32[5,96,168], index: 1, kind: input, shape index: {}]
  %s2 = inlined_call_operand.vmem [shape: f32[1,168], index: 2, kind: input, shape index: {}]
  %s3 = inlined_call_operand.vmem [shape: f32[2,168,84], index: 3, kind: input, shape index: {}]
  %s4 = inlined_call_operand.vmem [shape: f32[2,28,64], index: 4, kind: input, shape index: {}]
  %s5 = inlined_call_operand.vmem [shape: f32[5,84,160], index: 5, kind: input, shape index: {}]
  %s6 = inlined_call_operand.vmem [shape: f32[1,160], index: 6, kind: input, shape index: {}]
  %s7 = inlined_call_operand.vmem [shape: f32[2,160,80], index: 7, kind: input, shape index: {}]
  %s8 = inlined_call_operand.vmem [shape: f32[2,10,28], index: 8, kind: input, shape index: {}]
  %s9 = inlined_call_operand.vmem [shape: f32[5,2,10], index: 9, kind: input, shape index: {}]
  %s10 = inlined_call_operand.vmem [shape: f32[5,80,120], index: 10, kind: input, shape index: {}]
  %s11 = inlined_call_operand.vmem [shape: f32[1,120], index: 11, kind: input, shape index: {}]
  %s12 = inlined_call_operand.vmem [shape: f32[120,84], index: 12, kind: input, shape index: {}]
  %s13 = inlined_call_operand.vmem [shape: f32[1,84], index: 13, kind: input, shape index: {}]
  %s14 = inlined_call_operand.vmem [shape: f32[84,128], index: 14, kind: input, shape index: {}]
  %s15 = inlined_call_operand.vmem [shape: f32[1,128], index: 15, kind: input, shape index: {}]
  %s16 = inlined_call_operand.hbm [shape: f32[2,2,128], index: 16, kind: output, shape index: {}]
  %s17 = sld [smem:[#allocation0]]
  $region97: #{net_forward.1} parent=0
    _
  %s19 = ssub.s32 1, %s17
  %s20 = scalar_select 0, %s19, %s17
  $region1: #{net_forward.1} parent=0
    #allocation4 [shape = 'u8[2048]{0}', space=vmem, size = 0x800, scoped, tag = 'output window, operand 0']
    #allocation5 [shape = 's32[2]{0}', space=sflag, size = 0x8, scoped, tag = 'scoped memory for net_forward.1']
    %21 = vsyncpa [#allocation5], 0
    %s22 = scalar_lea.sflag [#allocation5], 1
    %23 = vsyncpa %s22, 0
    loop: start=0, step=1, limit=4
    $region2: #{net_forward.1} parent=1 // loop_pre_header
      _
    $region3: #{net_forward.1} parent=1 // loop_header
      %s25 = sphi 0, %s29
      %p26 = scmp.ge.s32.totalorder %s25, 4
      %s35 = sphi 0, %s37
      %s38 = sphi 0, %s35
      %s39 = sphi 0, %s38
      %s55 = sphi 0, %s39
      %s59 = sphi 0, %s59
      %s61 = sphi 0, %s59
      %s62 = sphi 0, %s61
      %s76 = sphi 0, %s62
      %s80 = sphi 0, %s80
      %s82 = sphi 0, %s80
      %s83 = sphi 0, %s82
      %s97 = sphi 0, %s83
      %s101 = sphi 0, %s101
      %s103 = sphi 0, %s101
      %s104 = sphi 0, %s103
      %s118 = sphi 0, %s104
      %s122 = sphi 0, %s122
      %s124 = sphi 0, %s122
      %s125 = sphi 0, %s124
      %s139 = sphi 0, %s125
      %s143 = sphi 0, %s143
      %s145 = sphi 0, %s143
      %s146 = sphi 0, %s145
      %s160 = sphi 0, %s146
      %s164 = sphi 0, %s164
      %s166 = sphi 0, %s164
      %s167 = sphi 0, %s166
      %s181 = sphi 0, %s167
      %s185 = sphi 0, %s185
      %s187 = sphi 0, %s185
      %s188 = sphi 0, %s187
      %s202 = sphi 0, %s188
      %s206 = sphi 0, %s206
      %s208 = sphi 0, %s206
      %s209 = sphi 0, %s208
      %s223 = sphi 0, %s209
      %s227 = sphi 0, %s227
      %s229 = sphi 0, %s227
      %s230 = sphi 0, %s229
      %s244 = sphi 0, %s230
      %s248 = sphi 0, %s248
      %s250 = sphi 0, %s248
      %s251 = sphi 0, %s250
      %s265 = sphi 0, %s251
      %s269 = sphi 0, %s269
      %s271 = sphi 0, %s269
      %s272 = sphi 0, %s271
      %s286 = sphi 0, %s272
      %s290 = sphi 0, %s290
      %s292 = sphi 0, %s290
      %s293 = sphi 0, %s292
      %s307 = sphi 0, %s293
      %s311 = sphi 0, %s311
      %s313 = sphi 0, %s311
      %s314 = sphi 0, %s313
      %s328 = sphi 0, %s314
      %s332 = sphi 0, %s332
      %s334 = sphi 0, %s332
      %s335 = sphi 0, %s334
      %s349 = sphi 0, %s335
      %s353 = sphi 0, %s353
      %s355 = sphi 0, %s353
      %s356 = sphi 0, %s355
      %s370 = sphi 0, %s356
      %s376 = sphi 0, %s378
      %s379 = sphi 0, %s376
      %s380 = sphi 0, %s379
      %s396 = sphi 0, %s380
    $region4: #{net_forward.1} parent=1 // loop_header_branch
      %28 = sbr.rel (%p26) target = $region8
    $region5: #{net_forward.1} parent=1 // loop_body
      %s30 = ssub.s32 %s25, 1
      %s31 = ssub.s32 %s25, 2
      %s32 = sadd.s32 %s25, 1
      %s33 = ssub.s32 %s25, %s32
      %p34 = scmp.eq.s32.totalorder %s33, 0
      %s36 = sadd.s32 %s35, 1
      %s37 = scalar_select %p34, %s35, %s36
      %p40 = pneg %p34
      %p41 = scmp.eq.s32.totalorder %s25, 1
      %p42 = por %p40, %p41
      %p43 = scmp.ne.s32.totalorder %s35, %s38
      %p44 = scmp.eq.s32.totalorder %s25, 0
      %p45 = por %p43, %p44
      %p46 = scmp.ne.s32.totalorder %s35, %s38
      %p47 = scmp.eq.s32.totalorder %s30, 1
      %p48 = por %p46, %p47
      %p49 = scmp.ne.s32.totalorder %s38, %s39
      %p50 = scmp.eq.s32.totalorder %s30, 0
      %p51 = por %p49, %p50
      %p52 = scmp.ne.s32.totalorder %s38, %s39
      %p53 = scmp.eq.s32.totalorder %s31, 1
      %p54 = por %p52, %p53
      %p56 = scmp.ne.s32.totalorder %s39, %s55
      %p57 = scmp.eq.s32.totalorder %s31, 0
      %p58 = por %p56, %p57
      %s60 = sadd.s32 %s59, 1
      %p63 = scmp.eq.s32.totalorder %s25, 1
      %p64 = scmp.ne.s32.totalorder %s59, %s61
      %p65 = scmp.eq.s32.totalorder %s25, 0
      %p66 = por %p64, %p65
      %p67 = scmp.ne.s32.totalorder %s59, %s61
      %p68 = scmp.eq.s32.totalorder %s30, 1
      %p69 = por %p67, %p68
      %p70 = scmp.ne.s32.totalorder %s61, %s62
      %p71 = scmp.eq.s32.totalorder %s30, 0
      %p72 = por %p70, %p71
      %p73 = scmp.ne.s32.totalorder %s61, %s62
      %p74 = scmp.eq.s32.totalorder %s31, 1
      %p75 = por %p73, %p74
      %p77 = scmp.ne.s32.totalorder %s62, %s76
      %p78 = scmp.eq.s32.totalorder %s31, 0
      %p79 = por %p77, %p78
      %s81 = sadd.s32 %s80, 1
      %p84 = scmp.eq.s32.totalorder %s25, 1
      %p85 = scmp.ne.s32.totalorder %s80, %s82
      %p86 = scmp.eq.s32.totalorder %s25, 0
      %p87 = por %p85, %p86
      %p88 = scmp.ne.s32.totalorder %s80, %s82
      %p89 = scmp.eq.s32.totalorder %s30, 1
      %p90 = por %p88, %p89
      %p91 = scmp.ne.s32.totalorder %s82, %s83
      %p92 = scmp.eq.s32.totalorder %s30, 0
      %p93 = por %p91, %p92
      %p94 = scmp.ne.s32.totalorder %s82, %s83
      %p95 = scmp.eq.s32.totalorder %s31, 1
      %p96 = por %p94, %p95
      %p98 = scmp.ne.s32.totalorder %s83, %s97
      %p99 = scmp.eq.s32.totalorder %s31, 0
      %p100 = por %p98, %p99
      %s102 = sadd.s32 %s101, 1
      %p105 = scmp.eq.s32.totalorder %s25, 1
      %p106 = scmp.ne.s32.totalorder %s101, %s103
      %p107 = scmp.eq.s32.totalorder %s25, 0
      %p108 = por %p106, %p107
      %p109 = scmp.ne.s32.totalorder %s101, %s103
      %p110 = scmp.eq.s32.totalorder %s30, 1
      %p111 = por %p109, %p110
      %p112 = scmp.ne.s32.totalorder %s103, %s104
      %p113 = scmp.eq.s32.totalorder %s30, 0
      %p114 = por %p112, %p113
      %p115 = scmp.ne.s32.totalorder %s103, %s104
      %p116 = scmp.eq.s32.totalorder %s31, 1
      %p117 = por %p115, %p116
      %p119 = scmp.ne.s32.totalorder %s104, %s118
      %p120 = scmp.eq.s32.totalorder %s31, 0
      %p121 = por %p119, %p120
      %s123 = sadd.s32 %s122, 1
      %p126 = scmp.eq.s32.totalorder %s25, 1
      %p127 = scmp.ne.s32.totalorder %s122, %s124
      %p128 = scmp.eq.s32.totalorder %s25, 0
      %p129 = por %p127, %p128
      %p130 = scmp.ne.s32.totalorder %s122, %s124
      %p131 = scmp.eq.s32.totalorder %s30, 1
      %p132 = por %p130, %p131
      %p133 = scmp.ne.s32.totalorder %s124, %s125
      %p134 = scmp.eq.s32.totalorder %s30, 0
      %p135 = por %p133, %p134
      %p136 = scmp.ne.s32.totalorder %s124, %s125
      %p137 = scmp.eq.s32.totalorder %s31, 1
      %p138 = por %p136, %p137
      %p140 = scmp.ne.s32.totalorder %s125, %s139
      %p141 = scmp.eq.s32.totalorder %s31, 0
      %p142 = por %p140, %p141
      %s144 = sadd.s32 %s143, 1
      %p147 = scmp.eq.s32.totalorder %s25, 1
      %p148 = scmp.ne.s32.totalorder %s143, %s145
      %p149 = scmp.eq.s32.totalorder %s25, 0
      %p150 = por %p148, %p149
      %p151 = scmp.ne.s32.totalorder %s143, %s145
      %p152 = scmp.eq.s32.totalorder %s30, 1
      %p153 = por %p151, %p152
      %p154 = scmp.ne.s32.totalorder %s145, %s146
      %p155 = scmp.eq.s32.totalorder %s30, 0
      %p156 = por %p154, %p155
      %p157 = scmp.ne.s32.totalorder %s145, %s146
      %p158 = scmp.eq.s32.totalorder %s31, 1
      %p159 = por %p157, %p158
      %p161 = scmp.ne.s32.totalorder %s146, %s160
      %p162 = scmp.eq.s32.totalorder %s31, 0
      %p163 = por %p161, %p162
      %s165 = sadd.s32 %s164, 1
      %p168 = scmp.eq.s32.totalorder %s25, 1
      %p169 = scmp.ne.s32.totalorder %s164, %s166
      %p170 = scmp.eq.s32.totalorder %s25, 0
      %p171 = por %p169, %p170
      %p172 = scmp.ne.s32.totalorder %s164, %s166
      %p173 = scmp.eq.s32.totalorder %s30, 1
      %p174 = por %p172, %p173
      %p175 = scmp.ne.s32.totalorder %s166, %s167
      %p176 = scmp.eq.s32.totalorder %s30, 0
      %p177 = por %p175, %p176
      %p178 = scmp.ne.s32.totalorder %s166, %s167
      %p179 = scmp.eq.s32.totalorder %s31, 1
      %p180 = por %p178, %p179
      %p182 = scmp.ne.s32.totalorder %s167, %s181
      %p183 = scmp.eq.s32.totalorder %s31, 0
      %p184 = por %p182, %p183
      %s186 = sadd.s32 %s185, 1
      %p189 = scmp.eq.s32.totalorder %s25, 1
      %p190 = scmp.ne.s32.totalorder %s185, %s187
      %p191 = scmp.eq.s32.totalorder %s25, 0
      %p192 = por %p190, %p191
      %p193 = scmp.ne.s32.totalorder %s185, %s187
      %p194 = scmp.eq.s32.totalorder %s30, 1
      %p195 = por %p193, %p194
      %p196 = scmp.ne.s32.totalorder %s187, %s188
      %p197 = scmp.eq.s32.totalorder %s30, 0
      %p198 = por %p196, %p197
      %p199 = scmp.ne.s32.totalorder %s187, %s188
      %p200 = scmp.eq.s32.totalorder %s31, 1
      %p201 = por %p199, %p200
      %p203 = scmp.ne.s32.totalorder %s188, %s202
      %p204 = scmp.eq.s32.totalorder %s31, 0
      %p205 = por %p203, %p204
      %s207 = sadd.s32 %s206, 1
      %p210 = scmp.eq.s32.totalorder %s25, 1
      %p211 = scmp.ne.s32.totalorder %s206, %s208
      %p212 = scmp.eq.s32.totalorder %s25, 0
      %p213 = por %p211, %p212
      %p214 = scmp.ne.s32.totalorder %s206, %s208
      %p215 = scmp.eq.s32.totalorder %s30, 1
      %p216 = por %p214, %p215
      %p217 = scmp.ne.s32.totalorder %s208, %s209
      %p218 = scmp.eq.s32.totalorder %s30, 0
      %p219 = por %p217, %p218
      %p220 = scmp.ne.s32.totalorder %s208, %s209
      %p221 = scmp.eq.s32.totalorder %s31, 1
      %p222 = por %p220, %p221
      %p224 = scmp.ne.s32.totalorder %s209, %s223
      %p225 = scmp.eq.s32.totalorder %s31, 0
      %p226 = por %p224, %p225
      %s228 = sadd.s32 %s227, 1
      %p231 = scmp.eq.s32.totalorder %s25, 1
      %p232 = scmp.ne.s32.totalorder %s227, %s229
      %p233 = scmp.eq.s32.totalorder %s25, 0
      %p234 = por %p232, %p233
      %p235 = scmp.ne.s32.totalorder %s227, %s229
      %p236 = scmp.eq.s32.totalorder %s30, 1
      %p237 = por %p235, %p236
      %p238 = scmp.ne.s32.totalorder %s229, %s230
      %p239 = scmp.eq.s32.totalorder %s30, 0
      %p240 = por %p238, %p239
      %p241 = scmp.ne.s32.totalorder %s229, %s230
      %p242 = scmp.eq.s32.totalorder %s31, 1
      %p243 = por %p241, %p242
      %p245 = scmp.ne.s32.totalorder %s230, %s244
      %p246 = scmp.eq.s32.totalorder %s31, 0
      %p247 = por %p245, %p246
      %s249 = sadd.s32 %s248, 1
      %p252 = scmp.eq.s32.totalorder %s25, 1
      %p253 = scmp.ne.s32.totalorder %s248, %s250
      %p254 = scmp.eq.s32.totalorder %s25, 0
      %p255 = por %p253, %p254
      %p256 = scmp.ne.s32.totalorder %s248, %s250
      %p257 = scmp.eq.s32.totalorder %s30, 1
      %p258 = por %p256, %p257
      %p259 = scmp.ne.s32.totalorder %s250, %s251
      %p260 = scmp.eq.s32.totalorder %s30, 0
      %p261 = por %p259, %p260
      %p262 = scmp.ne.s32.totalorder %s250, %s251
      %p263 = scmp.eq.s32.totalorder %s31, 1
      %p264 = por %p262, %p263
      %p266 = scmp.ne.s32.totalorder %s251, %s265
      %p267 = scmp.eq.s32.totalorder %s31, 0
      %p268 = por %p266, %p267
      %s270 = sadd.s32 %s269, 1
      %p273 = scmp.eq.s32.totalorder %s25, 1
      %p274 = scmp.ne.s32.totalorder %s269, %s271
      %p275 = scmp.eq.s32.totalorder %s25, 0
      %p276 = por %p274, %p275
      %p277 = scmp.ne.s32.totalorder %s269, %s271
      %p278 = scmp.eq.s32.totalorder %s30, 1
      %p279 = por %p277, %p278
      %p280 = scmp.ne.s32.totalorder %s271, %s272
      %p281 = scmp.eq.s32.totalorder %s30, 0
      %p282 = por %p280, %p281
      %p283 = scmp.ne.s32.totalorder %s271, %s272
      %p284 = scmp.eq.s32.totalorder %s31, 1
      %p285 = por %p283, %p284
      %p287 = scmp.ne.s32.totalorder %s272, %s286
      %p288 = scmp.eq.s32.totalorder %s31, 0
      %p289 = por %p287, %p288
      %s291 = sadd.s32 %s290, 1
      %p294 = scmp.eq.s32.totalorder %s25, 1
      %p295 = scmp.ne.s32.totalorder %s290, %s292
      %p296 = scmp.eq.s32.totalorder %s25, 0
      %p297 = por %p295, %p296
      %p298 = scmp.ne.s32.totalorder %s290, %s292
      %p299 = scmp.eq.s32.totalorder %s30, 1
      %p300 = por %p298, %p299
      %p301 = scmp.ne.s32.totalorder %s292, %s293
      %p302 = scmp.eq.s32.totalorder %s30, 0
      %p303 = por %p301, %p302
      %p304 = scmp.ne.s32.totalorder %s292, %s293
      %p305 = scmp.eq.s32.totalorder %s31, 1
      %p306 = por %p304, %p305
      %p308 = scmp.ne.s32.totalorder %s293, %s307
      %p309 = scmp.eq.s32.totalorder %s31, 0
      %p310 = por %p308, %p309
      %s312 = sadd.s32 %s311, 1
      %p315 = scmp.eq.s32.totalorder %s25, 1
      %p316 = scmp.ne.s32.totalorder %s311, %s313
      %p317 = scmp.eq.s32.totalorder %s25, 0
      %p318 = por %p316, %p317
      %p319 = scmp.ne.s32.totalorder %s311, %s313
      %p320 = scmp.eq.s32.totalorder %s30, 1
      %p321 = por %p319, %p320
      %p322 = scmp.ne.s32.totalorder %s313, %s314
      %p323 = scmp.eq.s32.totalorder %s30, 0
      %p324 = por %p322, %p323
      %p325 = scmp.ne.s32.totalorder %s313, %s314
      %p326 = scmp.eq.s32.totalorder %s31, 1
      %p327 = por %p325, %p326
      %p329 = scmp.ne.s32.totalorder %s314, %s328
      %p330 = scmp.eq.s32.totalorder %s31, 0
      %p331 = por %p329, %p330
      %s333 = sadd.s32 %s332, 1
      %p336 = scmp.eq.s32.totalorder %s25, 1
      %p337 = scmp.ne.s32.totalorder %s332, %s334
      %p338 = scmp.eq.s32.totalorder %s25, 0
      %p339 = por %p337, %p338
      %p340 = scmp.ne.s32.totalorder %s332, %s334
      %p341 = scmp.eq.s32.totalorder %s30, 1
      %p342 = por %p340, %p341
      %p343 = scmp.ne.s32.totalorder %s334, %s335
      %p344 = scmp.eq.s32.totalorder %s30, 0
      %p345 = por %p343, %p344
      %p346 = scmp.ne.s32.totalorder %s334, %s335
      %p347 = scmp.eq.s32.totalorder %s31, 1
      %p348 = por %p346, %p347
      %p350 = scmp.ne.s32.totalorder %s335, %s349
      %p351 = scmp.eq.s32.totalorder %s31, 0
      %p352 = por %p350, %p351
      %s354 = sadd.s32 %s353, 1
      %p357 = scmp.eq.s32.totalorder %s25, 1
      %p358 = scmp.ne.s32.totalorder %s353, %s355
      %p359 = scmp.eq.s32.totalorder %s25, 0
      %p360 = por %p358, %p359
      %p361 = scmp.ne.s32.totalorder %s353, %s355
      %p362 = scmp.eq.s32.totalorder %s30, 1
      %p363 = por %p361, %p362
      %p364 = scmp.ne.s32.totalorder %s355, %s356
      %p365 = scmp.eq.s32.totalorder %s30, 0
      %p366 = por %p364, %p365
      %p367 = scmp.ne.s32.totalorder %s355, %s356
      %p368 = scmp.eq.s32.totalorder %s31, 1
      %p369 = por %p367, %p368
      %p371 = scmp.ne.s32.totalorder %s356, %s370
      %p372 = scmp.eq.s32.totalorder %s31, 0
      %p373 = por %p371, %p372
      %s374 = ssub.s32 %s25, %s32
      %p375 = scmp.eq.s32.totalorder %s374, 0
      %s377 = sadd.s32 %s376, 1
      %s378 = scalar_select %p375, %s376, %s377
      %p381 = pneg %p375
      %p382 = scmp.eq.s32.totalorder %s25, 1
      %p383 = por %p381, %p382
      %p384 = scmp.ne.s32.totalorder %s376, %s379
      %p385 = scmp.eq.s32.totalorder %s25, 0
      %p386 = por %p384, %p385
      %p387 = scmp.ne.s32.totalorder %s376, %s379
      %p388 = scmp.eq.s32.totalorder %s30, 1
      %p389 = por %p387, %p388
      %p390 = scmp.ne.s32.totalorder %s379, %s380
      %p391 = scmp.eq.s32.totalorder %s30, 0
      %p392 = por %p390, %p391
      %p393 = scmp.ne.s32.totalorder %s379, %s380
      %p394 = scmp.eq.s32.totalorder %s31, 1
      %p395 = por %p393, %p394
      %p397 = scmp.ne.s32.totalorder %s380, %s396
      %p398 = scmp.eq.s32.totalorder %s31, 0
      %p399 = por %p397, %p398
      %p400 = scmp.le.s32.totalorder 1, %s25
      %p401 = scmp.lt.s32.totalorder %s25, 3
      %p402 = pnand %p400, %p401
      %p403 = pneg %p402
      // Predicated region
      $region9: #{net_forward.1} parent=5 // pred_check
        _
      $region10: #{net_forward.1} parent=5 // pred_check_branch
        %405 = sbr.rel (%p402) target = $region12
      $region11: #{net_forward.1} parent=5 // pred_region
        %s406 = ssub.s32 %s25, 1
        // Predicated region
        $region13: #{net_forward.1} parent=11 // pred_check
          %p407 = pneg %p72
        $region14: #{net_forward.1} parent=11 // pred_check_branch
          %409 = sbr.rel (%p407) target = $region16
        $region15: #{net_forward.1} parent=11 // pred_region
          _
        $region16: #{net_forward.1} parent=11 // pred_fallthru
          _
        // Predicated region
        $region17: #{net_forward.1} parent=11 // pred_check
          %p410 = pneg %p93
        $region18: #{net_forward.1} parent=11 // pred_check_branch
          %412 = sbr.rel (%p410) target = $region20
        $region19: #{net_forward.1} parent=11 // pred_region
          _
        $region20: #{net_forward.1} parent=11 // pred_fallthru
          _
        // Predicated region
        $region21: #{net_forward.1} parent=11 // pred_check
          %p413 = pneg %p114
        $region22: #{net_forward.1} parent=11 // pred_check_branch
          %415 = sbr.rel (%p413) target = $region24
        $region23: #{net_forward.1} parent=11 // pred_region
          _
        $region24: #{net_forward.1} parent=11 // pred_fallthru
          _
        // Predicated region
        $region25: #{net_forward.1} parent=11 // pred_check
          %p416 = pneg %p135
        $region26: #{net_forward.1} parent=11 // pred_check_branch
          %418 = sbr.rel (%p416) target = $region28
        $region27: #{net_forward.1} parent=11 // pred_region
          _
        $region28: #{net_forward.1} parent=11 // pred_fallthru
          _
        // Predicated region
        $region29: #{net_forward.1} parent=11 // pred_check
          %p419 = pneg %p156
        $region30: #{net_forward.1} parent=11 // pred_check_branch
          %421 = sbr.rel (%p419) target = $region32
        $region31: #{net_forward.1} parent=11 // pred_region
          _
        $region32: #{net_forward.1} parent=11 // pred_fallthru
          _
        // Predicated region
        $region33: #{net_forward.1} parent=11 // pred_check
          %p422 = pneg %p177
        $region34: #{net_forward.1} parent=11 // pred_check_branch
          %424 = sbr.rel (%p422) target = $region36
        $region35: #{net_forward.1} parent=11 // pred_region
          _
        $region36: #{net_forward.1} parent=11 // pred_fallthru
          _
        // Predicated region
        $region37: #{net_forward.1} parent=11 // pred_check
          %p425 = pneg %p198
        $region38: #{net_forward.1} parent=11 // pred_check_branch
          %427 = sbr.rel (%p425) target = $region40
        $region39: #{net_forward.1} parent=11 // pred_region
          _
        $region40: #{net_forward.1} parent=11 // pred_fallthru
          _
        // Predicated region
        $region41: #{net_forward.1} parent=11 // pred_check
          %p428 = pneg %p219
        $region42: #{net_forward.1} parent=11 // pred_check_branch
          %430 = sbr.rel (%p428) target = $region44
        $region43: #{net_forward.1} parent=11 // pred_region
          _
        $region44: #{net_forward.1} parent=11 // pred_fallthru
          _
        // Predicated region
        $region45: #{net_forward.1} parent=11 // pred_check
          %p431 = pneg %p240
        $region46: #{net_forward.1} parent=11 // pred_check_branch
          %433 = sbr.rel (%p431) target = $region48
        $region47: #{net_forward.1} parent=11 // pred_region
          _
        $region48: #{net_forward.1} parent=11 // pred_fallthru
          _
        // Predicated region
        $region49: #{net_forward.1} parent=11 // pred_check
          %p434 = pneg %p261
        $region50: #{net_forward.1} parent=11 // pred_check_branch
          %436 = sbr.rel (%p434) target = $region52
        $region51: #{net_forward.1} parent=11 // pred_region
          _
        $region52: #{net_forward.1} parent=11 // pred_fallthru
          _
        // Predicated region
        $region53: #{net_forward.1} parent=11 // pred_check
          %p437 = pneg %p282
        $region54: #{net_forward.1} parent=11 // pred_check_branch
          %439 = sbr.rel (%p437) target = $region56
        $region55: #{net_forward.1} parent=11 // pred_region
          _
        $region56: #{net_forward.1} parent=11 // pred_fallthru
          _
        // Predicated region
        $region57: #{net_forward.1} parent=11 // pred_check
          %p440 = pneg %p303
        $region58: #{net_forward.1} parent=11 // pred_check_branch
          %442 = sbr.rel (%p440) target = $region60
        $region59: #{net_forward.1} parent=11 // pred_region
          _
        $region60: #{net_forward.1} parent=11 // pred_fallthru
          _
        // Predicated region
        $region61: #{net_forward.1} parent=11 // pred_check
          %p443 = pneg %p324
        $region62: #{net_forward.1} parent=11 // pred_check_branch
          %445 = sbr.rel (%p443) target = $region64
        $region63: #{net_forward.1} parent=11 // pred_region
          _
        $region64: #{net_forward.1} parent=11 // pred_fallthru
          _
        // Predicated region
        $region65: #{net_forward.1} parent=11 // pred_check
          %p446 = pneg %p345
        $region66: #{net_forward.1} parent=11 // pred_check_branch
          %448 = sbr.rel (%p446) target = $region68
        $region67: #{net_forward.1} parent=11 // pred_region
          _
        $region68: #{net_forward.1} parent=11 // pred_fallthru
          _
        // Predicated region
        $region69: #{net_forward.1} parent=11 // pred_check
          %p449 = pneg %p366
        $region70: #{net_forward.1} parent=11 // pred_check_branch
          %451 = sbr.rel (%p449) target = $region72
        $region71: #{net_forward.1} parent=11 // pred_region
          _
        $region72: #{net_forward.1} parent=11 // pred_fallthru
          _
      $region12: #{net_forward.1} parent=5 // pred_fallthru
        _
      %p452 = scmp.lt.s32.totalorder %s25, 2
      // Predicated region
      $region73: #{net_forward.1} parent=5 // pred_check
        %p453 = pneg %p452
      $region74: #{net_forward.1} parent=5 // pred_check_branch
        %455 = sbr.rel (%p453) target = $region76
      $region75: #{net_forward.1} parent=5 // pred_region
        // Predicated region
        $region77: #{net_forward.1} parent=75 // pred_check
          %p456 = pneg %p45
        $region78: #{net_forward.1} parent=75 // pred_check_branch
          %458 = sbr.rel (%p456) target = $region80
        $region79: #{net_forward.1} parent=75 // pred_region
          %s459 = smul.u32 8, %s25
          %p460 = scmp.lt.s32.totalorder %s459, 15
          %s461 = scalar_select %p460, %s459, 15
          %s462 = smul.addr %s461, 8
          %s463 = scalar_lea.vmem %s0, %s462
          %s464 = smul.u32 8, %s25
        $region80: #{net_forward.1} parent=75 // pred_fallthru
          _
      $region76: #{net_forward.1} parent=5 // pred_fallthru
        _
      %p465 = scmp.le.s32.totalorder 1, %s25
      %p466 = scmp.lt.s32.totalorder %s25, 3
      %p467 = pnand %p465, %p466
      %p468 = pneg %p467
      // Predicated region
      $region81: #{net_forward.1} parent=5 // pred_check
        _
      $region82: #{net_forward.1} parent=5 // pred_check_branch
        %470 = sbr.rel (%p467) target = $region84
      $region83: #{net_forward.1} parent=5 // pred_region
        %s471 = ssub.s32 %s25, 1
        %s472 = smul.u32 8, %s30
        %p473 = scmp.lt.s32.totalorder %s472, 15
        %s474 = scalar_select %p473, %s472, 15
        %s475 = smul.addr %s474, 8
        %s476 = scalar_lea.vmem %s0, %s475
        %p477 = pneg %p51
        %p478 = pneg %p48
        %p479 = pneg %p72
        %p480 = pneg %p69
        %p481 = pneg %p93
        %p482 = pneg %p90
        %p483 = pneg %p114
        %p484 = pneg %p111
        %p485 = pneg %p135
        %p486 = pneg %p132
        %p487 = pneg %p156
        %p488 = pneg %p153
        %p489 = pneg %p177
        %p490 = pneg %p174
        %p491 = pneg %p198
        %p492 = pneg %p195
        %p493 = pneg %p219
        %p494 = pneg %p216
        %p495 = pneg %p240
        %p496 = pneg %p237
        %p497 = pneg %p261
        %p498 = pneg %p258
        %p499 = pneg %p282
        %p500 = pneg %p279
        %p501 = pneg %p303
        %p502 = pneg %p300
        %p503 = pneg %p324
        %p504 = pneg %p321
        %p505 = pneg %p345
        %p506 = pneg %p342
        %p507 = pneg %p366
        %p508 = pneg %p363
        %p509 = pneg %p392
        %p510 = pneg %p389
        %s511 = sand.u32 %s379, 1
        %s512 = scalar_lea.sflag [#allocation5], %s511
        %s513 = sand.u32 %s379, 1
        %s514 = smul.addr %s513, 2
        %s515 = scalar_lea.vmem [#allocation4], %s514
        %s516 = smul.u32 8, %s30
        %p517 = scmp.lt.s32.totalorder %s516, 15
        %s518 = scalar_select %p517, %s516, 15
        %s519 = smul.addr %s518, 8
        %s520 = scalar_lea.vmem %s0, %s519
        %s521 = smul.u32 8, %s30
        %v522 = vld [vmem:[%s520] sm:$0xff]
        %v523 = vld [vmem:[%s520 + $0x8] sm:$0xff]
        %v524 = vld [vmem:[%s520 + $0x10] sm:$0xff]
        %v525 = vld [vmem:[%s520 + $0x18] sm:$0xff]
        %v526 = vld [vmem:[%s520 + $0x20] sm:$0xff]
        %v527 = vld [vmem:[%s520 + $0x28] sm:$0xff]
        %v528 = vld [vmem:[%s520 + $0x30] sm:$0xff]
        %v529 = vld [vmem:[%s520 + $0x38] sm:$0xff]
        %vm530 = vcmask 785408
        %531 = vst.msk [vmem:[#allocation2] sm:$0xff] %vm530, %v522
        %532 = vst.msk [vmem:[#allocation2 + $0x8] sm:$0xff] %vm530, %v523
        %533 = vst.msk [vmem:[#allocation2 + $0x10] sm:$0xff] %vm530, %v524
        %534 = vst.msk [vmem:[#allocation2 + $0x18] sm:$0xff] %vm530, %v525
        %535 = vst.msk [vmem:[#allocation2 + $0x20] sm:$0xff] %vm530, %v526
        %536 = vst.msk [vmem:[#allocation2 + $0x28] sm:$0xff] %vm530, %v527
        %537 = vst.msk [vmem:[#allocation2 + $0x30] sm:$0xff] %vm530, %v528
        %538 = vst.msk [vmem:[#allocation2 + $0x38] sm:$0xff] %vm530, %v529
        %539 = vst.msk [vmem:[#allocation2 + $0x40] sm:$0xff] %vm530, 0.0
        %v540 = vld [vmem:[#allocation2] sm:$0xff]
        %v541 = vld [vmem:[#allocation2 + $0x8] sm:$0xff]
        %v542 = vld [vmem:[#allocation2 + $0x10] sm:$0xff]
        %v543 = vld [vmem:[#allocation2 + $0x18] sm:$0xff]
        %v544 = vld [vmem:[#allocation2 + $0x20] sm:$0xff]
        %v545 = vld [vmem:[#allocation2 + $0x28] sm:$0xff]
        %v546 = vld [vmem:[#allocation2 + $0x30] sm:$0xff]
        %v547 = vld [vmem:[#allocation2 + $0x38] sm:$0xff]
        %v548 = vld [vmem:[%s1] sm:$0xff]
        %v549 = vld [vmem:[%s1 + $0x8] sm:$0xff]
        %v550 = vld [vmem:[%s1 + $0x10] sm:$0xff]
        %v551 = vld [vmem:[%s1 + $0x18] sm:$0xff]
        %v552 = vld [vmem:[%s1 + $0x20] sm:$0xff]
        %v553 = vld [vmem:[%s1 + $0x28] sm:$0xff]
        %v554 = vld [vmem:[%s1 + $0x30] sm:$0xff]
        %v555 = vld [vmem:[%s1 + $0x38] sm:$0xff]
        %v556 = vld [vmem:[%s1 + $0x40] sm:$0xff]
        %v557 = vld [vmem:[%s1 + $0x48] sm:$0xff]
        %v558 = vld [vmem:[%s1 + $0x50] sm:$0xff]
        %v559 = vld [vmem:[%s1 + $0x58] sm:$0xff]
        %v560 = vld [vmem:[%s1 + $0x60] sm:$0xff]
        %v561 = vld [vmem:[%s1 + $0x68] sm:$0xff]
        %v562 = vld [vmem:[%s1 + $0x70] sm:$0xff]
        %v563 = vld [vmem:[%s1 + $0x78] sm:$0xff]
        %v564 = vld [vmem:[%s1 + $0x80] sm:$0xff]
        %v565 = vld [vmem:[%s1 + $0x88] sm:$0xff]
        %v566 = vld [vmem:[%s1 + $0x90] sm:$0xff]
        %v567 = vld [vmem:[%s1 + $0x98] sm:$0xff]
        %v568 = vld [vmem:[%s1 + $0xa0] sm:$0xff]
        %v569 = vld [vmem:[%s1 + $0xa8] sm:$0xff]
        %v570 = vld [vmem:[%s1 + $0xb0] sm:$0xff]
        %v571 = vld [vmem:[%s1 + $0xb8] sm:$0xff]
        %v572 = vld [vmem:[#allocation2 + $0x1] sm:$0xff]
        %v573 = vld [vmem:[#allocation2 + $0x9] sm:$0xff]
        %v574 = vld [vmem:[#allocation2 + $0x11] sm:$0xff]
        %v575 = vld [vmem:[#allocation2 + $0x19] sm:$0xff]
        %v576 = vld [vmem:[#allocation2 + $0x21] sm:$0xff]
        %v577 = vld [vmem:[#allocation2 + $0x29] sm:$0xff]
        %v578 = vld [vmem:[#allocation2 + $0x31] sm:$0xff]
        %v579 = vld [vmem:[#allocation2 + $0x39] sm:$0xff]
        %s580 = scalar_lea.vmem %s1, 192
        %v581 = vld [vmem:[%s580] sm:$0xff]
        %v582 = vld [vmem:[%s580 + $0x8] sm:$0xff]
        %v583 = vld [vmem:[%s580 + $0x10] sm:$0xff]
        %v584 = vld [vmem:[%s580 + $0x18] sm:$0xff]
        %v585 = vld [vmem:[%s580 + $0x20] sm:$0xff]
        %v586 = vld [vmem:[%s580 + $0x28] sm:$0xff]
        %v587 = vld [vmem:[%s580 + $0x30] sm:$0xff]
        %v588 = vld [vmem:[%s580 + $0x38] sm:$0xff]
        %v589 = vld [vmem:[%s580 + $0x40] sm:$0xff]
        %v590 = vld [vmem:[%s580 + $0x48] sm:$0xff]
        %v591 = vld [vmem:[%s580 + $0x50] sm:$0xff]
        %v592 = vld [vmem:[%s580 + $0x58] sm:$0xff]
        %v593 = vld [vmem:[%s580 + $0x60] sm:$0xff]
        %v594 = vld [vmem:[%s580 + $0x68] sm:$0xff]
        %v595 = vld [vmem:[%s580 + $0x70] sm:$0xff]
        %v596 = vld [vmem:[%s580 + $0x78] sm:$0xff]
        %v597 = vld [vmem:[%s580 + $0x80] sm:$0xff]
        %v598 = vld [vmem:[%s580 + $0x88] sm:$0xff]
        %v599 = vld [vmem:[%s580 + $0x90] sm:$0xff]
        %v600 = vld [vmem:[%s580 + $0x98] sm:$0xff]
        %v601 = vld [vmem:[%s580 + $0xa0] sm:$0xff]
        %v602 = vld [vmem:[%s580 + $0xa8] sm:$0xff]
        %v603 = vld [vmem:[%s580 + $0xb0] sm:$0xff]
        %v604 = vld [vmem:[%s580 + $0xb8] sm:$0xff]
        %v606 = vsel %vm530, %v572, 0
        %v609 = vsel %vm530, %v573, 0
        %v612 = vsel %vm530, %v574, 0
        %v615 = vsel %vm530, %v575, 0
        %v618 = vsel %vm530, %v576, 0
        %v621 = vsel %vm530, %v577, 0
        %v624 = vsel %vm530, %v578, 0
        %v627 = vsel %vm530, %v579, 0
        %629 = vmatprep.subr.mxu0 %v582
        %630 = vmatpush1.msra.mxu0 %v581
        %631 = vmatprep.subr.mxu0 %v584
        %632 = vmatpush1.msra.mxu0 %v583
        %633 = vmatprep.subr.mxu0 %v586
        %634 = vmatpush1.msra.mxu0 %v585
        %635 = vmatprep.subr.mxu0 %v588
        %636 = vmatpush1.msra.mxu0 %v587
        %637 = vmatprep.subr.mxu0 %v590
        %638 = vmatpush1.msra.mxu0 %v589
        %639 = vmatprep.subr.mxu0 %v592
        %640 = vmatpush1.msra.mxu0 %v591
        %641 = vmatprep.subr.mxu0 %v594
        %642 = vmatpush1.msra.mxu0 %v593
        %643 = vmatprep.subr.mxu0 %v596
        %644 = vmatpush1.msra.mxu0 %v595
        %645 = vmatprep.subr.mxu0 %v598
        %646 = vmatpush1.msra.mxu0 %v597
        %647 = vmatprep.subr.mxu0 %v600
        %648 = vmatpush1.msra.mxu0 %v599
        %649 = vmatprep.subr.mxu0 %v602
        %650 = vmatpush1.msra.mxu0 %v601
        %651 = vmatprep.subr.mxu0 %v604
        %652 = vmatpush1.msra.mxu0 %v603
        %653 = vmatprep.subr.mxu0 0.0
        %654 = vmatpush1.msra.mxu0 0.0
        %655 = vmatprep.subr.mxu0 0.0
        %656 = vmatpush1.msra.mxu0 0.0
        %657 = vmatprep.subr.mxu0 0.0
        %658 = vmatpush1.msra.mxu0 0.0
        %659 = vmatprep.subr.mxu0 0.0
        %660 = vmatpush1.msra.mxu0 0.0
        %661 = vmatprep.subr.mxu0 0.0
        %662 = vmatpush1.msra.mxu0 0.0
        %663 = vmatprep.subr.mxu0 0.0
        %664 = vmatpush1.msra.mxu0 0.0
        %665 = vmatprep.subr.mxu0 0.0
        %666 = vmatpush1.msra.mxu0 0.0
        %667 = vmatprep.subr.mxu0 0.0
        %668 = vmatpush1.msra.mxu0 0.0
        %669 = vmatprep.subr.mxu0 0.0
        %670 = vmatpush1.msra.mxu0 0.0
        %671 = vmatprep.subr.mxu0 0.0
        %672 = vmatpush1.msra.mxu0 0.0
        %673 = vmatprep.subr.mxu0 0.0
        %674 = vmatpush1.msra.mxu0 0.0
        %675 = vmatprep.subr.mxu0 0.0
        %676 = vmatpush1.msra.mxu0 0.0
        %677 = vmatprep.subr.mxu0 0.0
        %678 = vmatpush1.msra.mxu0 0.0
        %679 = vmatprep.subr.mxu0 0.0
        %680 = vmatpush1.msra.mxu0 0.0
        %681 = vmatprep.subr.mxu0 0.0
        %682 = vmatpush1.msra.mxu0 0.0
        %683 = vmatprep.subr.mxu0 0.0
        %684 = vmatpush1.msra.mxu0 0.0
        %685 = vmatprep.subr.mxu0 0.0
        %686 = vmatpush1.msra.mxu0 0.0
        %687 = vmatprep.subr.mxu0 0.0
        %688 = vmatpush1.msra.mxu0 0.0
        %689 = vmatprep.subr.mxu0 0.0
        %690 = vmatpush1.msra.mxu0 0.0
        %691 = vmatprep.subr.mxu0 0.0
        %692 = vmatpush1.msra.mxu0 0.0
        %693 = vmatprep.mubr.f32.mxu0 0.0
        %694 = vmatmul.mubr.f32.gmra.mrb[0].mxu0 %v606
        %v695 = vpop.f32.mrb[0].mxu0
        %v696 = vadd.f32 0.0, %v695
        %v697 = vpop.f32.mrb[0].mxu0
        %v698 = vadd.f32 0.0, %v697
        %699 = vmatprep.mubr.f32.mxu0 0.0
        %700 = vmatmul.mubr.f32.gmra.mrb[0].mxu0 %v609
        %v701 = vpop.f32.mrb[0].mxu0
        %v702 = vadd.f32 0.0, %v701
        %v703 = vpop.f32.mrb[0].mxu0
        %v704 = vadd.f32 0.0, %v703
        %705 = vmatprep.mubr.f32.mxu0 0.0
        %706 = vmatmul.mubr.f32.gmra.mrb[0].mxu0 %v612
        %v707 = vpop.f32.mrb[0].mxu0
        %v708 = vadd.f32 0.0, %v707
        %v709 = vpop.f32.mrb[0].mxu0
        %v710 = vadd.f32 0.0, %v709
        %711 = vmatprep.mubr.f32.mxu0 0.0
        %712 = vmatmul.mubr.f32.gmra.mrb[0].mxu0 %v615
        %v713 = vpop.f32.mrb[0].mxu0
        %v714 = vadd.f32 0.0, %v713
        %v715 = vpop.f32.mrb[0].mxu0
        %v716 = vadd.f32 0.0, %v715
        %717 = vmatprep.mubr.f32.mxu0 0.0
        %718 = vmatmul.mubr.f32.gmra.mrb[0].mxu0 %v618
        %v719 = vpop.f32.mrb[0].mxu0
        %v720 = vadd.f32 0.0, %v719
        %v721 = vpop.f32.mrb[0].mxu0
        %v722 = vadd.f32 0.0, %v721
        %723 = vmatprep.mubr.f32.mxu0 0.0
        %724 = vmatmul.mubr.f32.gmra.mrb[0].mxu0 %v621
        %v725 = vpop.f32.mrb[0].mxu0
        %v726 = vadd.f32 0.0, %v725
        %v727 = vpop.f32.mrb[0].mxu0
        %v728 = vadd.f32 0.0, %v727
        %729 = vmatprep.mubr.f32.mxu0 0.0
        %730 = vmatmul.mubr.f32.gmra.mrb[0].mxu0 %v624
        %v731 = vpop.f32.mrb[0].mxu0
        %v732 = vadd.f32 0.0, %v731
        %v733 = vpop.f32.mrb[0].mxu0
        %v734 = vadd.f32 0.0, %v733
        %735 = vmatprep.mubr.f32.mxu0 0.0
        %736 = vmatmul.mubr.f32.gmra.mrb[0].mxu0 %v627
        %v737 = vpop.f32.mrb[0].mxu0
        %v738 = vadd.f32 0.0, %v737
        %v739 = vpop.f32.mrb[0].mxu0
        %v740 = vadd.f32 0.0, %v739
        %741 = vdwg.mxu0
        %v743 = vsel %vm530, %v540, 0
        %v746 = vsel %vm530, %v541, 0
        %v749 = vsel %vm530, %v542, 0
        %v752 = vsel %vm530, %v543, 0
        %v755 = vsel %vm530, %v544, 0
        %v758 = vsel %vm530, %v545, 0
        %v761 = vsel %vm530, %v546, 0
        %v764 = vsel %vm530, %v547, 0
        %766 = vmatprep.subr.mxu0 %v549
        %767 = vmatpush1.msra.mxu0 %v548
        %768 = vmatprep.subr.mxu0 %v551
        %769 = vmatpush1.msra.mxu0 %v550
        %770 = vmatprep.subr.mxu0 %v553
        %771 = vmatpush1.msra.mxu0 %v552
        %772 = vmatprep.subr.mxu0 %v555
        %773 = vmatpush1.msra.mxu0 %v554
        %774 = vmatprep.subr.mxu0 %v557
        %775 = vmatpush1.msra.mxu0 %v556
        %776 = vmatprep.subr.mxu0 %v559
        %777 = vmatpush1.msra.mxu0 %v558
        %778 = vmatprep.subr.mxu0 %v561
        %779 = vmatpush1.msra.mxu0 %v560
        %780 = vmatprep.subr.mxu0 %v563
        %781 = vmatpush1.msra.mxu0 %v562
        %782 = vmatprep.subr.mxu0 %v565
        %783 = vmatpush1.msra.mxu0 %v564
        %784 = vmatprep.subr.mxu0 %v567
        %785 = vmatpush1.msra.mxu0 %v566
        %786 = vmatprep.subr.mxu0 %v569
        %787 = vmatpush1.msra.mxu0 %v568
        %788 = vmatprep.subr.mxu0 %v571
        %789 = vmatpush1.msra.mxu0 %v570
        %790 = vmatprep.subr.mxu0 0.0
        %791 = vmatpush1.msra.mxu0 0.0
        %792 = vmatprep.subr.mxu0 0.0
        %793 = vmatpush1.msra.mxu0 0.0
        %794 = vmatprep.subr.mxu0 0.0
        %795 = vmatpush1.msra.mxu0 0.0
        %796 = vmatprep.subr.mxu0 0.0
        %797 = vmatpush1.msra.mxu0 0.0
        %798 = vmatprep.subr.mxu0 0.0
        %799 = vmatpush1.msra.mxu0 0.0
        %800 = vmatprep.subr.mxu0 0.0
        %801 = vmatpush1.msra.mxu0 0.0
        %802 = vmatprep.subr.mxu0 0.0
        %803 = vmatpush1.msra.mxu0 0.0
        %804 = vmatprep.subr.mxu0 0.0
        %805 = vmatpush1.msra.mxu0 0.0
        %806 = vmatprep.subr.mxu0 0.0
        %807 = vmatpush1.msra.mxu0 0.0
        %808 = vmatprep.subr.mxu0 0.0
        %809 = vmatpush1.msra.mxu0 0.0
        %810 = vmatprep.subr.mxu0 0.0
        %811 = vmatpush1.msra.mxu0 0.0
        %812 = vmatprep.subr.mxu0 0.0
        %813 = vmatpush1.msra.mxu0 0.0
        %814 = vmatprep.subr.mxu0 0.0
        %815 = vmatpush1.msra.mxu0 0.0
        %816 = vmatprep.subr.mxu0 0.0
        %817 = vmatpush1.msra.mxu0 0.0
        %818 = vmatprep.subr.mxu0 0.0
        %819 = vmatpush1.msra.mxu0 0.0
        %820 = vmatprep.subr.mxu0 0.0
        %821 = vmatpush1.msra.mxu0 0.0
        %822 = vmatprep.subr.mxu0 0.0
        %823 = vmatpush1.msra.mxu0 0.0
        %824 = vmatprep.subr.mxu0 0.0
        %825 = vmatpush1.msra.mxu0 0.0
        %826 = vmatprep.subr.mxu0 0.0
        %827 = vmatpush1.msra.mxu0 0.0
        %828 = vmatprep.subr.mxu0 0.0
        %829 = vmatpush1.msra.mxu0 0.0
        %830 = vmatprep.mubr.f32.mxu0 0.0
        %831 = vmatmul.mubr.f32.gmra.mrb[0].mxu0 %v743
        %v832 = vpop.f32.mrb[0].mxu0
        %v833 = vadd.f32 %v696, %v832
        %v834 = vpop.f32.mrb[0].mxu0
        %v835 = vadd.f32 %v698, %v834
        %836 = vmatprep.mubr.f32.mxu0 0.0
        %837 = vmatmul.mubr.f32.gmra.mrb[0].mxu0 %v746
        %v838 = vpop.f32.mrb[0].mxu0
        %v839 = vadd.f32 %v702, %v838
        %v840 = vpop.f32.mrb[0].mxu0
        %v841 = vadd.f32 %v704, %v840
        %842 = vmatprep.mubr.f32.mxu0 0.0
        %843 = vmatmul.mubr.f32.gmra.mrb[0].mxu0 %v749
        %v844 = vpop.f32.mrb[0].mxu0
        %v845 = vadd.f32 %v708, %v844
        %v846 = vpop.f32.mrb[0].mxu0
        %v847 = vadd.f32 %v710, %v846
        %848 = vmatprep.mubr.f32.mxu0 0.0
        %849 = vmatmul.mubr.f32.gmra.mrb[0].mxu0 %v752
        %v850 = vpop.f32.mrb[0].mxu0
        %v851 = vadd.f32 %v714, %v850
        %v852 = vpop.f32.mrb[0].mxu0
        %v853 = vadd.f32 %v716, %v852
        %854 = vmatprep.mubr.f32.mxu0 0.0
        %855 = vmatmul.mubr.f32.gmra.mrb[0].mxu0 %v755
        %v856 = vpop.f32.mrb[0].mxu0
        %v857 = vadd.f32 %v720, %v856
        %v858 = vpop.f32.mrb[0].mxu0
        %v859 = vadd.f32 %v722, %v858
        %860 = vmatprep.mubr.f32.mxu0 0.0
        %861 = vmatmul.mubr.f32.gmra.mrb[0].mxu0 %v758
        %v862 = vpop.f32.mrb[0].mxu0
        %v863 = vadd.f32 %v726, %v862
        %v864 = vpop.f32.mrb[0].mxu0
        %v865 = vadd.f32 %v728, %v864
        %866 = vmatprep.mubr.f32.mxu0 0.0
        %867 = vmatmul.mubr.f32.gmra.mrb[0].mxu0 %v761
        %v868 = vpop.f32.mrb[0].mxu0
        %v869 = vadd.f32 %v732, %v868
        %v870 = vpop.f32.mrb[0].mxu0
        %v871 = vadd.f32 %v734, %v870
        %872 = vmatprep.mubr.f32.mxu0 0.0
        %873 = vmatmul.mubr.f32.gmra.mrb[0].mxu0 %v764
        %v874 = vpop.f32.mrb[0].mxu0
        %v875 = vadd.f32 %v738, %v874
        %v876 = vpop.f32.mrb[0].mxu0
        %v877 = vadd.f32 %v740, %v876
        %878 = vdwg.mxu0
        %v879 = vld [vmem:[#allocation2 + $0x2] sm:$0xff]
        %v880 = vld [vmem:[#allocation2 + $0xa] sm:$0xff]
        %v881 = vld [vmem:[#allocation2 + $0x12] sm:$0xff]
        %v882 = vld [vmem:[#allocation2 + $0x1a] sm:$0xff]
        %v883 = vld [vmem:[#allocation2 + $0x22] sm:$0xff]
        %v884 = vld [vmem:[#allocation2 + $0x2a] sm:$0xff]
        %v885 = vld [vmem:[#allocation2 + $0x32] sm:$0xff]
        %v886 = vld [vmem:[#allocation2 + $0x3a] sm:$0xff]
        %s887 = scalar_lea.vmem %s1, 384
        %v888 = vld [vmem:[%s887] sm:$0xff]
        %v889 = vld [vmem:[%s887 + $0x8] sm:$0xff]
        %v890 = vld [vmem:[%s887 + $0x10] sm:$0xff]
        %v891 = vld [vmem:[%s887 + $0x18] sm:$0xff]
        %v892 = vld [vmem:[%s887 + $0x20] sm:$0xff]
        %v893 = vld [vmem:[%s887 + $0x28] sm:$0xff]
        %v894 = vld [vmem:[%s887 + $0x30] sm:$0xff]
        %v895 = vld [vmem:[%s887 + $0x38] sm:$0xff]
        %v896 = vld [vmem:[%s887 + $0x40] sm:$0xff]
        %v897 = vld [vmem:[%s887 + $0x48] sm:$0xff]
        %v898 = vld [vmem:[%s887 + $0x50] sm:$0xff]
        %v899 = vld [vmem:[%s887 + $0x58] sm:$0xff]
        %v900 = vld [vmem:[%s887 + $0x60] sm:$0xff]
        %v901 = vld [vmem:[%s887 + $0x68] sm:$0xff]
        %v902 = vld [vmem:[%s887 + $0x70] sm:$0xff]
        %v903 = vld [vmem:[%s887 + $0x78] sm:$0xff]
        %v904 = vld [vmem:[%s887 + $0x80] sm:$0xff]
        %v905 = vld [vmem:[%s887 + $0x88] sm:$0xff]
        %v906 = vld [vmem:[%s887 + $0x90] sm:$0xff]
        %v907 = vld [vmem:[%s887 + $0x98] sm:$0xff]
        %v908 = vld [vmem:[%s887 + $0xa0] sm:$0xff]
        %v909 = vld [vmem:[%s887 + $0xa8] sm:$0xff]
        %v910 = vld [vmem:[%s887 + $0xb0] sm:$0xff]
        %v911 = vld [vmem:[%s887 + $0xb8] sm:$0xff]
        %v913 = vsel %vm530, %v879, 0
        %v916 = vsel %vm530, %v880, 0
        %v919 = vsel %vm530, %v881, 0
        %v922 = vsel %vm530, %v882, 0
        %v925 = vsel %vm530, %v883, 0
        %v928 = vsel %vm530, %v884, 0
        %v931 = vsel %vm530, %v885, 0
        %v934 = vsel %vm530, %v886, 0
        %936 = vmatprep.subr.mxu0 %v889
        %937 = vmatpush1.msra.mxu0 %v888
        %938 = vmatprep.subr.mxu0 %v891
        %939 = vmatpush1.msra.mxu0 %v890
        %940 = vmatprep.subr.mxu0 %v893
        %941 = vmatpush1.msra.mxu0 %v892
        %942 = vmatprep.subr.mxu0 %v895
        %943 = vmatpush1.msra.mxu0 %v894
        %944 = vmatprep.subr.mxu0 %v897
        %945 = vmatpush1.msra.mxu0 %v896
        %946 = vmatprep.subr.mxu0 %v899
        %947 = vmatpush1.msra.mxu0 %v898
        %948 = vmatprep.subr.mxu0 %v901
        %949 = vmatpush1.msra.mxu0 %v900
        %950 = vmatprep.subr.mxu0 %v903
        %951 = vmatpush1.msra.mxu0 %v902
        %952 = vmatprep.subr.mxu0 %v905
        %953 = vmatpush1.msra.mxu0 %v904
        %954 = vmatprep.subr.mxu0 %v907
        %955 = vmatpush1.msra.mxu0 %v906
        %956 = vmatprep.subr.mxu0 %v909
        %957 = vmatpush1.msra.mxu0 %v908
        %958 = vmatprep.subr.mxu0 %v911
        %959 = vmatpush1.msra.mxu0 %v910
        %960 = vmatprep.subr.mxu0 0.0
        %961 = vmatpush1.msra.mxu0 0.0
        %962 = vmatprep.subr.mxu0 0.0
        %963 = vmatpush1.msra.mxu0 0.0
        %964 = vmatprep.subr.mxu0 0.0
        %965 = vmatpush1.msra.mxu0 0.0
        %966 = vmatprep.subr.mxu0 0.0
        %967 = vmatpush1.msra.mxu0 0.0
        %968 = vmatprep.subr.mxu0 0.0
        %969 = vmatpush1.msra.mxu0 0.0
        %970 = vmatprep.subr.mxu0 0.0
        %971 = vmatpush1.msra.mxu0 0.0
        %972 = vmatprep.subr.mxu0 0.0
        %973 = vmatpush1.msra.mxu0 0.0
        %974 = vmatprep.subr.mxu0 0.0
        %975 = vmatpush1.msra.mxu0 0.0
        %976 = vmatprep.subr.mxu0 0.0
        %977 = vmatpush1.msra.mxu0 0.0
        %978 = vmatprep.subr.mxu0 0.0
        %979 = vmatpush1.msra.mxu0 0.0
        %980 = vmatprep.subr.mxu0 0.0
        %981 = vmatpush1.msra.mxu0 0.0
        %982 = vmatprep.subr.mxu0 0.0
        %983 = vmatpush1.msra.mxu0 0.0
        %984 = vmatprep.subr.mxu0 0.0
        %985 = vmatpush1.msra.mxu0 0.0
        %986 = vmatprep.subr.mxu0 0.0
        %987 = vmatpush1.msra.mxu0 0.0
        %988 = vmatprep.subr.mxu0 0.0
        %989 = vmatpush1.msra.mxu0 0.0
        %990 = vmatprep.subr.mxu0 0.0
        %991 = vmatpush1.msra.mxu0 0.0
        %992 = vmatprep.subr.mxu0 0.0
        %993 = vmatpush1.msra.mxu0 0.0
        %994 = vmatprep.subr.mxu0 0.0
        %995 = vmatpush1.msra.mxu0 0.0
        %996 = vmatprep.subr.mxu0 0.0
        %997 = vmatpush1.msra.mxu0 0.0
        %998 = vmatprep.subr.mxu0 0.0
        %999 = vmatpush1.msra.mxu0 0.0
        %1000 = vmatprep.mubr.f32.mxu0 0.0
        %1001 = vmatmul.mubr.f32.gmra.mrb[0].mxu0 %v913
        %v1002 = vpop.f32.mrb[0].mxu0
        %v1003 = vadd.f32 0.0, %v1002
        %v1004 = vpop.f32.mrb[0].mxu0
        %v1005 = vadd.f32 0.0, %v1004
        %1006 = vmatprep.mubr.f32.mxu0 0.0
        %1007 = vmatmul.mubr.f32.gmra.mrb[0].mxu0 %v916
        %v1008 = vpop.f32.mrb[0].mxu0
        %v1009 = vadd.f32 0.0, %v1008
        %v1010 = vpop.f32.mrb[0].mxu0
        %v1011 = vadd.f32 0.0, %v1010
        %1012 = vmatprep.mubr.f32.mxu0 0.0
        %1013 = vmatmul.mubr.f32.gmra.mrb[0].mxu0 %v919
        %v1014 = vpop.f32.mrb[0].mxu0
        %v1015 = vadd.f32 0.0, %v1014
        %v1016 = vpop.f32.mrb[0].mxu0
        %v1017 = vadd.f32 0.0, %v1016
        %1018 = vmatprep.mubr.f32.mxu0 0.0
        %1019 = vmatmul.mubr.f32.gmra.mrb[0].mxu0 %v922
        %v1020 = vpop.f32.mrb[0].mxu0
        %v1021 = vadd.f32 0.0, %v1020
        %v1022 = vpop.f32.mrb[0].mxu0
        %v1023 = vadd.f32 0.0, %v1022
        %1024 = vmatprep.mubr.f32.mxu0 0.0
        %1025 = vmatmul.mubr.f32.gmra.mrb[0].mxu0 %v925
        %v1026 = vpop.f32.mrb[0].mxu0
        %v1027 = vadd.f32 0.0, %v1026
        %v1028 = vpop.f32.mrb[0].mxu0
        %v1029 = vadd.f32 0.0, %v1028
        %1030 = vmatprep.mubr.f32.mxu0 0.0
        %1031 = vmatmul.mubr.f32.gmra.mrb[0].mxu0 %v928
        %v1032 = vpop.f32.mrb[0].mxu0
        %v1033 = vadd.f32 0.0, %v1032
        %v1034 = vpop.f32.mrb[0].mxu0
        %v1035 = vadd.f32 0.0, %v1034
        %1036 = vmatprep.mubr.f32.mxu0 0.0
        %1037 = vmatmul.mubr.f32.gmra.mrb[0].mxu0 %v931
        %v1038 = vpop.f32.mrb[0].mxu0
        %v1039 = vadd.f32 0.0, %v1038
        %v1040 = vpop.f32.mrb[0].mxu0
        %v1041 = vadd.f32 0.0, %v1040
        %1042 = vmatprep.mubr.f32.mxu0 0.0
        %1043 = vmatmul.mubr.f32.gmra.mrb[0].mxu0 %v934
        %v1044 = vpop.f32.mrb[0].mxu0
        %v1045 = vadd.f32 0.0, %v1044
        %v1046 = vpop.f32.mrb[0].mxu0
        %v1047 = vadd.f32 0.0, %v1046
        %1048 = vdwg.mxu0
        %v1049 = vadd.f32 %v833, %v1003
        %v1050 = vadd.f32 %v835, %v1005
        %v1051 = vadd.f32 %v839, %v1009
        %v1052 = vadd.f32 %v841, %v1011
        %v1053 = vadd.f32 %v845, %v1015
        %v1054 = vadd.f32 %v847, %v1017
        %v1055 = vadd.f32 %v851, %v1021
        %v1056 = vadd.f32 %v853, %v1023
        %v1057 = vadd.f32 %v857, %v1027
        %v1058 = vadd.f32 %v859, %v1029
        %v1059 = vadd.f32 %v863, %v1033
        %v1060 = vadd.f32 %v865, %v1035
        %v1061 = vadd.f32 %v869, %v1039
        %v1062 = vadd.f32 %v871, %v1041
        %v1063 = vadd.f32 %v875, %v1045
        %v1064 = vadd.f32 %v877, %v1047
        %v1065 = vld [vmem:[#allocation2 + $0x3] sm:$0xff]
        %v1066 = vld [vmem:[#allocation2 + $0xb] sm:$0xff]
        %v1067 = vld [vmem:[#allocation2 + $0x13] sm:$0xff]
        %v1068 = vld [vmem:[#allocation2 + $0x1b] sm:$0xff]
        %v1069 = vld [vmem:[#allocation2 + $0x23] sm:$0xff]
        %v1070 = vld [vmem:[#allocation2 + $0x2b] sm:$0xff]
        %v1071 = vld [vmem:[#allocation2 + $0x33] sm:$0xff]
        %v1072 = vld [vmem:[#allocation2 + $0x3b] sm:$0xff]
        %s1073 = scalar_lea.vmem %s1, 576
        %v1074 = vld [vmem:[%s1073] sm:$0xff]
        %v1075 = vld [vmem:[%s1073 + $0x8] sm:$0xff]
        %v1076 = vld [vmem:[%s1073 + $0x10] sm:$0xff]
        %v1077 = vld [vmem:[%s1073 + $0x18] sm:$0xff]
        %v1078 = vld [vmem:[%s1073 + $0x20] sm:$0xff]
        %v1079 = vld [vmem:[%s1073 + $0x28] sm:$0xff]
        %v1080 = vld [vmem:[%s1073 + $0x30] sm:$0xff]
        %v1081 = vld [vmem:[%s1073 + $0x38] sm:$0xff]
        %v1082 = vld [vmem:[%s1073 + $0x40] sm:$0xff]
        %v1083 = vld [vmem:[%s1073 + $0x48] sm:$0xff]
        %v1084 = vld [vmem:[%s1073 + $0x50] sm:$0xff]
        %v1085 = vld [vmem:[%s1073 + $0x58] sm:$0xff]
        %v1086 = vld [vmem:[%s1073 + $0x60] sm:$0xff]
        %v1087 = vld [vmem:[%s1073 + $0x68] sm:$0xff]
        %v1088 = vld [vmem:[%s1073 + $0x70] sm:$0xff]
        %v1089 = vld [vmem:[%s1073 + $0x78] sm:$0xff]
        %v1090 = vld [vmem:[%s1073 + $0x80] sm:$0xff]
        %v1091 = vld [vmem:[%s1073 + $0x88] sm:$0xff]
        %v1092 = vld [vmem:[%s1073 + $0x90] sm:$0xff]
        %v1093 = vld [vmem:[%s1073 + $0x98] sm:$0xff]
        %v1094 = vld [vmem:[%s1073 + $0xa0] sm:$0xff]
        %v1095 = vld [vmem:[%s1073 + $0xa8] sm:$0xff]
        %v1096 = vld [vmem:[%s1073 + $0xb0] sm:$0xff]
        %v1097 = vld [vmem:[%s1073 + $0xb8] sm:$0xff]
        %v1099 = vsel %vm530, %v1065, 0
        %v1102 = vsel %vm530, %v1066, 0
        %v1105 = vsel %vm530, %v1067, 0
        %v1108 = vsel %vm530, %v1068, 0
        %v1111 = vsel %vm530, %v1069, 0
        %v1114 = vsel %vm530, %v1070, 0
        %v1117 = vsel %vm530, %v1071, 0
        %v1120 = vsel %vm530, %v1072, 0
        %1122 = vmatprep.subr.mxu0 %v1075
        %1123 = vmatpush1.msra.mxu0 %v1074
        %1124 = vmatprep.subr.mxu0 %v1077
        %1125 = vmatpush1.msra.mxu0 %v1076
        %1126 = vmatprep.subr.mxu0 %v1079
        %1127 = vmatpush1.msra.mxu0 %v1078
        %1128 = vmatprep.subr.mxu0 %v1081
        %1129 = vmatpush1.msra.mxu0 %v1080
        %1130 = vmatprep.subr.mxu0 %v1083
        %1131 = vmatpush1.msra.mxu0 %v1082
        %1132 = vmatprep.subr.mxu0 %v1085
        %1133 = vmatpush1.msra.mxu0 %v1084
        %1134 = vmatprep.subr.mxu0 %v1087
        %1135 = vmatpush1.msra.mxu0 %v1086
        %1136 = vmatprep.subr.mxu0 %v1089
        %1137 = vmatpush1.msra.mxu0 %v1088
        %1138 = vmatprep.subr.mxu0 %v1091
        %1139 = vmatpush1.msra.mxu0 %v1090
        %1140 = vmatprep.subr.mxu0 %v1093
        %1141 = vmatpush1.msra.mxu0 %v1092
        %1142 = vmatprep.subr.mxu0 %v1095
        %1143 = vmatpush1.msra.mxu0 %v1094
        %1144 = vmatprep.subr.mxu0 %v1097
        %1145 = vmatpush1.msra.mxu0 %v1096
        %1146 = vmatprep.subr.mxu0 0.0
        %1147 = vmatpush1.msra.mxu0 0.0
        %1148 = vmatprep.subr.mxu0 0.0
        %1149 = vmatpush1.msra.mxu0 0.0
        %1150 = vmatprep.subr.mxu0 0.0
        %1151 = vmatpush1.msra.mxu0 0.0
        %1152 = vmatprep.subr.mxu0 0.0
        %1153 = vmatpush1.msra.mxu0 0.0
        %1154 = vmatprep.subr.mxu0 0.0
        %1155 = vmatpush1.msra.mxu0 0.0
        %1156 = vmatprep.subr.mxu0 0.0
        %1157 = vmatpush1.msra.mxu0 0.0
        %1158 = vmatprep.subr.mxu0 0.0
        %1159 = vmatpush1.msra.mxu0 0.0
        %1160 = vmatprep.subr.mxu0 0.0
        %1161 = vmatpush1.msra.mxu0 0.0
        %1162 = vmatprep.subr.mxu0 0.0
        %1163 = vmatpush1.msra.mxu0 0.0
        %1164 = vmatprep.subr.mxu0 0.0
        %1165 = vmatpush1.msra.mxu0 0.0
        %1166 = vmatprep.subr.mxu0 0.0
        %1167 = vmatpush1.msra.mxu0 0.0
        %1168 = vmatprep.subr.mxu0 0.0
        %1169 = vmatpush1.msra.mxu0 0.0
        %1170 = vmatprep.subr.mxu0 0.0
        %1171 = vmatpush1.msra.mxu0 0.0
        %1172 = vmatprep.subr.mxu0 0.0
        %1173 = vmatpush1.msra.mxu0 0.0
        %1174 = vmatprep.subr.mxu0 0.0
        %1175 = vmatpush1.msra.mxu0 0.0
        %1176 = vmatprep.subr.mxu0 0.0
        %1177 = vmatpush1.msra.mxu0 0.0
        %1178 = vmatprep.subr.mxu0 0.0
        %1179 = vmatpush1.msra.mxu0 0.0
        %1180 = vmatprep.subr.mxu0 0.0
        %1181 = vmatpush1.msra.mxu0 0.0
        %1182 = vmatprep.subr.mxu0 0.0
        %1183 = vmatpush1.msra.mxu0 0.0
        %1184 = vmatprep.subr.mxu0 0.0
        %1185 = vmatpush1.msra.mxu0 0.0
        %1186 = vmatprep.mubr.f32.mxu0 0.0
        %1187 = vmatmul.mubr.f32.gmra.mrb[0].mxu0 %v1099
        %v1188 = vpop.f32.mrb[0].mxu0
        %v1189 = vadd.f32 0.0, %v1188
        %v1190 = vpop.f32.mrb[0].mxu0
        %v1191 = vadd.f32 0.0, %v1190
        %1192 = vmatprep.mubr.f32.mxu0 0.0
        %1193 = vmatmul.mubr.f32.gmra.mrb[0].mxu0 %v1102
        %v1194 = vpop.f32.mrb[0].mxu0
        %v1195 = vadd.f32 0.0, %v1194
        %v1196 = vpop.f32.mrb[0].mxu0
        %v1197 = vadd.f32 0.0, %v1196
        %1198 = vmatprep.mubr.f32.mxu0 0.0
        %1199 = vmatmul.mubr.f32.gmra.mrb[0].mxu0 %v1105
        %v1200 = vpop.f32.mrb[0].mxu0
        %v1201 = vadd.f32 0.0, %v1200
        %v1202 = vpop.f32.mrb[0].mxu0
        %v1203 = vadd.f32 0.0, %v1202
        %1204 = vmatprep.mubr.f32.mxu0 0.0
        %1205 = vmatmul.mubr.f32.gmra.mrb[0].mxu0 %v1108
        %v1206 = vpop.f32.mrb[0].mxu0
        %v1207 = vadd.f32 0.0, %v1206
        %v1208 = vpop.f32.mrb[0].mxu0
        %v1209 = vadd.f32 0.0, %v1208
        %1210 = vmatprep.mubr.f32.mxu0 0.0
        %1211 = vmatmul.mubr.f32.gmra.mrb[0].mxu0 %v1111
        %v1212 = vpop.f32.mrb[0].mxu0
        %v1213 = vadd.f32 0.0, %v1212
        %v1214 = vpop.f32.mrb[0].mxu0
        %v1215 = vadd.f32 0.0, %v1214
        %1216 = vmatprep.mubr.f32.mxu0 0.0
        %1217 = vmatmul.mubr.f32.gmra.mrb[0].mxu0 %v1114
        %v1218 = vpop.f32.mrb[0].mxu0
        %v1219 = vadd.f32 0.0, %v1218
        %v1220 = vpop.f32.mrb[0].mxu0
        %v1221 = vadd.f32 0.0, %v1220
        %1222 = vmatprep.mubr.f32.mxu0 0.0
        %1223 = vmatmul.mubr.f32.gmra.mrb[0].mxu0 %v1117
        %v1224 = vpop.f32.mrb[0].mxu0
        %v1225 = vadd.f32 0.0, %v1224
        %v1226 = vpop.f32.mrb[0].mxu0
        %v1227 = vadd.f32 0.0, %v1226
        %1228 = vmatprep.mubr.f32.mxu0 0.0
        %1229 = vmatmul.mubr.f32.gmra.mrb[0].mxu0 %v1120
        %v1230 = vpop.f32.mrb[0].mxu0
        %v1231 = vadd.f32 0.0, %v1230
        %v1232 = vpop.f32.mrb[0].mxu0
        %v1233 = vadd.f32 0.0, %v1232
        %1234 = vdwg.mxu0
        %v1235 = vadd.f32 %v1049, %v1189
        %v1236 = vadd.f32 %v1050, %v1191
        %v1237 = vadd.f32 %v1051, %v1195
        %v1238 = vadd.f32 %v1052, %v1197
        %v1239 = vadd.f32 %v1053, %v1201
        %v1240 = vadd.f32 %v1054, %v1203
        %v1241 = vadd.f32 %v1055, %v1207
        %v1242 = vadd.f32 %v1056, %v1209
        %v1243 = vadd.f32 %v1057, %v1213
        %v1244 = vadd.f32 %v1058, %v1215
        %v1245 = vadd.f32 %v1059, %v1219
        %v1246 = vadd.f32 %v1060, %v1221
        %v1247 = vadd.f32 %v1061, %v1225
        %v1248 = vadd.f32 %v1062, %v1227
        %v1249 = vadd.f32 %v1063, %v1231
        %v1250 = vadd.f32 %v1064, %v1233
        %v1251 = vld [vmem:[#allocation2 + $0x4] sm:$0xff]
        %v1252 = vld [vmem:[#allocation2 + $0xc] sm:$0xff]
        %v1253 = vld [vmem:[#allocation2 + $0x14] sm:$0xff]
        %v1254 = vld [vmem:[#allocation2 + $0x1c] sm:$0xff]
        %v1255 = vld [vmem:[#allocation2 + $0x24] sm:$0xff]
        %v1256 = vld [vmem:[#allocation2 + $0x2c] sm:$0xff]
        %v1257 = vld [vmem:[#allocation2 + $0x34] sm:$0xff]
        %v1258 = vld [vmem:[#allocation2 + $0x3c] sm:$0xff]
        %s1259 = scalar_lea.vmem %s1, 768
        %v1260 = vld [vmem:[%s1259] sm:$0xff]
        %v1261 = vld [vmem:[%s1259 + $0x8] sm:$0xff]
        %v1262 = vld [vmem:[%s1259 + $0x10] sm:$0xff]
        %v1263 = vld [vmem:[%s1259 + $0x18] sm:$0xff]
        %v1264 = vld [vmem:[%s1259 + $0x20] sm:$0xff]
        %v1265 = vld [vmem:[%s1259 + $0x28] sm:$0xff]
        %v1266 = vld [vmem:[%s1259 + $0x30] sm:$0xff]
        %v1267 = vld [vmem:[%s1259 + $0x38] sm:$0xff]
        %v1268 = vld [vmem:[%s1259 + $0x40] sm:$0xff]
        %v1269 = vld [vmem:[%s1259 + $0x48] sm:$0xff]
        %v1270 = vld [vmem:[%s1259 + $0x50] sm:$0xff]
        %v1271 = vld [vmem:[%s1259 + $0x58] sm:$0xff]
        %v1272 = vld [vmem:[%s1259 + $0x60] sm:$0xff]
        %v1273 = vld [vmem:[%s1259 + $0x68] sm:$0xff]
        %v1274 = vld [vmem:[%s1259 + $0x70] sm:$0xff]
        %v1275 = vld [vmem:[%s1259 + $0x78] sm:$0xff]
        %v1276 = vld [vmem:[%s1259 + $0x80] sm:$0xff]
        %v1277 = vld [vmem:[%s1259 + $0x88] sm:$0xff]
        %v1278 = vld [vmem:[%s1259 + $0x90] sm:$0xff]
        %v1279 = vld [vmem:[%s1259 + $0x98] sm:$0xff]
        %v1280 = vld [vmem:[%s1259 + $0xa0] sm:$0xff]
        %v1281 = vld [vmem:[%s1259 + $0xa8] sm:$0xff]
        %v1282 = vld [vmem:[%s1259 + $0xb0] sm:$0xff]
        %v1283 = vld [vmem:[%s1259 + $0xb8] sm:$0xff]
        %v1285 = vsel %vm530, %v1251, 0
        %v1288 = vsel %vm530, %v1252, 0
        %v1291 = vsel %vm530, %v1253, 0
        %v1294 = vsel %vm530, %v1254, 0
        %v1297 = vsel %vm530, %v1255, 0
        %v1300 = vsel %vm530, %v1256, 0
        %v1303 = vsel %vm530, %v1257, 0
        %v1306 = vsel %vm530, %v1258, 0
        %1308 = vmatprep.subr.mxu0 %v1261
        %1309 = vmatpush1.msra.mxu0 %v1260
        %1310 = vmatprep.subr.mxu0 %v1263
        %1311 = vmatpush1.msra.mxu0 %v1262
        %1312 = vmatprep.subr.mxu0 %v1265
        %1313 = vmatpush1.msra.mxu0 %v1264
        %1314 = vmatprep.subr.mxu0 %v1267
        %1315 = vmatpush1.msra.mxu0 %v1266
        %1316 = vmatprep.subr.mxu0 %v1269
        %1317 = vmatpush1.msra.mxu0 %v1268
        %1318 = vmatprep.subr.mxu0 %v1271
        %1319 = vmatpush1.msra.mxu0 %v1270
        %1320 = vmatprep.subr.mxu0 %v1273
        %1321 = vmatpush1.msra.mxu0 %v1272
        %1322 = vmatprep.subr.mxu0 %v1275
        %1323 = vmatpush1.msra.mxu0 %v1274
        %1324 = vmatprep.subr.mxu0 %v1277
        %1325 = vmatpush1.msra.mxu0 %v1276
        %1326 = vmatprep.subr.mxu0 %v1279
        %1327 = vmatpush1.msra.mxu0 %v1278
        %1328 = vmatprep.subr.mxu0 %v1281
        %1329 = vmatpush1.msra.mxu0 %v1280
        %1330 = vmatprep.subr.mxu0 %v1283
        %1331 = vmatpush1.msra.mxu0 %v1282
        %1332 = vmatprep.subr.mxu0 0.0
        %1333 = vmatpush1.msra.mxu0 0.0
        %1334 = vmatprep.subr.mxu0 0.0
        %1335 = vmatpush1.msra.mxu0 0.0
        %1336 = vmatprep.subr.mxu0 0.0
        %1337 = vmatpush1.msra.mxu0 0.0
        %1338 = vmatprep.subr.mxu0 0.0
        %1339 = vmatpush1.msra.mxu0 0.0
        %1340 = vmatprep.subr.mxu0 0.0
        %1341 = vmatpush1.msra.mxu0 0.0
        %1342 = vmatprep.subr.mxu0 0.0
        %1343 = vmatpush1.msra.mxu0 0.0
        %1344 = vmatprep.subr.mxu0 0.0
        %1345 = vmatpush1.msra.mxu0 0.0
        %1346 = vmatprep.subr.mxu0 0.0
        %1347 = vmatpush1.msra.mxu0 0.0
        %1348 = vmatprep.subr.mxu0 0.0
        %1349 = vmatpush1.msra.mxu0 0.0
        %1350 = vmatprep.subr.mxu0 0.0
        %1351 = vmatpush1.msra.mxu0 0.0
        %1352 = vmatprep.subr.mxu0 0.0
        %1353 = vmatpush1.msra.mxu0 0.0
        %1354 = vmatprep.subr.mxu0 0.0
        %1355 = vmatpush1.msra.mxu0 0.0
        %1356 = vmatprep.subr.mxu0 0.0
        %1357 = vmatpush1.msra.mxu0 0.0
        %1358 = vmatprep.subr.mxu0 0.0
        %1359 = vmatpush1.msra.mxu0 0.0
        %1360 = vmatprep.subr.mxu0 0.0
        %1361 = vmatpush1.msra.mxu0 0.0
        %1362 = vmatprep.subr.mxu0 0.0
        %1363 = vmatpush1.msra.mxu0 0.0
        %1364 = vmatprep.subr.mxu0 0.0
        %1365 = vmatpush1.msra.mxu0 0.0
        %1366 = vmatprep.subr.mxu0 0.0
        %1367 = vmatpush1.msra.mxu0 0.0
        %1368 = vmatprep.subr.mxu0 0.0
        %1369 = vmatpush1.msra.mxu0 0.0
        %1370 = vmatprep.subr.mxu0 0.0
        %1371 = vmatpush1.msra.mxu0 0.0
        %1372 = vmatprep.mubr.f32.mxu0 0.0
        %1373 = vmatmul.mubr.f32.gmra.mrb[0].mxu0 %v1285
        %v1374 = vpop.f32.mrb[0].mxu0
        %v1375 = vadd.f32 0.0, %v1374
        %v1376 = vpop.f32.mrb[0].mxu0
        %v1377 = vadd.f32 0.0, %v1376
        %1378 = vmatprep.mubr.f32.mxu0 0.0
        %1379 = vmatmul.mubr.f32.gmra.mrb[0].mxu0 %v1288
        %v1380 = vpop.f32.mrb[0].mxu0
        %v1381 = vadd.f32 0.0, %v1380
        %v1382 = vpop.f32.mrb[0].mxu0
        %v1383 = vadd.f32 0.0, %v1382
        %1384 = vmatprep.mubr.f32.mxu0 0.0
        %1385 = vmatmul.mubr.f32.gmra.mrb[0].mxu0 %v1291
        %v1386 = vpop.f32.mrb[0].mxu0
        %v1387 = vadd.f32 0.0, %v1386
        %v1388 = vpop.f32.mrb[0].mxu0
        %v1389 = vadd.f32 0.0, %v1388
        %1390 = vmatprep.mubr.f32.mxu0 0.0
        %1391 = vmatmul.mubr.f32.gmra.mrb[0].mxu0 %v1294
        %v1392 = vpop.f32.mrb[0].mxu0
        %v1393 = vadd.f32 0.0, %v1392
        %v1394 = vpop.f32.mrb[0].mxu0
        %v1395 = vadd.f32 0.0, %v1394
        %1396 = vmatprep.mubr.f32.mxu0 0.0
        %1397 = vmatmul.mubr.f32.gmra.mrb[0].mxu0 %v1297
        %v1398 = vpop.f32.mrb[0].mxu0
        %v1399 = vadd.f32 0.0, %v1398
        %v1400 = vpop.f32.mrb[0].mxu0
        %v1401 = vadd.f32 0.0, %v1400
        %1402 = vmatprep.mubr.f32.mxu0 0.0
        %1403 = vmatmul.mubr.f32.gmra.mrb[0].mxu0 %v1300
        %v1404 = vpop.f32.mrb[0].mxu0
        %v1405 = vadd.f32 0.0, %v1404
        %v1406 = vpop.f32.mrb[0].mxu0
        %v1407 = vadd.f32 0.0, %v1406
        %1408 = vmatprep.mubr.f32.mxu0 0.0
        %1409 = vmatmul.mubr.f32.gmra.mrb[0].mxu0 %v1303
        %v1410 = vpop.f32.mrb[0].mxu0
        %v1411 = vadd.f32 0.0, %v1410
        %v1412 = vpop.f32.mrb[0].mxu0
        %v1413 = vadd.f32 0.0, %v1412
        %1414 = vmatprep.mubr.f32.mxu0 0.0
        %1415 = vmatmul.mubr.f32.gmra.mrb[0].mxu0 %v1306
        %v1416 = vpop.f32.mrb[0].mxu0
        %v1417 = vadd.f32 0.0, %v1416
        %v1418 = vpop.f32.mrb[0].mxu0
        %v1419 = vadd.f32 0.0, %v1418
        %1420 = vdwg.mxu0
        %v1421 = vadd.f32 %v1235, %v1375
        %v1422 = vadd.f32 %v1236, %v1377
        %v1423 = vadd.f32 %v1237, %v1381
        %v1424 = vadd.f32 %v1238, %v1383
        %v1425 = vadd.f32 %v1239, %v1387
        %v1426 = vadd.f32 %v1240, %v1389
        %v1427 = vadd.f32 %v1241, %v1393
        %v1428 = vadd.f32 %v1242, %v1395
        %v1429 = vadd.f32 %v1243, %v1399
        %v1430 = vadd.f32 %v1244, %v1401
        %v1431 = vadd.f32 %v1245, %v1405
        %v1432 = vadd.f32 %v1246, %v1407
        %v1433 = vadd.f32 %v1247, %v1411
        %v1434 = vadd.f32 %v1248, %v1413
        %v1435 = vadd.f32 %v1249, %v1417
        %v1436 = vadd.f32 %v1250, %v1419
        %v1437 = vld [vmem:[%s2] sm:$0x3]
        %v1439 = vlaneseq
        %v1440 = vshrl.u32 %v1439, 7
        %v1441 = vsub.s32 0, %v1440
        %v1442 = vrot.slane %v1437, %v1441
        %v1443 = vlaneseq
        %v1444 = vshrl.u32 %v1443, 7
        %v1445 = vsub.s32 1, %v1444
        %v1446 = vrot.slane %v1437, %v1445
        %v1449 = vadd.f32 %v1421, %v1442
        %v1450 = vadd.f32 %v1422, %v1446
        %v1451 = vadd.f32 %v1423, %v1442
        %v1452 = vadd.f32 %v1424, %v1446
        %v1453 = vadd.f32 %v1425, %v1442
        %v1454 = vadd.f32 %v1426, %v1446
        %v1455 = vadd.f32 %v1427, %v1442
        %v1456 = vadd.f32 %v1428, %v1446
        %v1457 = vadd.f32 %v1429, %v1442
        %v1458 = vadd.f32 %v1430, %v1446
        %v1459 = vadd.f32 %v1431, %v1442
        %v1460 = vadd.f32 %v1432, %v1446
        %v1461 = vadd.f32 %v1433, %v1442
        %v1462 = vadd.f32 %v1434, %v1446
        %v1463 = vadd.f32 %v1435, %v1442
        %v1464 = vadd.f32 %v1436, %v1446
        %v1465 = vmax.f32 %v1449, 0.0
        %v1466 = vmax.f32 %v1450, 0.0
        %v1467 = vmax.f32 %v1451, 0.0
        %v1468 = vmax.f32 %v1452, 0.0
        %v1469 = vmax.f32 %v1453, 0.0
        %v1470 = vmax.f32 %v1454, 0.0
        %v1471 = vmax.f32 %v1455, 0.0
        %v1472 = vmax.f32 %v1456, 0.0
        %v1473 = vmax.f32 %v1457, 0.0
        %v1474 = vmax.f32 %v1458, 0.0
        %v1475 = vmax.f32 %v1459, 0.0
        %v1476 = vmax.f32 %v1460, 0.0
        %v1477 = vmax.f32 %v1461, 0.0
        %v1478 = vmax.f32 %v1462, 0.0
        %v1479 = vmax.f32 %v1463, 0.0
        %v1480 = vmax.f32 %v1464, 0.0
        %v1481 = vld [vmem:[%s3] sm:$0xff]
        %v1482 = vld [vmem:[%s3 + $0x8] sm:$0xff]
        %v1483 = vld [vmem:[%s3 + $0x10] sm:$0xff]
        %v1484 = vld [vmem:[%s3 + $0x18] sm:$0xff]
        %v1485 = vld [vmem:[%s3 + $0x20] sm:$0xff]
        %v1486 = vld [vmem:[%s3 + $0x28] sm:$0xff]
        %v1487 = vld [vmem:[%s3 + $0x30] sm:$0xff]
        %v1488 = vld [vmem:[%s3 + $0x38] sm:$0xff]
        %v1489 = vld [vmem:[%s3 + $0x40] sm:$0xff]
        %v1490 = vld [vmem:[%s3 + $0x48] sm:$0xff]
        %v1491 = vld [vmem:[%s3 + $0x50] sm:$0xff]
        %v1492 = vld [vmem:[%s3 + $0x58] sm:$0xff]
        %v1493 = vld [vmem:[%s3 + $0x60] sm:$0xff]
        %v1494 = vld [vmem:[%s3 + $0x68] sm:$0xff]
        %v1495 = vld [vmem:[%s3 + $0x70] sm:$0xff]
        %v1496 = vld [vmem:[%s3 + $0x78] sm:$0xff]
        %v1497 = vld [vmem:[%s3 + $0x80] sm:$0xff]
        %v1498 = vld [vmem:[%s3 + $0x88] sm:$0xff]
        %v1499 = vld [vmem:[%s3 + $0x90] sm:$0xff]
        %v1500 = vld [vmem:[%s3 + $0x98] sm:$0xff]
        %v1501 = vld [vmem:[%s3 + $0xa0] sm:$0xff]
        %vm1502 = vcmask 326656
        %v1504 = vsel %vm1502, %v1466, 0
        %v1507 = vsel %vm1502, %v1468, 0
        %v1510 = vsel %vm1502, %v1470, 0
        %v1513 = vsel %vm1502, %v1472, 0
        %v1516 = vsel %vm1502, %v1474, 0
        %v1519 = vsel %vm1502, %v1476, 0
        %v1522 = vsel %vm1502, %v1478, 0
        %v1525 = vsel %vm1502, %v1480, 0
        %1527 = vmatprep.subr.mxu0 0.0
        %1528 = vmatpush1.msra.mxu0 %v1481
        %1529 = vmatprep.subr.mxu0 0.0
        %1530 = vmatpush1.msra.mxu0 %v1482
        %1531 = vmatprep.subr.mxu0 0.0
        %1532 = vmatpush1.msra.mxu0 %v1483
        %1533 = vmatprep.subr.mxu0 0.0
        %1534 = vmatpush1.msra.mxu0 %v1484
        %1535 = vmatprep.subr.mxu0 0.0
        %1536 = vmatpush1.msra.mxu0 %v1485
        %1537 = vmatprep.subr.mxu0 0.0
        %1538 = vmatpush1.msra.mxu0 %v1486
        %1539 = vmatprep.subr.mxu0 0.0
        %1540 = vmatpush1.msra.mxu0 %v1487
        %1541 = vmatprep.subr.mxu0 0.0
        %1542 = vmatpush1.msra.mxu0 %v1488
        %1543 = vmatprep.subr.mxu0 0.0
        %1544 = vmatpush1.msra.mxu0 %v1489
        %1545 = vmatprep.subr.mxu0 0.0
        %1546 = vmatpush1.msra.mxu0 %v1490
        %1547 = vmatprep.subr.mxu0 0.0
        %1548 = vmatpush1.msra.mxu0 %v1491
        %1549 = vmatprep.subr.mxu0 0.0
        %1550 = vmatpush1.msra.mxu0 %v1492
        %1551 = vmatprep.subr.mxu0 0.0
        %1552 = vmatpush1.msra.mxu0 %v1493
        %1553 = vmatprep.subr.mxu0 0.0
        %1554 = vmatpush1.msra.mxu0 %v1494
        %1555 = vmatprep.subr.mxu0 0.0
        %1556 = vmatpush1.msra.mxu0 %v1495
        %1557 = vmatprep.subr.mxu0 0.0
        %1558 = vmatpush1.msra.mxu0 %v1496
        %1559 = vmatprep.subr.mxu0 0.0
        %1560 = vmatpush1.msra.mxu0 %v1497
        %1561 = vmatprep.subr.mxu0 0.0
        %1562 = vmatpush1.msra.mxu0 %v1498
        %1563 = vmatprep.subr.mxu0 0.0
        %1564 = vmatpush1.msra.mxu0 %v1499
        %1565 = vmatprep.subr.mxu0 0.0
        %1566 = vmatpush1.msra.mxu0 %v1500
        %1567 = vmatprep.subr.mxu0 0.0
        %1568 = vmatpush1.msra.mxu0 %v1501
        %1569 = vmatprep.subr.mxu0 0.0
        %1570 = vmatpush1.msra.mxu0 0.0
        %1571 = vmatprep.subr.mxu0 0.0
        %1572 = vmatpush1.msra.mxu0 0.0
        %1573 = vmatprep.subr.mxu0 0.0
        %1574 = vmatpush1.msra.mxu0 0.0
        %1575 = vmatprep.subr.mxu0 0.0
        %1576 = vmatpush1.msra.mxu0 0.0
        %1577 = vmatprep.subr.mxu0 0.0
        %1578 = vmatpush1.msra.mxu0 0.0
        %1579 = vmatprep.subr.mxu0 0.0
        %1580 = vmatpush1.msra.mxu0 0.0
        %1581 = vmatprep.subr.mxu0 0.0
        %1582 = vmatpush1.msra.mxu0 0.0
        %1583 = vmatprep.subr.mxu0 0.0
        %1584 = vmatpush1.msra.mxu0 0.0
        %1585 = vmatprep.subr.mxu0 0.0
        %1586 = vmatpush1.msra.mxu0 0.0
        %1587 = vmatprep.subr.mxu0 0.0
        %1588 = vmatpush1.msra.mxu0 0.0
        %1589 = vmatprep.subr.mxu0 0.0
        %1590 = vmatpush1.msra.mxu0 0.0
        %1591 = vmatprep.mubr.f32.mxu0 %v1504
        %1592 = vmatmul.mubr.f32.gmra.mrb[0].mxu0 %v1465
        %v1593 = vpop.f32.mrb[0].mxu0
        %v1594 = vadd.f32 0.0, %v1593
        %v1595 = vpop.f32.mrb[0].mxu0
        %1596 = vmatprep.mubr.f32.mxu0 %v1507
        %1597 = vmatmul.mubr.f32.gmra.mrb[0].mxu0 %v1467
        %v1598 = vpop.f32.mrb[0].mxu0
        %v1599 = vadd.f32 0.0, %v1598
        %v1600 = vpop.f32.mrb[0].mxu0
        %1601 = vmatprep.mubr.f32.mxu0 %v1510
        %1602 = vmatmul.mubr.f32.gmra.mrb[0].mxu0 %v1469
        %v1603 = vpop.f32.mrb[0].mxu0
        %v1604 = vadd.f32 0.0, %v1603
        %v1605 = vpop.f32.mrb[0].mxu0
        %1606 = vmatprep.mubr.f32.mxu0 %v1513
        %1607 = vmatmul.mubr.f32.gmra.mrb[0].mxu0 %v1471
        %v1608 = vpop.f32.mrb[0].mxu0
        %v1609 = vadd.f32 0.0, %v1608
        %v1610 = vpop.f32.mrb[0].mxu0
        %1611 = vmatprep.mubr.f32.mxu0 %v1516
        %1612 = vmatmul.mubr.f32.gmra.mrb[0].mxu0 %v1473
        %v1613 = vpop.f32.mrb[0].mxu0
        %v1614 = vadd.f32 0.0, %v1613
        %v1615 = vpop.f32.mrb[0].mxu0
        %1616 = vmatprep.mubr.f32.mxu0 %v1519
        %1617 = vmatmul.mubr.f32.gmra.mrb[0].mxu0 %v1475
        %v1618 = vpop.f32.mrb[0].mxu0
        %v1619 = vadd.f32 0.0, %v1618
        %v1620 = vpop.f32.mrb[0].mxu0
        %1621 = vmatprep.mubr.f32.mxu0 %v1522
        %1622 = vmatmul.mubr.f32.gmra.mrb[0].mxu0 %v1477
        %v1623 = vpop.f32.mrb[0].mxu0
        %v1624 = vadd.f32 0.0, %v1623
        %v1625 = vpop.f32.mrb[0].mxu0
        %1626 = vmatprep.mubr.f32.mxu0 %v1525
        %1627 = vmatmul.mubr.f32.gmra.mrb[0].mxu0 %v1479
        %v1628 = vpop.f32.mrb[0].mxu0
        %v1629 = vadd.f32 0.0, %v1628
        %v1630 = vpop.f32.mrb[0].mxu0
        %1631 = vdwg.mxu0
        %s1632 = scalar_lea.vmem %s3, 168
        %v1633 = vld [vmem:[%s1632] sm:$0xff]
        %v1634 = vld [vmem:[%s1632 + $0x8] sm:$0xff]
        %v1635 = vld [vmem:[%s1632 + $0x10] sm:$0xff]
        %v1636 = vld [vmem:[%s1632 + $0x18] sm:$0xff]
        %v1637 = vld [vmem:[%s1632 + $0x20] sm:$0xff]
        %v1638 = vld [vmem:[%s1632 + $0x28] sm:$0xff]
        %v1639 = vld [vmem:[%s1632 + $0x30] sm:$0xff]
        %v1640 = vld [vmem:[%s1632 + $0x38] sm:$0xff]
        %v1641 = vld [vmem:[%s1632 + $0x40] sm:$0xff]
        %v1642 = vld [vmem:[%s1632 + $0x48] sm:$0xff]
        %v1643 = vld [vmem:[%s1632 + $0x50] sm:$0xff]
        %v1644 = vld [vmem:[%s1632 + $0x58] sm:$0xff]
        %v1645 = vld [vmem:[%s1632 + $0x60] sm:$0xff]
        %v1646 = vld [vmem:[%s1632 + $0x68] sm:$0xff]
        %v1647 = vld [vmem:[%s1632 + $0x70] sm:$0xff]
        %v1648 = vld [vmem:[%s1632 + $0x78] sm:$0xff]
        %v1649 = vld [vmem:[%s1632 + $0x80] sm:$0xff]
        %v1650 = vld [vmem:[%s1632 + $0x88] sm:$0xff]
        %v1651 = vld [vmem:[%s1632 + $0x90] sm:$0xff]
        %v1652 = vld [vmem:[%s1632 + $0x98] sm:$0xff]
        %v1653 = vld [vmem:[%s1632 + $0xa0] sm:$0xff]
        %1654 = vmatprep.subr.mxu0 0.0
        %1655 = vmatpush1.msra.mxu0 %v1633
        %1656 = vmatprep.subr.mxu0 0.0
        %1657 = vmatpush1.msra.mxu0 %v1634
        %1658 = vmatprep.subr.mxu0 0.0
        %1659 = vmatpush1.msra.mxu0 %v1635
        %1660 = vmatprep.subr.mxu0 0.0
        %1661 = vmatpush1.msra.mxu0 %v1636
        %1662 = vmatprep.subr.mxu0 0.0
        %1663 = vmatpush1.msra.mxu0 %v1637
        %1664 = vmatprep.subr.mxu0 0.0
        %1665 = vmatpush1.msra.mxu0 %v1638
        %1666 = vmatprep.subr.mxu0 0.0
        %1667 = vmatpush1.msra.mxu0 %v1639
        %1668 = vmatprep.subr.mxu0 0.0
        %1669 = vmatpush1.msra.mxu0 %v1640
        %1670 = vmatprep.subr.mxu0 0.0
        %1671 = vmatpush1.msra.mxu0 %v1641
        %1672 = vmatprep.subr.mxu0 0.0
        %1673 = vmatpush1.msra.mxu0 %v1642
        %1674 = vmatprep.subr.mxu0 0.0
        %1675 = vmatpush1.msra.mxu0 %v1643
        %1676 = vmatprep.subr.mxu0 0.0
        %1677 = vmatpush1.msra.mxu0 %v1644
        %1678 = vmatprep.subr.mxu0 0.0
        %1679 = vmatpush1.msra.mxu0 %v1645
        %1680 = vmatprep.subr.mxu0 0.0
        %1681 = vmatpush1.msra.mxu0 %v1646
        %1682 = vmatprep.subr.mxu0 0.0
        %1683 = vmatpush1.msra.mxu0 %v1647
        %1684 = vmatprep.subr.mxu0 0.0
        %1685 = vmatpush1.msra.mxu0 %v1648
        %1686 = vmatprep.subr.mxu0 0.0
        %1687 = vmatpush1.msra.mxu0 %v1649
        %1688 = vmatprep.subr.mxu0 0.0
        %1689 = vmatpush1.msra.mxu0 %v1650
        %1690 = vmatprep.subr.mxu0 0.0
        %1691 = vmatpush1.msra.mxu0 %v1651
        %1692 = vmatprep.subr.mxu0 0.0
        %1693 = vmatpush1.msra.mxu0 %v1652
        %1694 = vmatprep.subr.mxu0 0.0
        %1695 = vmatpush1.msra.mxu0 %v1653
        %1696 = vmatprep.subr.mxu0 0.0
        %1697 = vmatpush1.msra.mxu0 0.0
        %1698 = vmatprep.subr.mxu0 0.0
        %1699 = vmatpush1.msra.mxu0 0.0
        %1700 = vmatprep.subr.mxu0 0.0
        %1701 = vmatpush1.msra.mxu0 0.0
        %1702 = vmatprep.subr.mxu0 0.0
        %1703 = vmatpush1.msra.mxu0 0.0
        %1704 = vmatprep.subr.mxu0 0.0
        %1705 = vmatpush1.msra.mxu0 0.0
        %1706 = vmatprep.subr.mxu0 0.0
        %1707 = vmatpush1.msra.mxu0 0.0
        %1708 = vmatprep.subr.mxu0 0.0
        %1709 = vmatpush1.msra.mxu0 0.0
        %1710 = vmatprep.subr.mxu0 0.0
        %1711 = vmatpush1.msra.mxu0 0.0
        %1712 = vmatprep.subr.mxu0 0.0
        %1713 = vmatpush1.msra.mxu0 0.0
        %1714 = vmatprep.subr.mxu0 0.0
        %1715 = vmatpush1.msra.mxu0 0.0
        %1716 = vmatprep.subr.mxu0 0.0
        %1717 = vmatpush1.msra.mxu0 0.0
        %1718 = vmatprep.mubr.f32.mxu0 %v1504
        %1719 = vmatmul.mubr.f32.gmra.mrb[0].mxu0 %v1465
        %v1720 = vpop.f32.mrb[0].mxu0
        %v1721 = vadd.f32 0.0, %v1720
        %v1722 = vpop.f32.mrb[0].mxu0
        %1723 = vmatprep.mubr.f32.mxu0 %v1507
        %1724 = vmatmul.mubr.f32.gmra.mrb[0].mxu0 %v1467
        %v1725 = vpop.f32.mrb[0].mxu0
        %v1726 = vadd.f32 0.0, %v1725
        %v1727 = vpop.f32.mrb[0].mxu0
        %1728 = vmatprep.mubr.f32.mxu0 %v1510
        %1729 = vmatmul.mubr.f32.gmra.mrb[0].mxu0 %v1469
        %v1730 = vpop.f32.mrb[0].mxu0
        %v1731 = vadd.f32 0.0, %v1730
        %v1732 = vpop.f32.mrb[0].mxu0
        %1733 = vmatprep.mubr.f32.mxu0 %v1513
        %1734 = vmatmul.mubr.f32.gmra.mrb[0].mxu0 %v1471
        %v1735 = vpop.f32.mrb[0].mxu0
        %v1736 = vadd.f32 0.0, %v1735
        %v1737 = vpop.f32.mrb[0].mxu0
        %1738 = vmatprep.mubr.f32.mxu0 %v1516
        %1739 = vmatmul.mubr.f32.gmra.mrb[0].mxu0 %v1473
        %v1740 = vpop.f32.mrb[0].mxu0
        %v1741 = vadd.f32 0.0, %v1740
        %v1742 = vpop.f32.mrb[0].mxu0
        %1743 = vmatprep.mubr.f32.mxu0 %v1519
        %1744 = vmatmul.mubr.f32.gmra.mrb[0].mxu0 %v1475
        %v1745 = vpop.f32.mrb[0].mxu0
        %v1746 = vadd.f32 0.0, %v1745
        %v1747 = vpop.f32.mrb[0].mxu0
        %1748 = vmatprep.mubr.f32.mxu0 %v1522
        %1749 = vmatmul.mubr.f32.gmra.mrb[0].mxu0 %v1477
        %v1750 = vpop.f32.mrb[0].mxu0
        %v1751 = vadd.f32 0.0, %v1750
        %v1752 = vpop.f32.mrb[0].mxu0
        %1753 = vmatprep.mubr.f32.mxu0 %v1525
        %1754 = vmatmul.mubr.f32.gmra.mrb[0].mxu0 %v1479
        %v1755 = vpop.f32.mrb[0].mxu0
        %v1756 = vadd.f32 0.0, %v1755
        %v1757 = vpop.f32.mrb[0].mxu0
        %1758 = vdwg.mxu0
        %v1759 = vmax.f32 %v1594, %v1721
        %v1760 = vmax.f32 %v1599, %v1726
        %v1761 = vmax.f32 %v1604, %v1731
        %v1762 = vmax.f32 %v1609, %v1736
        %v1763 = vmax.f32 %v1614, %v1741
        %v1764 = vmax.f32 %v1619, %v1746
        %v1765 = vmax.f32 %v1624, %v1751
        %v1766 = vmax.f32 %v1629, %v1756
        %v1767 = vld [vmem:[%s4] sm:$0xff]
        %v1768 = vld [vmem:[%s4 + $0x8] sm:$0xff]
        %v1769 = vld [vmem:[%s4 + $0x10] sm:$0xff]
        %v1770 = vld [vmem:[%s4 + $0x18] sm:$0xf]
        %vm1771 = vcmask 523264
        %v1773 = vsel %vm1771, %v1767, 0
        %v1776 = vsel %vm1771, %v1768, 0
        %v1779 = vsel %vm1771, %v1769, 0
        %v1782 = vsel %vm1771, %v1770, 0
        %1784 = vmatprep.subr.mxu0 0.0
        %1785 = vmatpush1.msra.mxu0 %v1759
        %1786 = vmatprep.subr.mxu0 0.0
        %1787 = vmatpush1.msra.mxu0 %v1760
        %1788 = vmatprep.subr.mxu0 0.0
        %1789 = vmatpush1.msra.mxu0 %v1761
        %1790 = vmatprep.subr.mxu0 0.0
        %1791 = vmatpush1.msra.mxu0 %v1762
        %1792 = vmatprep.subr.mxu0 0.0
        %1793 = vmatpush1.msra.mxu0 %v1763
        %1794 = vmatprep.subr.mxu0 0.0
        %1795 = vmatpush1.msra.mxu0 %v1764
        %1796 = vmatprep.subr.mxu0 0.0
        %1797 = vmatpush1.msra.mxu0 %v1765
        %1798 = vmatprep.subr.mxu0 0.0
        %1799 = vmatpush1.msra.mxu0 %v1766
        %1800 = vmatprep.subr.mxu0 0.0
        %1801 = vmatpush1.msra.mxu0 0.0
        %1802 = vmatprep.subr.mxu0 0.0
        %1803 = vmatpush1.msra.mxu0 0.0
        %1804 = vmatprep.subr.mxu0 0.0
        %1805 = vmatpush1.msra.mxu0 0.0
        %1806 = vmatprep.subr.mxu0 0.0
        %1807 = vmatpush1.msra.mxu0 0.0
        %1808 = vmatprep.subr.mxu0 0.0
        %1809 = vmatpush1.msra.mxu0 0.0
        %1810 = vmatprep.subr.mxu0 0.0
        %1811 = vmatpush1.msra.mxu0 0.0
        %1812 = vmatprep.subr.mxu0 0.0
        %1813 = vmatpush1.msra.mxu0 0.0
        %1814 = vmatprep.subr.mxu0 0.0
        %1815 = vmatpush1.msra.mxu0 0.0
        %1816 = vmatprep.subr.mxu0 0.0
        %1817 = vmatpush1.msra.mxu0 0.0
        %1818 = vmatprep.subr.mxu0 0.0
        %1819 = vmatpush1.msra.mxu0 0.0
        %1820 = vmatprep.subr.mxu0 0.0
        %1821 = vmatpush1.msra.mxu0 0.0
        %1822 = vmatprep.subr.mxu0 0.0
        %1823 = vmatpush1.msra.mxu0 0.0
        %1824 = vmatprep.subr.mxu0 0.0
        %1825 = vmatpush1.msra.mxu0 0.0
        %1826 = vmatprep.subr.mxu0 0.0
        %1827 = vmatpush1.msra.mxu0 0.0
        %1828 = vmatprep.subr.mxu0 0.0
        %1829 = vmatpush1.msra.mxu0 0.0
        %1830 = vmatprep.subr.mxu0 0.0
        %1831 = vmatpush1.msra.mxu0 0.0
        %1832 = vmatprep.subr.mxu0 0.0
        %1833 = vmatpush1.msra.mxu0 0.0
        %1834 = vmatprep.subr.mxu0 0.0
        %1835 = vmatpush1.msra.mxu0 0.0
        %1836 = vmatprep.subr.mxu0 0.0
        %1837 = vmatpush1.msra.mxu0 0.0
        %1838 = vmatprep.subr.mxu0 0.0
        %1839 = vmatpush1.msra.mxu0 0.0
        %1840 = vmatprep.subr.mxu0 0.0
        %1841 = vmatpush1.msra.mxu0 0.0
        %1842 = vmatprep.subr.mxu0 0.0
        %1843 = vmatpush1.msra.mxu0 0.0
        %1844 = vmatprep.subr.mxu0 0.0
        %1845 = vmatpush1.msra.mxu0 0.0
        %1846 = vmatprep.subr.mxu0 0.0
        %1847 = vmatpush1.msra.mxu0 0.0
        %1848 = vmatprep.mubr.f32.mxu0 0.0
        %1849 = vmatmul.mubr.f32.gmra.mrb[0].mxu0 %v1773
        %v1850 = vpop.f32.mrb[0].mxu0
        %v1851 = vadd.f32 0.0, %v1850
        %v1852 = vpop.f32.mrb[0].mxu0
        %1853 = vmatprep.mubr.f32.mxu0 0.0
        %1854 = vmatmul.mubr.f32.gmra.mrb[0].mxu0 %v1776
        %v1855 = vpop.f32.mrb[0].mxu0
        %v1856 = vadd.f32 0.0, %v1855
        %v1857 = vpop.f32.mrb[0].mxu0
        %1858 = vmatprep.mubr.f32.mxu0 0.0
        %1859 = vmatmul.mubr.f32.gmra.mrb[0].mxu0 %v1779
        %v1860 = vpop.f32.mrb[0].mxu0
        %v1861 = vadd.f32 0.0, %v1860
        %v1862 = vpop.f32.mrb[0].mxu0
        %1863 = vmatprep.mubr.f32.mxu0 0.0
        %1864 = vmatmul.mubr.f32.gmra.mrb[0].mxu0 %v1782
        %v1865 = vpop.f32.mrb[0].mxu0
        %v1866 = vadd.f32 0.0, %v1865
        %v1867 = vpop.f32.mrb[0].mxu0
        %1868 = vdwg.mxu0
        %s1869 = scalar_lea.vmem %s4, 32
        %v1870 = vld [vmem:[%s1869] sm:$0xff]
        %v1871 = vld [vmem:[%s1869 + $0x8] sm:$0xff]
        %v1872 = vld [vmem:[%s1869 + $0x10] sm:$0xff]
        %v1873 = vld [vmem:[%s1869 + $0x18] sm:$0xf]
        %v1875 = vsel %vm1771, %v1870, 0
        %v1878 = vsel %vm1771, %v1871, 0
        %v1881 = vsel %vm1771, %v1872, 0
        %v1884 = vsel %vm1771, %v1873, 0
        %1886 = vmatprep.subr.mxu0 0.0
        %1887 = vmatpush1.msra.mxu0 %v1759
        %1888 = vmatprep.subr.mxu0 0.0
        %1889 = vmatpush1.msra.mxu0 %v1760
        %1890 = vmatprep.subr.mxu0 0.0
        %1891 = vmatpush1.msra.mxu0 %v1761
        %1892 = vmatprep.subr.mxu0 0.0
        %1893 = vmatpush1.msra.mxu0 %v1762
        %1894 = vmatprep.subr.mxu0 0.0
        %1895 = vmatpush1.msra.mxu0 %v1763
        %1896 = vmatprep.subr.mxu0 0.0
        %1897 = vmatpush1.msra.mxu0 %v1764
        %1898 = vmatprep.subr.mxu0 0.0
        %1899 = vmatpush1.msra.mxu0 %v1765
        %1900 = vmatprep.subr.mxu0 0.0
        %1901 = vmatpush1.msra.mxu0 %v1766
        %1902 = vmatprep.subr.mxu0 0.0
        %1903 = vmatpush1.msra.mxu0 0.0
        %1904 = vmatprep.subr.mxu0 0.0
        %1905 = vmatpush1.msra.mxu0 0.0
        %1906 = vmatprep.subr.mxu0 0.0
        %1907 = vmatpush1.msra.mxu0 0.0
        %1908 = vmatprep.subr.mxu0 0.0
        %1909 = vmatpush1.msra.mxu0 0.0
        %1910 = vmatprep.subr.mxu0 0.0
        %1911 = vmatpush1.msra.mxu0 0.0
        %1912 = vmatprep.subr.mxu0 0.0
        %1913 = vmatpush1.msra.mxu0 0.0
        %1914 = vmatprep.subr.mxu0 0.0
        %1915 = vmatpush1.msra.mxu0 0.0
        %1916 = vmatprep.subr.mxu0 0.0
        %1917 = vmatpush1.msra.mxu0 0.0
        %1918 = vmatprep.subr.mxu0 0.0
        %1919 = vmatpush1.msra.mxu0 0.0
        %1920 = vmatprep.subr.mxu0 0.0
        %1921 = vmatpush1.msra.mxu0 0.0
        %1922 = vmatprep.subr.mxu0 0.0
        %1923 = vmatpush1.msra.mxu0 0.0
        %1924 = vmatprep.subr.mxu0 0.0
        %1925 = vmatpush1.msra.mxu0 0.0
        %1926 = vmatprep.subr.mxu0 0.0
        %1927 = vmatpush1.msra.mxu0 0.0
        %1928 = vmatprep.subr.mxu0 0.0
        %1929 = vmatpush1.msra.mxu0 0.0
        %1930 = vmatprep.subr.mxu0 0.0
        %1931 = vmatpush1.msra.mxu0 0.0
        %1932 = vmatprep.subr.mxu0 0.0
        %1933 = vmatpush1.msra.mxu0 0.0
        %1934 = vmatprep.subr.mxu0 0.0
        %1935 = vmatpush1.msra.mxu0 0.0
        %1936 = vmatprep.subr.mxu0 0.0
        %1937 = vmatpush1.msra.mxu0 0.0
        %1938 = vmatprep.subr.mxu0 0.0
        %1939 = vmatpush1.msra.mxu0 0.0
        %1940 = vmatprep.subr.mxu0 0.0
        %1941 = vmatpush1.msra.mxu0 0.0
        %1942 = vmatprep.subr.mxu0 0.0
        %1943 = vmatpush1.msra.mxu0 0.0
        %1944 = vmatprep.subr.mxu0 0.0
        %1945 = vmatpush1.msra.mxu0 0.0
        %1946 = vmatprep.subr.mxu0 0.0
        %1947 = vmatpush1.msra.mxu0 0.0
        %1948 = vmatprep.subr.mxu0 0.0
        %1949 = vmatpush1.msra.mxu0 0.0
        %1950 = vmatprep.mubr.f32.mxu0 0.0
        %1951 = vmatmul.mubr.f32.gmra.mrb[0].mxu0 %v1875
        %v1952 = vpop.f32.mrb[0].mxu0
        %v1953 = vadd.f32 0.0, %v1952
        %v1954 = vpop.f32.mrb[0].mxu0
        %1955 = vmatprep.mubr.f32.mxu0 0.0
        %1956 = vmatmul.mubr.f32.gmra.mrb[0].mxu0 %v1878
        %v1957 = vpop.f32.mrb[0].mxu0
        %v1958 = vadd.f32 0.0, %v1957
        %v1959 = vpop.f32.mrb[0].mxu0
        %1960 = vmatprep.mubr.f32.mxu0 0.0
        %1961 = vmatmul.mubr.f32.gmra.mrb[0].mxu0 %v1881
        %v1962 = vpop.f32.mrb[0].mxu0
        %v1963 = vadd.f32 0.0, %v1962
        %v1964 = vpop.f32.mrb[0].mxu0
        %1965 = vmatprep.mubr.f32.mxu0 0.0
        %1966 = vmatmul.mubr.f32.gmra.mrb[0].mxu0 %v1884
        %v1967 = vpop.f32.mrb[0].mxu0
        %v1968 = vadd.f32 0.0, %v1967
        %v1969 = vpop.f32.mrb[0].mxu0
        %1970 = vdwg.mxu0
        %v1971 = vmax.f32 %v1851, %v1953
        %v1972 = vmax.f32 %v1856, %v1958
        %v1973 = vmax.f32 %v1861, %v1963
        %v1974 = vmax.f32 %v1866, %v1968
        %vm1975 = vcmask 687104
        %1976 = vst.msk [vmem:[#allocation3] sm:$0xff] %vm1975, %v1971
        %1977 = vst.msk [vmem:[#allocation3 + $0x8] sm:$0xff] %vm1975, %v1972
        %1978 = vst.msk [vmem:[#allocation3 + $0x10] sm:$0xff] %vm1975, %v1973
        %vm1979 = vcmask 683008
        %1980 = vst.msk [vmem:[#allocation3 + $0x18] sm:$0xf] %vm1979, %v1974
        %1981 = vst.msk [vmem:[#allocation3 + $0x1c] sm:$0xff] %vm1975, 0.0
        %v1982 = vld [vmem:[#allocation3] sm:$0xff]
        %v1983 = vld [vmem:[#allocation3 + $0x8] sm:$0xff]
        %v1984 = vld [vmem:[#allocation3 + $0x10] sm:$0xff]
        %v1985 = vld [vmem:[#allocation3 + $0x18] sm:$0xf]
        %v1986 = vld [vmem:[%s5] sm:$0xff]
        %v1987 = vld [vmem:[%s5 + $0x8] sm:$0xff]
        %v1988 = vld [vmem:[%s5 + $0x10] sm:$0xff]
        %v1989 = vld [vmem:[%s5 + $0x18] sm:$0xff]
        %v1990 = vld [vmem:[%s5 + $0x20] sm:$0xff]
        %v1991 = vld [vmem:[%s5 + $0x28] sm:$0xff]
        %v1992 = vld [vmem:[%s5 + $0x30] sm:$0xff]
        %v1993 = vld [vmem:[%s5 + $0x38] sm:$0xff]
        %v1994 = vld [vmem:[%s5 + $0x40] sm:$0xff]
        %v1995 = vld [vmem:[%s5 + $0x48] sm:$0xff]
        %v1996 = vld [vmem:[%s5 + $0x50] sm:$0xff]
        %v1997 = vld [vmem:[%s5 + $0x58] sm:$0xff]
        %v1998 = vld [vmem:[%s5 + $0x60] sm:$0xff]
        %v1999 = vld [vmem:[%s5 + $0x68] sm:$0xff]
        %v2000 = vld [vmem:[%s5 + $0x70] sm:$0xff]
        %v2001 = vld [vmem:[%s5 + $0x78] sm:$0xff]
        %v2002 = vld [vmem:[%s5 + $0x80] sm:$0xff]
        %v2003 = vld [vmem:[%s5 + $0x88] sm:$0xff]
        %v2004 = vld [vmem:[%s5 + $0x90] sm:$0xff]
        %v2005 = vld [vmem:[%s5 + $0x98] sm:$0xff]
        %v2006 = vld [vmem:[%s5 + $0xa0] sm:$0xf]
        %v2007 = vld [vmem:[%s5 + $0xa8] sm:$0xf]
        %v2008 = vld [vmem:[#allocation3 + $0x1] sm:$0xff]
        %v2009 = vld [vmem:[#allocation3 + $0x9] sm:$0xff]
        %v2010 = vld [vmem:[#allocation3 + $0x11] sm:$0xff]
        %v2011 = vld [vmem:[#allocation3 + $0x19] sm:$0xf]
        %s2012 = scalar_lea.vmem %s5, 176
        %v2013 = vld [vmem:[%s2012] sm:$0xff]
        %v2014 = vld [vmem:[%s2012 + $0x8] sm:$0xff]
        %v2015 = vld [vmem:[%s2012 + $0x10] sm:$0xff]
        %v2016 = vld [vmem:[%s2012 + $0x18] sm:$0xff]
        %v2017 = vld [vmem:[%s2012 + $0x20] sm:$0xff]
        %v2018 = vld [vmem:[%s2012 + $0x28] sm:$0xff]
        %v2019 = vld [vmem:[%s2012 + $0x30] sm:$0xff]
        %v2020 = vld [vmem:[%s2012 + $0x38] sm:$0xff]
        %v2021 = vld [vmem:[%s2012 + $0x40] sm:$0xff]
        %v2022 = vld [vmem:[%s2012 + $0x48] sm:$0xff]
        %v2023 = vld [vmem:[%s2012 + $0x50] sm:$0xff]
        %v2024 = vld [vmem:[%s2012 + $0x58] sm:$0xff]
        %v2025 = vld [vmem:[%s2012 + $0x60] sm:$0xff]
        %v2026 = vld [vmem:[%s2012 + $0x68] sm:$0xff]
        %v2027 = vld [vmem:[%s2012 + $0x70] sm:$0xff]
        %v2028 = vld [vmem:[%s2012 + $0x78] sm:$0xff]
        %v2029 = vld [vmem:[%s2012 + $0x80] sm:$0xff]
        %v2030 = vld [vmem:[%s2012 + $0x88] sm:$0xff]
        %v2031 = vld [vmem:[%s2012 + $0x90] sm:$0xff]
        %v2032 = vld [vmem:[%s2012 + $0x98] sm:$0xff]
        %v2033 = vld [vmem:[%s2012 + $0xa0] sm:$0xf]
        %v2034 = vld [vmem:[%s2012 + $0xa8] sm:$0xf]
        %v2036 = vsel %vm1975, %v2008, 0
        %v2039 = vsel %vm1975, %v2009, 0
        %v2042 = vsel %vm1975, %v2010, 0
        %v2045 = vsel %vm1975, %v2011, 0
        %vm2047 = vcmask 1043456
        %v2049 = vsel %vm2047, %v2033, 0
        %v2052 = vsel %vm2047, %v2034, 0
        %2054 = vmatprep.subr.mxu0 %v2014
        %2055 = vmatpush1.msra.mxu0 %v2013
        %2056 = vmatprep.subr.mxu0 %v2016
        %2057 = vmatpush1.msra.mxu0 %v2015
        %2058 = vmatprep.subr.mxu0 %v2018
        %2059 = vmatpush1.msra.mxu0 %v2017
        %2060 = vmatprep.subr.mxu0 %v2020
        %2061 = vmatpush1.msra.mxu0 %v2019
        %2062 = vmatprep.subr.mxu0 %v2022
        %2063 = vmatpush1.msra.mxu0 %v2021
        %2064 = vmatprep.subr.mxu0 %v2024
        %2065 = vmatpush1.msra.mxu0 %v2023
        %2066 = vmatprep.subr.mxu0 %v2026
        %2067 = vmatpush1.msra.mxu0 %v2025
        %2068 = vmatprep.subr.mxu0 %v2028
        %2069 = vmatpush1.msra.mxu0 %v2027
        %2070 = vmatprep.subr.mxu0 %v2030
        %2071 = vmatpush1.msra.mxu0 %v2029
        %2072 = vmatprep.subr.mxu0 %v2032
        %2073 = vmatpush1.msra.mxu0 %v2031
        %2074 = vmatprep.subr.mxu0 %v2052
        %2075 = vmatpush1.msra.mxu0 %v2049
        %2076 = vmatprep.subr.mxu0 0.0
        %2077 = vmatpush1.msra.mxu0 0.0
        %2078 = vmatprep.subr.mxu0 0.0
        %2079 = vmatpush1.msra.mxu0 0.0
        %2080 = vmatprep.subr.mxu0 0.0
        %2081 = vmatpush1.msra.mxu0 0.0
        %2082 = vmatprep.subr.mxu0 0.0
        %2083 = vmatpush1.msra.mxu0 0.0
        %2084 = vmatprep.subr.mxu0 0.0
        %2085 = vmatpush1.msra.mxu0 0.0
        %2086 = vmatprep.subr.mxu0 0.0
        %2087 = vmatpush1.msra.mxu0 0.0
        %2088 = vmatprep.subr.mxu0 0.0
        %2089 = vmatpush1.msra.mxu0 0.0
        %2090 = vmatprep.subr.mxu0 0.0
        %2091 = vmatpush1.msra.mxu0 0.0
        %2092 = vmatprep.subr.mxu0 0.0
        %2093 = vmatpush1.msra.mxu0 0.0
        %2094 = vmatprep.subr.mxu0 0.0
        %2095 = vmatpush1.msra.mxu0 0.0
        %2096 = vmatprep.subr.mxu0 0.0
        %2097 = vmatpush1.msra.mxu0 0.0
        %2098 = vmatprep.subr.mxu0 0.0
        %2099 = vmatpush1.msra.mxu0 0.0
        %2100 = vmatprep.subr.mxu0 0.0
        %2101 = vmatpush1.msra.mxu0 0.0
        %2102 = vmatprep.subr.mxu0 0.0
        %2103 = vmatpush1.msra.mxu0 0.0
        %2104 = vmatprep.subr.mxu0 0.0
        %2105 = vmatpush1.msra.mxu0 0.0
        %2106 = vmatprep.subr.mxu0 0.0
        %2107 = vmatpush1.msra.mxu0 0.0
        %2108 = vmatprep.subr.mxu0 0.0
        %2109 = vmatpush1.msra.mxu0 0.0
        %2110 = vmatprep.subr.mxu0 0.0
        %2111 = vmatpush1.msra.mxu0 0.0
        %2112 = vmatprep.subr.mxu0 0.0
        %2113 = vmatpush1.msra.mxu0 0.0
        %2114 = vmatprep.subr.mxu0 0.0
        %2115 = vmatpush1.msra.mxu0 0.0
        %2116 = vmatprep.subr.mxu0 0.0
        %2117 = vmatpush1.msra.mxu0 0.0
        %2118 = vmatprep.mubr.f32.mxu0 0.0
        %2119 = vmatmul.mubr.f32.gmra.mrb[0].mxu0 %v2036
        %v2120 = vpop.f32.mrb[0].mxu0
        %v2121 = vadd.f32 0.0, %v2120
        %v2122 = vpop.f32.mrb[0].mxu0
        %v2123 = vadd.f32 0.0, %v2122
        %2124 = vmatprep.mubr.f32.mxu0 0.0
        %2125 = vmatmul.mubr.f32.gmra.mrb[0].mxu0 %v2039
        %v2126 = vpop.f32.mrb[0].mxu0
        %v2127 = vadd.f32 0.0, %v2126
        %v2128 = vpop.f32.mrb[0].mxu0
        %v2129 = vadd.f32 0.0, %v2128
        %2130 = vmatprep.mubr.f32.mxu0 0.0
        %2131 = vmatmul.mubr.f32.gmra.mrb[0].mxu0 %v2042
        %v2132 = vpop.f32.mrb[0].mxu0
        %v2133 = vadd.f32 0.0, %v2132
        %v2134 = vpop.f32.mrb[0].mxu0
        %v2135 = vadd.f32 0.0, %v2134
        %2136 = vmatprep.mubr.f32.mxu0 0.0
        %2137 = vmatmul.mubr.f32.gmra.mrb[0].mxu0 %v2045
        %v2138 = vpop.f32.mrb[0].mxu0
        %v2139 = vadd.f32 0.0, %v2138
        %v2140 = vpop.f32.mrb[0].mxu0
        %v2141 = vadd.f32 0.0, %v2140
        %2142 = vdwg.mxu0
        %v2144 = vsel %vm1975, %v1982, 0
        %v2147 = vsel %vm1975, %v1983, 0
        %v2150 = vsel %vm1975, %v1984, 0
        %v2153 = vsel %vm1975, %v1985, 0
        %v2156 = vsel %vm2047, %v2006, 0
        %v2159 = vsel %vm2047, %v2007, 0
        %2161 = vmatprep.subr.mxu0 %v1987
        %2162 = vmatpush1.msra.mxu0 %v1986
        %2163 = vmatprep.subr.mxu0 %v1989
        %2164 = vmatpush1.msra.mxu0 %v1988
        %2165 = vmatprep.subr.mxu0 %v1991
        %2166 = vmatpush1.msra.mxu0 %v1990
        %2167 = vmatprep.subr.mxu0 %v1993
        %2168 = vmatpush1.msra.mxu0 %v1992
        %2169 = vmatprep.subr.mxu0 %v1995
        %2170 = vmatpush1.msra.mxu0 %v1994
        %2171 = vmatprep.subr.mxu0 %v1997
        %2172 = vmatpush1.msra.mxu0 %v1996
        %2173 = vmatprep.subr.mxu0 %v1999
        %2174 = vmatpush1.msra.mxu0 %v1998
        %2175 = vmatprep.subr.mxu0 %v2001
        %2176 = vmatpush1.msra.mxu0 %v2000
        %2177 = vmatprep.subr.mxu0 %v2003
        %2178 = vmatpush1.msra.mxu0 %v2002
        %2179 = vmatprep.subr.mxu0 %v2005
        %2180 = vmatpush1.msra.mxu0 %v2004
        %2181 = vmatprep.subr.mxu0 %v2159
        %2182 = vmatpush1.msra.mxu0 %v2156
        %2183 = vmatprep.subr.mxu0 0.0
        %2184 = vmatpush1.msra.mxu0 0.0
        %2185 = vmatprep.subr.mxu0 0.0
        %2186 = vmatpush1.msra.mxu0 0.0
        %2187 = vmatprep.subr.mxu0 0.0
        %2188 = vmatpush1.msra.mxu0 0.0
        %2189 = vmatprep.subr.mxu0 0.0
        %2190 = vmatpush1.msra.mxu0 0.0
        %2191 = vmatprep.subr.mxu0 0.0
        %2192 = vmatpush1.msra.mxu0 0.0
        %2193 = vmatprep.subr.mxu0 0.0
        %2194 = vmatpush1.msra.mxu0 0.0
        %2195 = vmatprep.subr.mxu0 0.0
        %2196 = vmatpush1.msra.mxu0 0.0
        %2197 = vmatprep.subr.mxu0 0.0
        %2198 = vmatpush1.msra.mxu0 0.0
        %2199 = vmatprep.subr.mxu0 0.0
        %2200 = vmatpush1.msra.mxu0 0.0
        %2201 = vmatprep.subr.mxu0 0.0
        %2202 = vmatpush1.msra.mxu0 0.0
        %2203 = vmatprep.subr.mxu0 0.0
        %2204 = vmatpush1.msra.mxu0 0.0
        %2205 = vmatprep.subr.mxu0 0.0
        %2206 = vmatpush1.msra.mxu0 0.0
        %2207 = vmatprep.subr.mxu0 0.0
        %2208 = vmatpush1.msra.mxu0 0.0
        %2209 = vmatprep.subr.mxu0 0.0
        %2210 = vmatpush1.msra.mxu0 0.0
        %2211 = vmatprep.subr.mxu0 0.0
        %2212 = vmatpush1.msra.mxu0 0.0
        %2213 = vmatprep.subr.mxu0 0.0
        %2214 = vmatpush1.msra.mxu0 0.0
        %2215 = vmatprep.subr.mxu0 0.0
        %2216 = vmatpush1.msra.mxu0 0.0
        %2217 = vmatprep.subr.mxu0 0.0
        %2218 = vmatpush1.msra.mxu0 0.0
        %2219 = vmatprep.subr.mxu0 0.0
        %2220 = vmatpush1.msra.mxu0 0.0
        %2221 = vmatprep.subr.mxu0 0.0
        %2222 = vmatpush1.msra.mxu0 0.0
        %2223 = vmatprep.subr.mxu0 0.0
        %2224 = vmatpush1.msra.mxu0 0.0
        %2225 = vmatprep.mubr.f32.mxu0 0.0
        %2226 = vmatmul.mubr.f32.gmra.mrb[0].mxu0 %v2144
        %v2227 = vpop.f32.mrb[0].mxu0
        %v2228 = vadd.f32 %v2121, %v2227
        %v2229 = vpop.f32.mrb[0].mxu0
        %v2230 = vadd.f32 %v2123, %v2229
        %2231 = vmatprep.mubr.f32.mxu0 0.0
        %2232 = vmatmul.mubr.f32.gmra.mrb[0].mxu0 %v2147
        %v2233 = vpop.f32.mrb[0].mxu0
        %v2234 = vadd.f32 %v2127, %v2233
        %v2235 = vpop.f32.mrb[0].mxu0
        %v2236 = vadd.f32 %v2129, %v2235
        %2237 = vmatprep.mubr.f32.mxu0 0.0
        %2238 = vmatmul.mubr.f32.gmra.mrb[0].mxu0 %v2150
        %v2239 = vpop.f32.mrb[0].mxu0
        %v2240 = vadd.f32 %v2133, %v2239
        %v2241 = vpop.f32.mrb[0].mxu0
        %v2242 = vadd.f32 %v2135, %v2241
        %2243 = vmatprep.mubr.f32.mxu0 0.0
        %2244 = vmatmul.mubr.f32.gmra.mrb[0].mxu0 %v2153
        %v2245 = vpop.f32.mrb[0].mxu0
        %v2246 = vadd.f32 %v2139, %v2245
        %v2247 = vpop.f32.mrb[0].mxu0
        %v2248 = vadd.f32 %v2141, %v2247
        %2249 = vdwg.mxu0
        %v2250 = vld [vmem:[#allocation3 + $0x2] sm:$0xff]
        %v2251 = vld [vmem:[#allocation3 + $0xa] sm:$0xff]
        %v2252 = vld [vmem:[#allocation3 + $0x12] sm:$0xff]
        %v2253 = vld [vmem:[#allocation3 + $0x1a] sm:$0xf]
        %s2254 = scalar_lea.vmem %s5, 352
        %v2255 = vld [vmem:[%s2254] sm:$0xff]
        %v2256 = vld [vmem:[%s2254 + $0x8] sm:$0xff]
        %v2257 = vld [vmem:[%s2254 + $0x10] sm:$0xff]
        %v2258 = vld [vmem:[%s2254 + $0x18] sm:$0xff]
        %v2259 = vld [vmem:[%s2254 + $0x20] sm:$0xff]
        %v2260 = vld [vmem:[%s2254 + $0x28] sm:$0xff]
        %v2261 = vld [vmem:[%s2254 + $0x30] sm:$0xff]
        %v2262 = vld [vmem:[%s2254 + $0x38] sm:$0xff]
        %v2263 = vld [vmem:[%s2254 + $0x40] sm:$0xff]
        %v2264 = vld [vmem:[%s2254 + $0x48] sm:$0xff]
        %v2265 = vld [vmem:[%s2254 + $0x50] sm:$0xff]
        %v2266 = vld [vmem:[%s2254 + $0x58] sm:$0xff]
        %v2267 = vld [vmem:[%s2254 + $0x60] sm:$0xff]
        %v2268 = vld [vmem:[%s2254 + $0x68] sm:$0xff]
        %v2269 = vld [vmem:[%s2254 + $0x70] sm:$0xff]
        %v2270 = vld [vmem:[%s2254 + $0x78] sm:$0xff]
        %v2271 = vld [vmem:[%s2254 + $0x80] sm:$0xff]
        %v2272 = vld [vmem:[%s2254 + $0x88] sm:$0xff]
        %v2273 = vld [vmem:[%s2254 + $0x90] sm:$0xff]
        %v2274 = vld [vmem:[%s2254 + $0x98] sm:$0xff]
        %v2275 = vld [vmem:[%s2254 + $0xa0] sm:$0xf]
        %v2276 = vld [vmem:[%s2254 + $0xa8] sm:$0xf]
        %v2278 = vsel %vm1975, %v2250, 0
        %v2281 = vsel %vm1975, %v2251, 0
        %v2284 = vsel %vm1975, %v2252, 0
        %v2287 = vsel %vm1975, %v2253, 0
        %v2290 = vsel %vm2047, %v2275, 0
        %v2293 = vsel %vm2047, %v2276, 0
        %2295 = vmatprep.subr.mxu0 %v2256
        %2296 = vmatpush1.msra.mxu0 %v2255
        %2297 = vmatprep.subr.mxu0 %v2258
        %2298 = vmatpush1.msra.mxu0 %v2257
        %2299 = vmatprep.subr.mxu0 %v2260
        %2300 = vmatpush1.msra.mxu0 %v2259
        %2301 = vmatprep.subr.mxu0 %v2262
        %2302 = vmatpush1.msra.mxu0 %v2261
        %2303 = vmatprep.subr.mxu0 %v2264
        %2304 = vmatpush1.msra.mxu0 %v2263
        %2305 = vmatprep.subr.mxu0 %v2266
        %2306 = vmatpush1.msra.mxu0 %v2265
        %2307 = vmatprep.subr.mxu0 %v2268
        %2308 = vmatpush1.msra.mxu0 %v2267
        %2309 = vmatprep.subr.mxu0 %v2270
        %2310 = vmatpush1.msra.mxu0 %v2269
        %2311 = vmatprep.subr.mxu0 %v2272
        %2312 = vmatpush1.msra.mxu0 %v2271
        %2313 = vmatprep.subr.mxu0 %v2274
        %2314 = vmatpush1.msra.mxu0 %v2273
        %2315 = vmatprep.subr.mxu0 %v2293
        %2316 = vmatpush1.msra.mxu0 %v2290
        %2317 = vmatprep.subr.mxu0 0.0
        %2318 = vmatpush1.msra.mxu0 0.0
        %2319 = vmatprep.subr.mxu0 0.0
        %2320 = vmatpush1.msra.mxu0 0.0
        %2321 = vmatprep.subr.mxu0 0.0
        %2322 = vmatpush1.msra.mxu0 0.0
        %2323 = vmatprep.subr.mxu0 0.0
        %2324 = vmatpush1.msra.mxu0 0.0
        %2325 = vmatprep.subr.mxu0 0.0
        %2326 = vmatpush1.msra.mxu0 0.0
        %2327 = vmatprep.subr.mxu0 0.0
        %2328 = vmatpush1.msra.mxu0 0.0
        %2329 = vmatprep.subr.mxu0 0.0
        %2330 = vmatpush1.msra.mxu0 0.0
        %2331 = vmatprep.subr.mxu0 0.0
        %2332 = vmatpush1.msra.mxu0 0.0
        %2333 = vmatprep.subr.mxu0 0.0
        %2334 = vmatpush1.msra.mxu0 0.0
        %2335 = vmatprep.subr.mxu0 0.0
        %2336 = vmatpush1.msra.mxu0 0.0
        %2337 = vmatprep.subr.mxu0 0.0
        %2338 = vmatpush1.msra.mxu0 0.0
        %2339 = vmatprep.subr.mxu0 0.0
        %2340 = vmatpush1.msra.mxu0 0.0
        %2341 = vmatprep.subr.mxu0 0.0
        %2342 = vmatpush1.msra.mxu0 0.0
        %2343 = vmatprep.subr.mxu0 0.0
        %2344 = vmatpush1.msra.mxu0 0.0
        %2345 = vmatprep.subr.mxu0 0.0
        %2346 = vmatpush1.msra.mxu0 0.0
        %2347 = vmatprep.subr.mxu0 0.0
        %2348 = vmatpush1.msra.mxu0 0.0
        %2349 = vmatprep.subr.mxu0 0.0
        %2350 = vmatpush1.msra.mxu0 0.0
        %2351 = vmatprep.subr.mxu0 0.0
        %2352 = vmatpush1.msra.mxu0 0.0
        %2353 = vmatprep.subr.mxu0 0.0
        %2354 = vmatpush1.msra.mxu0 0.0
        %2355 = vmatprep.subr.mxu0 0.0
        %2356 = vmatpush1.msra.mxu0 0.0
        %2357 = vmatprep.subr.mxu0 0.0
        %2358 = vmatpush1.msra.mxu0 0.0
        %2359 = vmatprep.mubr.f32.mxu0 0.0
        %2360 = vmatmul.mubr.f32.gmra.mrb[0].mxu0 %v2278
        %v2361 = vpop.f32.mrb[0].mxu0
        %v2362 = vadd.f32 0.0, %v2361
        %v2363 = vpop.f32.mrb[0].mxu0
        %v2364 = vadd.f32 0.0, %v2363
        %2365 = vmatprep.mubr.f32.mxu0 0.0
        %2366 = vmatmul.mubr.f32.gmra.mrb[0].mxu0 %v2281
        %v2367 = vpop.f32.mrb[0].mxu0
        %v2368 = vadd.f32 0.0, %v2367
        %v2369 = vpop.f32.mrb[0].mxu0
        %v2370 = vadd.f32 0.0, %v2369
        %2371 = vmatprep.mubr.f32.mxu0 0.0
        %2372 = vmatmul.mubr.f32.gmra.mrb[0].mxu0 %v2284
        %v2373 = vpop.f32.mrb[0].mxu0
        %v2374 = vadd.f32 0.0, %v2373
        %v2375 = vpop.f32.mrb[0].mxu0
        %v2376 = vadd.f32 0.0, %v2375
        %2377 = vmatprep.mubr.f32.mxu0 0.0
        %2378 = vmatmul.mubr.f32.gmra.mrb[0].mxu0 %v2287
        %v2379 = vpop.f32.mrb[0].mxu0
        %v2380 = vadd.f32 0.0, %v2379
        %v2381 = vpop.f32.mrb[0].mxu0
        %v2382 = vadd.f32 0.0, %v2381
        %2383 = vdwg.mxu0
        %v2384 = vadd.f32 %v2228, %v2362
        %v2385 = vadd.f32 %v2230, %v2364
        %v2386 = vadd.f32 %v2234, %v2368
        %v2387 = vadd.f32 %v2236, %v2370
        %v2388 = vadd.f32 %v2240, %v2374
        %v2389 = vadd.f32 %v2242, %v2376
        %v2390 = vadd.f32 %v2246, %v2380
        %v2391 = vadd.f32 %v2248, %v2382
        %v2392 = vld [vmem:[#allocation3 + $0x3] sm:$0xff]
        %v2393 = vld [vmem:[#allocation3 + $0xb] sm:$0xff]
        %v2394 = vld [vmem:[#allocation3 + $0x13] sm:$0xff]
        %v2395 = vld [vmem:[#allocation3 + $0x1b] sm:$0xf]
        %s2396 = scalar_lea.vmem %s5, 528
        %v2397 = vld [vmem:[%s2396] sm:$0xff]
        %v2398 = vld [vmem:[%s2396 + $0x8] sm:$0xff]
        %v2399 = vld [vmem:[%s2396 + $0x10] sm:$0xff]
        %v2400 = vld [vmem:[%s2396 + $0x18] sm:$0xff]
        %v2401 = vld [vmem:[%s2396 + $0x20] sm:$0xff]
        %v2402 = vld [vmem:[%s2396 + $0x28] sm:$0xff]
        %v2403 = vld [vmem:[%s2396 + $0x30] sm:$0xff]
        %v2404 = vld [vmem:[%s2396 + $0x38] sm:$0xff]
        %v2405 = vld [vmem:[%s2396 + $0x40] sm:$0xff]
        %v2406 = vld [vmem:[%s2396 + $0x48] sm:$0xff]
        %v2407 = vld [vmem:[%s2396 + $0x50] sm:$0xff]
        %v2408 = vld [vmem:[%s2396 + $0x58] sm:$0xff]
        %v2409 = vld [vmem:[%s2396 + $0x60] sm:$0xff]
        %v2410 = vld [vmem:[%s2396 + $0x68] sm:$0xff]
        %v2411 = vld [vmem:[%s2396 + $0x70] sm:$0xff]
        %v2412 = vld [vmem:[%s2396 + $0x78] sm:$0xff]
        %v2413 = vld [vmem:[%s2396 + $0x80] sm:$0xff]
        %v2414 = vld [vmem:[%s2396 + $0x88] sm:$0xff]
        %v2415 = vld [vmem:[%s2396 + $0x90] sm:$0xff]
        %v2416 = vld [vmem:[%s2396 + $0x98] sm:$0xff]
        %v2417 = vld [vmem:[%s2396 + $0xa0] sm:$0xf]
        %v2418 = vld [vmem:[%s2396 + $0xa8] sm:$0xf]
        %v2420 = vsel %vm1975, %v2392, 0
        %v2423 = vsel %vm1975, %v2393, 0
        %v2426 = vsel %vm1975, %v2394, 0
        %v2429 = vsel %vm1975, %v2395, 0
        %v2432 = vsel %vm2047, %v2417, 0
        %v2435 = vsel %vm2047, %v2418, 0
        %2437 = vmatprep.subr.mxu0 %v2398
        %2438 = vmatpush1.msra.mxu0 %v2397
        %2439 = vmatprep.subr.mxu0 %v2400
        %2440 = vmatpush1.msra.mxu0 %v2399
        %2441 = vmatprep.subr.mxu0 %v2402
        %2442 = vmatpush1.msra.mxu0 %v2401
        %2443 = vmatprep.subr.mxu0 %v2404
        %2444 = vmatpush1.msra.mxu0 %v2403
        %2445 = vmatprep.subr.mxu0 %v2406
        %2446 = vmatpush1.msra.mxu0 %v2405
        %2447 = vmatprep.subr.mxu0 %v2408
        %2448 = vmatpush1.msra.mxu0 %v2407
        %2449 = vmatprep.subr.mxu0 %v2410
        %2450 = vmatpush1.msra.mxu0 %v2409
        %2451 = vmatprep.subr.mxu0 %v2412
        %2452 = vmatpush1.msra.mxu0 %v2411
        %2453 = vmatprep.subr.mxu0 %v2414
        %2454 = vmatpush1.msra.mxu0 %v2413
        %2455 = vmatprep.subr.mxu0 %v2416
        %2456 = vmatpush1.msra.mxu0 %v2415
        %2457 = vmatprep.subr.mxu0 %v2435
        %2458 = vmatpush1.msra.mxu0 %v2432
        %2459 = vmatprep.subr.mxu0 0.0
        %2460 = vmatpush1.msra.mxu0 0.0
        %2461 = vmatprep.subr.mxu0 0.0
        %2462 = vmatpush1.msra.mxu0 0.0
        %2463 = vmatprep.subr.mxu0 0.0
        %2464 = vmatpush1.msra.mxu0 0.0
        %2465 = vmatprep.subr.mxu0 0.0
        %2466 = vmatpush1.msra.mxu0 0.0
        %2467 = vmatprep.subr.mxu0 0.0
        %2468 = vmatpush1.msra.mxu0 0.0
        %2469 = vmatprep.subr.mxu0 0.0
        %2470 = vmatpush1.msra.mxu0 0.0
        %2471 = vmatprep.subr.mxu0 0.0
        %2472 = vmatpush1.msra.mxu0 0.0
        %2473 = vmatprep.subr.mxu0 0.0
        %2474 = vmatpush1.msra.mxu0 0.0
        %2475 = vmatprep.subr.mxu0 0.0
        %2476 = vmatpush1.msra.mxu0 0.0
        %2477 = vmatprep.subr.mxu0 0.0
        %2478 = vmatpush1.msra.mxu0 0.0
        %2479 = vmatprep.subr.mxu0 0.0
        %2480 = vmatpush1.msra.mxu0 0.0
        %2481 = vmatprep.subr.mxu0 0.0
        %2482 = vmatpush1.msra.mxu0 0.0
        %2483 = vmatprep.subr.mxu0 0.0
        %2484 = vmatpush1.msra.mxu0 0.0
        %2485 = vmatprep.subr.mxu0 0.0
        %2486 = vmatpush1.msra.mxu0 0.0
        %2487 = vmatprep.subr.mxu0 0.0
        %2488 = vmatpush1.msra.mxu0 0.0
        %2489 = vmatprep.subr.mxu0 0.0
        %2490 = vmatpush1.msra.mxu0 0.0
        %2491 = vmatprep.subr.mxu0 0.0
        %2492 = vmatpush1.msra.mxu0 0.0
        %2493 = vmatprep.subr.mxu0 0.0
        %2494 = vmatpush1.msra.mxu0 0.0
        %2495 = vmatprep.subr.mxu0 0.0
        %2496 = vmatpush1.msra.mxu0 0.0
        %2497 = vmatprep.subr.mxu0 0.0
        %2498 = vmatpush1.msra.mxu0 0.0
        %2499 = vmatprep.subr.mxu0 0.0
        %2500 = vmatpush1.msra.mxu0 0.0
        %2501 = vmatprep.mubr.f32.mxu0 0.0
        %2502 = vmatmul.mubr.f32.gmra.mrb[0].mxu0 %v2420
        %v2503 = vpop.f32.mrb[0].mxu0
        %v2504 = vadd.f32 0.0, %v2503
        %v2505 = vpop.f32.mrb[0].mxu0
        %v2506 = vadd.f32 0.0, %v2505
        %2507 = vmatprep.mubr.f32.mxu0 0.0
        %2508 = vmatmul.mubr.f32.gmra.mrb[0].mxu0 %v2423
        %v2509 = vpop.f32.mrb[0].mxu0
        %v2510 = vadd.f32 0.0, %v2509
        %v2511 = vpop.f32.mrb[0].mxu0
        %v2512 = vadd.f32 0.0, %v2511
        %2513 = vmatprep.mubr.f32.mxu0 0.0
        %2514 = vmatmul.mubr.f32.gmra.mrb[0].mxu0 %v2426
        %v2515 = vpop.f32.mrb[0].mxu0
        %v2516 = vadd.f32 0.0, %v2515
        %v2517 = vpop.f32.mrb[0].mxu0
        %v2518 = vadd.f32 0.0, %v2517
        %2519 = vmatprep.mubr.f32.mxu0 0.0
        %2520 = vmatmul.mubr.f32.gmra.mrb[0].mxu0 %v2429
        %v2521 = vpop.f32.mrb[0].mxu0
        %v2522 = vadd.f32 0.0, %v2521
        %v2523 = vpop.f32.mrb[0].mxu0
        %v2524 = vadd.f32 0.0, %v2523
        %2525 = vdwg.mxu0
        %v2526 = vadd.f32 %v2384, %v2504
        %v2527 = vadd.f32 %v2385, %v2506
        %v2528 = vadd.f32 %v2386, %v2510
        %v2529 = vadd.f32 %v2387, %v2512
        %v2530 = vadd.f32 %v2388, %v2516
        %v2531 = vadd.f32 %v2389, %v2518
        %v2532 = vadd.f32 %v2390, %v2522
        %v2533 = vadd.f32 %v2391, %v2524
        %v2534 = vld [vmem:[#allocation3 + $0x4] sm:$0xff]
        %v2535 = vld [vmem:[#allocation3 + $0xc] sm:$0xff]
        %v2536 = vld [vmem:[#allocation3 + $0x14] sm:$0xff]
        %v2537 = vld [vmem:[#allocation3 + $0x1c] sm:$0xf]
        %s2538 = scalar_lea.vmem %s5, 704
        %v2539 = vld [vmem:[%s2538] sm:$0xff]
        %v2540 = vld [vmem:[%s2538 + $0x8] sm:$0xff]
        %v2541 = vld [vmem:[%s2538 + $0x10] sm:$0xff]
        %v2542 = vld [vmem:[%s2538 + $0x18] sm:$0xff]
        %v2543 = vld [vmem:[%s2538 + $0x20] sm:$0xff]
        %v2544 = vld [vmem:[%s2538 + $0x28] sm:$0xff]
        %v2545 = vld [vmem:[%s2538 + $0x30] sm:$0xff]
        %v2546 = vld [vmem:[%s2538 + $0x38] sm:$0xff]
        %v2547 = vld [vmem:[%s2538 + $0x40] sm:$0xff]
        %v2548 = vld [vmem:[%s2538 + $0x48] sm:$0xff]
        %v2549 = vld [vmem:[%s2538 + $0x50] sm:$0xff]
        %v2550 = vld [vmem:[%s2538 + $0x58] sm:$0xff]
        %v2551 = vld [vmem:[%s2538 + $0x60] sm:$0xff]
        %v2552 = vld [vmem:[%s2538 + $0x68] sm:$0xff]
        %v2553 = vld [vmem:[%s2538 + $0x70] sm:$0xff]
        %v2554 = vld [vmem:[%s2538 + $0x78] sm:$0xff]
        %v2555 = vld [vmem:[%s2538 + $0x80] sm:$0xff]
        %v2556 = vld [vmem:[%s2538 + $0x88] sm:$0xff]
        %v2557 = vld [vmem:[%s2538 + $0x90] sm:$0xff]
        %v2558 = vld [vmem:[%s2538 + $0x98] sm:$0xff]
        %v2559 = vld [vmem:[%s2538 + $0xa0] sm:$0xf]
        %v2560 = vld [vmem:[%s2538 + $0xa8] sm:$0xf]
        %v2562 = vsel %vm1975, %v2534, 0
        %v2565 = vsel %vm1975, %v2535, 0
        %v2568 = vsel %vm1975, %v2536, 0
        %v2571 = vsel %vm1975, %v2537, 0
        %v2574 = vsel %vm2047, %v2559, 0
        %v2577 = vsel %vm2047, %v2560, 0
        %2579 = vmatprep.subr.mxu0 %v2540
        %2580 = vmatpush1.msra.mxu0 %v2539
        %2581 = vmatprep.subr.mxu0 %v2542
        %2582 = vmatpush1.msra.mxu0 %v2541
        %2583 = vmatprep.subr.mxu0 %v2544
        %2584 = vmatpush1.msra.mxu0 %v2543
        %2585 = vmatprep.subr.mxu0 %v2546
        %2586 = vmatpush1.msra.mxu0 %v2545
        %2587 = vmatprep.subr.mxu0 %v2548
        %2588 = vmatpush1.msra.mxu0 %v2547
        %2589 = vmatprep.subr.mxu0 %v2550
        %2590 = vmatpush1.msra.mxu0 %v2549
        %2591 = vmatprep.subr.mxu0 %v2552
        %2592 = vmatpush1.msra.mxu0 %v2551
        %2593 = vmatprep.subr.mxu0 %v2554
        %2594 = vmatpush1.msra.mxu0 %v2553
        %2595 = vmatprep.subr.mxu0 %v2556
        %2596 = vmatpush1.msra.mxu0 %v2555
        %2597 = vmatprep.subr.mxu0 %v2558
        %2598 = vmatpush1.msra.mxu0 %v2557
        %2599 = vmatprep.subr.mxu0 %v2577
        %2600 = vmatpush1.msra.mxu0 %v2574
        %2601 = vmatprep.subr.mxu0 0.0
        %2602 = vmatpush1.msra.mxu0 0.0
        %2603 = vmatprep.subr.mxu0 0.0
        %2604 = vmatpush1.msra.mxu0 0.0
        %2605 = vmatprep.subr.mxu0 0.0
        %2606 = vmatpush1.msra.mxu0 0.0
        %2607 = vmatprep.subr.mxu0 0.0
        %2608 = vmatpush1.msra.mxu0 0.0
        %2609 = vmatprep.subr.mxu0 0.0
        %2610 = vmatpush1.msra.mxu0 0.0
        %2611 = vmatprep.subr.mxu0 0.0
        %2612 = vmatpush1.msra.mxu0 0.0
        %2613 = vmatprep.subr.mxu0 0.0
        %2614 = vmatpush1.msra.mxu0 0.0
        %2615 = vmatprep.subr.mxu0 0.0
        %2616 = vmatpush1.msra.mxu0 0.0
        %2617 = vmatprep.subr.mxu0 0.0
        %2618 = vmatpush1.msra.mxu0 0.0
        %2619 = vmatprep.subr.mxu0 0.0
        %2620 = vmatpush1.msra.mxu0 0.0
        %2621 = vmatprep.subr.mxu0 0.0
        %2622 = vmatpush1.msra.mxu0 0.0
        %2623 = vmatprep.subr.mxu0 0.0
        %2624 = vmatpush1.msra.mxu0 0.0
        %2625 = vmatprep.subr.mxu0 0.0
        %2626 = vmatpush1.msra.mxu0 0.0
        %2627 = vmatprep.subr.mxu0 0.0
        %2628 = vmatpush1.msra.mxu0 0.0
        %2629 = vmatprep.subr.mxu0 0.0
        %2630 = vmatpush1.msra.mxu0 0.0
        %2631 = vmatprep.subr.mxu0 0.0
        %2632 = vmatpush1.msra.mxu0 0.0
        %2633 = vmatprep.subr.mxu0 0.0
        %2634 = vmatpush1.msra.mxu0 0.0
        %2635 = vmatprep.subr.mxu0 0.0
        %2636 = vmatpush1.msra.mxu0 0.0
        %2637 = vmatprep.subr.mxu0 0.0
        %2638 = vmatpush1.msra.mxu0 0.0
        %2639 = vmatprep.subr.mxu0 0.0
        %2640 = vmatpush1.msra.mxu0 0.0
        %2641 = vmatprep.subr.mxu0 0.0
        %2642 = vmatpush1.msra.mxu0 0.0
        %2643 = vmatprep.mubr.f32.mxu0 0.0
        %2644 = vmatmul.mubr.f32.gmra.mrb[0].mxu0 %v2562
        %v2645 = vpop.f32.mrb[0].mxu0
        %v2646 = vadd.f32 0.0, %v2645
        %v2647 = vpop.f32.mrb[0].mxu0
        %v2648 = vadd.f32 0.0, %v2647
        %2649 = vmatprep.mubr.f32.mxu0 0.0
        %2650 = vmatmul.mubr.f32.gmra.mrb[0].mxu0 %v2565
        %v2651 = vpop.f32.mrb[0].mxu0
        %v2652 = vadd.f32 0.0, %v2651
        %v2653 = vpop.f32.mrb[0].mxu0
        %v2654 = vadd.f32 0.0, %v2653
        %2655 = vmatprep.mubr.f32.mxu0 0.0
        %2656 = vmatmul.mubr.f32.gmra.mrb[0].mxu0 %v2568
        %v2657 = vpop.f32.mrb[0].mxu0
        %v2658 = vadd.f32 0.0, %v2657
        %v2659 = vpop.f32.mrb[0].mxu0
        %v2660 = vadd.f32 0.0, %v2659
        %2661 = vmatprep.mubr.f32.mxu0 0.0
        %2662 = vmatmul.mubr.f32.gmra.mrb[0].mxu0 %v2571
        %v2663 = vpop.f32.mrb[0].mxu0
        %v2664 = vadd.f32 0.0, %v2663
        %v2665 = vpop.f32.mrb[0].mxu0
        %v2666 = vadd.f32 0.0, %v2665
        %2667 = vdwg.mxu0
        %v2668 = vadd.f32 %v2526, %v2646
        %v2669 = vadd.f32 %v2527, %v2648
        %v2670 = vadd.f32 %v2528, %v2652
        %v2671 = vadd.f32 %v2529, %v2654
        %v2672 = vadd.f32 %v2530, %v2658
        %v2673 = vadd.f32 %v2531, %v2660
        %v2674 = vadd.f32 %v2532, %v2664
        %v2675 = vadd.f32 %v2533, %v2666
        %v2676 = vld [vmem:[%s6] sm:$0x3]
        %v2678 = vlaneseq
        %v2679 = vshrl.u32 %v2678, 7
        %v2680 = vsub.s32 0, %v2679
        %v2681 = vrot.slane %v2676, %v2680
        %v2682 = vlaneseq
        %v2683 = vshrl.u32 %v2682, 7
        %v2684 = vsub.s32 1, %v2683
        %v2685 = vrot.slane %v2676, %v2684
        %v2688 = vadd.f32 %v2668, %v2681
        %v2689 = vadd.f32 %v2669, %v2685
        %v2690 = vadd.f32 %v2670, %v2681
        %v2691 = vadd.f32 %v2671, %v2685
        %v2692 = vadd.f32 %v2672, %v2681
        %v2693 = vadd.f32 %v2673, %v2685
        %v2694 = vadd.f32 %v2674, %v2681
        %v2695 = vadd.f32 %v2675, %v2685
        %v2696 = vmax.f32 %v2688, 0.0
        %v2697 = vmax.f32 %v2689, 0.0
        %v2698 = vmax.f32 %v2690, 0.0
        %v2699 = vmax.f32 %v2691, 0.0
        %v2700 = vmax.f32 %v2692, 0.0
        %v2701 = vmax.f32 %v2693, 0.0
        %v2702 = vmax.f32 %v2694, 0.0
        %v2703 = vmax.f32 %v2695, 0.0
        %v2704 = vld [vmem:[%s7] sm:$0xff]
        %v2705 = vld [vmem:[%s7 + $0x8] sm:$0xff]
        %v2706 = vld [vmem:[%s7 + $0x10] sm:$0xff]
        %v2707 = vld [vmem:[%s7 + $0x18] sm:$0xff]
        %v2708 = vld [vmem:[%s7 + $0x20] sm:$0xff]
        %v2709 = vld [vmem:[%s7 + $0x28] sm:$0xff]
        %v2710 = vld [vmem:[%s7 + $0x30] sm:$0xff]
        %v2711 = vld [vmem:[%s7 + $0x38] sm:$0xff]
        %v2712 = vld [vmem:[%s7 + $0x40] sm:$0xff]
        %v2713 = vld [vmem:[%s7 + $0x48] sm:$0xff]
        %v2714 = vld [vmem:[%s7 + $0x50] sm:$0xff]
        %v2715 = vld [vmem:[%s7 + $0x58] sm:$0xff]
        %v2716 = vld [vmem:[%s7 + $0x60] sm:$0xff]
        %v2717 = vld [vmem:[%s7 + $0x68] sm:$0xff]
        %v2718 = vld [vmem:[%s7 + $0x70] sm:$0xff]
        %v2719 = vld [vmem:[%s7 + $0x78] sm:$0xff]
        %v2720 = vld [vmem:[%s7 + $0x80] sm:$0xff]
        %v2721 = vld [vmem:[%s7 + $0x88] sm:$0xff]
        %v2722 = vld [vmem:[%s7 + $0x90] sm:$0xff]
        %v2723 = vld [vmem:[%s7 + $0x98] sm:$0xff]
        %vm2724 = vcmask 261120
        %v2726 = vsel %vm2724, %v2697, 0
        %v2729 = vsel %vm2724, %v2699, 0
        %v2732 = vsel %vm2724, %v2701, 0
        %v2735 = vsel %vm2724, %v2703, 0
        %2737 = vmatprep.subr.mxu0 0.0
        %2738 = vmatpush1.msra.mxu0 %v2704
        %2739 = vmatprep.subr.mxu0 0.0
        %2740 = vmatpush1.msra.mxu0 %v2705
        %2741 = vmatprep.subr.mxu0 0.0
        %2742 = vmatpush1.msra.mxu0 %v2706
        %2743 = vmatprep.subr.mxu0 0.0
        %2744 = vmatpush1.msra.mxu0 %v2707
        %2745 = vmatprep.subr.mxu0 0.0
        %2746 = vmatpush1.msra.mxu0 %v2708
        %2747 = vmatprep.subr.mxu0 0.0
        %2748 = vmatpush1.msra.mxu0 %v2709
        %2749 = vmatprep.subr.mxu0 0.0
        %2750 = vmatpush1.msra.mxu0 %v2710
        %2751 = vmatprep.subr.mxu0 0.0
        %2752 = vmatpush1.msra.mxu0 %v2711
        %2753 = vmatprep.subr.mxu0 0.0
        %2754 = vmatpush1.msra.mxu0 %v2712
        %2755 = vmatprep.subr.mxu0 0.0
        %2756 = vmatpush1.msra.mxu0 %v2713
        %2757 = vmatprep.subr.mxu0 0.0
        %2758 = vmatpush1.msra.mxu0 %v2714
        %2759 = vmatprep.subr.mxu0 0.0
        %2760 = vmatpush1.msra.mxu0 %v2715
        %2761 = vmatprep.subr.mxu0 0.0
        %2762 = vmatpush1.msra.mxu0 %v2716
        %2763 = vmatprep.subr.mxu0 0.0
        %2764 = vmatpush1.msra.mxu0 %v2717
        %2765 = vmatprep.subr.mxu0 0.0
        %2766 = vmatpush1.msra.mxu0 %v2718
        %2767 = vmatprep.subr.mxu0 0.0
        %2768 = vmatpush1.msra.mxu0 %v2719
        %2769 = vmatprep.subr.mxu0 0.0
        %2770 = vmatpush1.msra.mxu0 %v2720
        %2771 = vmatprep.subr.mxu0 0.0
        %2772 = vmatpush1.msra.mxu0 %v2721
        %2773 = vmatprep.subr.mxu0 0.0
        %2774 = vmatpush1.msra.mxu0 %v2722
        %2775 = vmatprep.subr.mxu0 0.0
        %2776 = vmatpush1.msra.mxu0 %v2723
        %2777 = vmatprep.subr.mxu0 0.0
        %2778 = vmatpush1.msra.mxu0 0.0
        %2779 = vmatprep.subr.mxu0 0.0
        %2780 = vmatpush1.msra.mxu0 0.0
        %2781 = vmatprep.subr.mxu0 0.0
        %2782 = vmatpush1.msra.mxu0 0.0
        %2783 = vmatprep.subr.mxu0 0.0
        %2784 = vmatpush1.msra.mxu0 0.0
        %2785 = vmatprep.subr.mxu0 0.0
        %2786 = vmatpush1.msra.mxu0 0.0
        %2787 = vmatprep.subr.mxu0 0.0
        %2788 = vmatpush1.msra.mxu0 0.0
        %2789 = vmatprep.subr.mxu0 0.0
        %2790 = vmatpush1.msra.mxu0 0.0
        %2791 = vmatprep.subr.mxu0 0.0
        %2792 = vmatpush1.msra.mxu0 0.0
        %2793 = vmatprep.subr.mxu0 0.0
        %2794 = vmatpush1.msra.mxu0 0.0
        %2795 = vmatprep.subr.mxu0 0.0
        %2796 = vmatpush1.msra.mxu0 0.0
        %2797 = vmatprep.subr.mxu0 0.0
        %2798 = vmatpush1.msra.mxu0 0.0
        %2799 = vmatprep.subr.mxu0 0.0
        %2800 = vmatpush1.msra.mxu0 0.0
        %2801 = vmatprep.mubr.f32.mxu0 %v2726
        %2802 = vmatmul.mubr.f32.gmra.mrb[0].mxu0 %v2696
        %v2803 = vpop.f32.mrb[0].mxu0
        %v2804 = vadd.f32 0.0, %v2803
        %v2805 = vpop.f32.mrb[0].mxu0
        %2806 = vmatprep.mubr.f32.mxu0 %v2729
        %2807 = vmatmul.mubr.f32.gmra.mrb[0].mxu0 %v2698
        %v2808 = vpop.f32.mrb[0].mxu0
        %v2809 = vadd.f32 0.0, %v2808
        %v2810 = vpop.f32.mrb[0].mxu0
        %2811 = vmatprep.mubr.f32.mxu0 %v2732
        %2812 = vmatmul.mubr.f32.gmra.mrb[0].mxu0 %v2700
        %v2813 = vpop.f32.mrb[0].mxu0
        %v2814 = vadd.f32 0.0, %v2813
        %v2815 = vpop.f32.mrb[0].mxu0
        %2816 = vmatprep.mubr.f32.mxu0 %v2735
        %2817 = vmatmul.mubr.f32.gmra.mrb[0].mxu0 %v2702
        %v2818 = vpop.f32.mrb[0].mxu0
        %v2819 = vadd.f32 0.0, %v2818
        %v2820 = vpop.f32.mrb[0].mxu0
        %2821 = vdwg.mxu0
        %s2822 = scalar_lea.vmem %s7, 160
        %v2823 = vld [vmem:[%s2822] sm:$0xff]
        %v2824 = vld [vmem:[%s2822 + $0x8] sm:$0xff]
        %v2825 = vld [vmem:[%s2822 + $0x10] sm:$0xff]
        %v2826 = vld [vmem:[%s2822 + $0x18] sm:$0xff]
        %v2827 = vld [vmem:[%s2822 + $0x20] sm:$0xff]
        %v2828 = vld [vmem:[%s2822 + $0x28] sm:$0xff]
        %v2829 = vld [vmem:[%s2822 + $0x30] sm:$0xff]
        %v2830 = vld [vmem:[%s2822 + $0x38] sm:$0xff]
        %v2831 = vld [vmem:[%s2822 + $0x40] sm:$0xff]
        %v2832 = vld [vmem:[%s2822 + $0x48] sm:$0xff]
        %v2833 = vld [vmem:[%s2822 + $0x50] sm:$0xff]
        %v2834 = vld [vmem:[%s2822 + $0x58] sm:$0xff]
        %v2835 = vld [vmem:[%s2822 + $0x60] sm:$0xff]
        %v2836 = vld [vmem:[%s2822 + $0x68] sm:$0xff]
        %v2837 = vld [vmem:[%s2822 + $0x70] sm:$0xff]
        %v2838 = vld [vmem:[%s2822 + $0x78] sm:$0xff]
        %v2839 = vld [vmem:[%s2822 + $0x80] sm:$0xff]
        %v2840 = vld [vmem:[%s2822 + $0x88] sm:$0xff]
        %v2841 = vld [vmem:[%s2822 + $0x90] sm:$0xff]
        %v2842 = vld [vmem:[%s2822 + $0x98] sm:$0xff]
        %2843 = vmatprep.subr.mxu0 0.0
        %2844 = vmatpush1.msra.mxu0 %v2823
        %2845 = vmatprep.subr.mxu0 0.0
        %2846 = vmatpush1.msra.mxu0 %v2824
        %2847 = vmatprep.subr.mxu0 0.0
        %2848 = vmatpush1.msra.mxu0 %v2825
        %2849 = vmatprep.subr.mxu0 0.0
        %2850 = vmatpush1.msra.mxu0 %v2826
        %2851 = vmatprep.subr.mxu0 0.0
        %2852 = vmatpush1.msra.mxu0 %v2827
        %2853 = vmatprep.subr.mxu0 0.0
        %2854 = vmatpush1.msra.mxu0 %v2828
        %2855 = vmatprep.subr.mxu0 0.0
        %2856 = vmatpush1.msra.mxu0 %v2829
        %2857 = vmatprep.subr.mxu0 0.0
        %2858 = vmatpush1.msra.mxu0 %v2830
        %2859 = vmatprep.subr.mxu0 0.0
        %2860 = vmatpush1.msra.mxu0 %v2831
        %2861 = vmatprep.subr.mxu0 0.0
        %2862 = vmatpush1.msra.mxu0 %v2832
        %2863 = vmatprep.subr.mxu0 0.0
        %2864 = vmatpush1.msra.mxu0 %v2833
        %2865 = vmatprep.subr.mxu0 0.0
        %2866 = vmatpush1.msra.mxu0 %v2834
        %2867 = vmatprep.subr.mxu0 0.0
        %2868 = vmatpush1.msra.mxu0 %v2835
        %2869 = vmatprep.subr.mxu0 0.0
        %2870 = vmatpush1.msra.mxu0 %v2836
        %2871 = vmatprep.subr.mxu0 0.0
        %2872 = vmatpush1.msra.mxu0 %v2837
        %2873 = vmatprep.subr.mxu0 0.0
        %2874 = vmatpush1.msra.mxu0 %v2838
        %2875 = vmatprep.subr.mxu0 0.0
        %2876 = vmatpush1.msra.mxu0 %v2839
        %2877 = vmatprep.subr.mxu0 0.0
        %2878 = vmatpush1.msra.mxu0 %v2840
        %2879 = vmatprep.subr.mxu0 0.0
        %2880 = vmatpush1.msra.mxu0 %v2841
        %2881 = vmatprep.subr.mxu0 0.0
        %2882 = vmatpush1.msra.mxu0 %v2842
        %2883 = vmatprep.subr.mxu0 0.0
        %2884 = vmatpush1.msra.mxu0 0.0
        %2885 = vmatprep.subr.mxu0 0.0
        %2886 = vmatpush1.msra.mxu0 0.0
        %2887 = vmatprep.subr.mxu0 0.0
        %2888 = vmatpush1.msra.mxu0 0.0
        %2889 = vmatprep.subr.mxu0 0.0
        %2890 = vmatpush1.msra.mxu0 0.0
        %2891 = vmatprep.subr.mxu0 0.0
        %2892 = vmatpush1.msra.mxu0 0.0
        %2893 = vmatprep.subr.mxu0 0.0
        %2894 = vmatpush1.msra.mxu0 0.0
        %2895 = vmatprep.subr.mxu0 0.0
        %2896 = vmatpush1.msra.mxu0 0.0
        %2897 = vmatprep.subr.mxu0 0.0
        %2898 = vmatpush1.msra.mxu0 0.0
        %2899 = vmatprep.subr.mxu0 0.0
        %2900 = vmatpush1.msra.mxu0 0.0
        %2901 = vmatprep.subr.mxu0 0.0
        %2902 = vmatpush1.msra.mxu0 0.0
        %2903 = vmatprep.subr.mxu0 0.0
        %2904 = vmatpush1.msra.mxu0 0.0
        %2905 = vmatprep.subr.mxu0 0.0
        %2906 = vmatpush1.msra.mxu0 0.0
        %2907 = vmatprep.mubr.f32.mxu0 %v2726
        %2908 = vmatmul.mubr.f32.gmra.mrb[0].mxu0 %v2696
        %v2909 = vpop.f32.mrb[0].mxu0
        %v2910 = vadd.f32 0.0, %v2909
        %v2911 = vpop.f32.mrb[0].mxu0
        %2912 = vmatprep.mubr.f32.mxu0 %v2729
        %2913 = vmatmul.mubr.f32.gmra.mrb[0].mxu0 %v2698
        %v2914 = vpop.f32.mrb[0].mxu0
        %v2915 = vadd.f32 0.0, %v2914
        %v2916 = vpop.f32.mrb[0].mxu0
        %2917 = vmatprep.mubr.f32.mxu0 %v2732
        %2918 = vmatmul.mubr.f32.gmra.mrb[0].mxu0 %v2700
        %v2919 = vpop.f32.mrb[0].mxu0
        %v2920 = vadd.f32 0.0, %v2919
        %v2921 = vpop.f32.mrb[0].mxu0
        %2922 = vmatprep.mubr.f32.mxu0 %v2735
        %2923 = vmatmul.mubr.f32.gmra.mrb[0].mxu0 %v2702
        %v2924 = vpop.f32.mrb[0].mxu0
        %v2925 = vadd.f32 0.0, %v2924
        %v2926 = vpop.f32.mrb[0].mxu0
        %2927 = vdwg.mxu0
        %v2928 = vmax.f32 %v2804, %v2910
        %v2929 = vmax.f32 %v2809, %v2915
        %v2930 = vmax.f32 %v2814, %v2920
        %v2931 = vmax.f32 %v2819, %v2925
        %v2932 = vld [vmem:[%s8] sm:$0xff]
        %v2933 = vld [vmem:[%s8 + $0x8] sm:$0x3]
        %vm2934 = vcmask 228352
        %v2936 = vsel %vm2934, %v2932, 0
        %v2939 = vsel %vm2934, %v2933, 0
        %v2942 = vsel %vm2047, %v2931, 0
        %2944 = vmatprep.subr.mxu0 0.0
        %2945 = vmatpush1.msra.mxu0 %v2928
        %2946 = vmatprep.subr.mxu0 0.0
        %2947 = vmatpush1.msra.mxu0 %v2929
        %2948 = vmatprep.subr.mxu0 0.0
        %2949 = vmatpush1.msra.mxu0 %v2930
        %2950 = vmatprep.subr.mxu0 0.0
        %2951 = vmatpush1.msra.mxu0 %v2942
        %2952 = vmatprep.subr.mxu0 0.0
        %2953 = vmatpush1.msra.mxu0 0.0
        %2954 = vmatprep.subr.mxu0 0.0
        %2955 = vmatpush1.msra.mxu0 0.0
        %2956 = vmatprep.subr.mxu0 0.0
        %2957 = vmatpush1.msra.mxu0 0.0
        %2958 = vmatprep.subr.mxu0 0.0
        %2959 = vmatpush1.msra.mxu0 0.0
        %2960 = vmatprep.subr.mxu0 0.0
        %2961 = vmatpush1.msra.mxu0 0.0
        %2962 = vmatprep.subr.mxu0 0.0
        %2963 = vmatpush1.msra.mxu0 0.0
        %2964 = vmatprep.subr.mxu0 0.0
        %2965 = vmatpush1.msra.mxu0 0.0
        %2966 = vmatprep.subr.mxu0 0.0
        %2967 = vmatpush1.msra.mxu0 0.0
        %2968 = vmatprep.subr.mxu0 0.0
        %2969 = vmatpush1.msra.mxu0 0.0
        %2970 = vmatprep.subr.mxu0 0.0
        %2971 = vmatpush1.msra.mxu0 0.0
        %2972 = vmatprep.subr.mxu0 0.0
        %2973 = vmatpush1.msra.mxu0 0.0
        %2974 = vmatprep.subr.mxu0 0.0
        %2975 = vmatpush1.msra.mxu0 0.0
        %2976 = vmatprep.subr.mxu0 0.0
        %2977 = vmatpush1.msra.mxu0 0.0
        %2978 = vmatprep.subr.mxu0 0.0
        %2979 = vmatpush1.msra.mxu0 0.0
        %2980 = vmatprep.subr.mxu0 0.0
        %2981 = vmatpush1.msra.mxu0 0.0
        %2982 = vmatprep.subr.mxu0 0.0
        %2983 = vmatpush1.msra.mxu0 0.0
        %2984 = vmatprep.subr.mxu0 0.0
        %2985 = vmatpush1.msra.mxu0 0.0
        %2986 = vmatprep.subr.mxu0 0.0
        %2987 = vmatpush1.msra.mxu0 0.0
        %2988 = vmatprep.subr.mxu0 0.0
        %2989 = vmatpush1.msra.mxu0 0.0
        %2990 = vmatprep.subr.mxu0 0.0
        %2991 = vmatpush1.msra.mxu0 0.0
        %2992 = vmatprep.subr.mxu0 0.0
        %2993 = vmatpush1.msra.mxu0 0.0
        %2994 = vmatprep.subr.mxu0 0.0
        %2995 = vmatpush1.msra.mxu0 0.0
        %2996 = vmatprep.subr.mxu0 0.0
        %2997 = vmatpush1.msra.mxu0 0.0
        %2998 = vmatprep.subr.mxu0 0.0
        %2999 = vmatpush1.msra.mxu0 0.0
        %3000 = vmatprep.subr.mxu0 0.0
        %3001 = vmatpush1.msra.mxu0 0.0
        %3002 = vmatprep.subr.mxu0 0.0
        %3003 = vmatpush1.msra.mxu0 0.0
        %3004 = vmatprep.subr.mxu0 0.0
        %3005 = vmatpush1.msra.mxu0 0.0
        %3006 = vmatprep.subr.mxu0 0.0
        %3007 = vmatpush1.msra.mxu0 0.0
        %3008 = vmatprep.mubr.f32.mxu0 0.0
        %3009 = vmatmul.mubr.f32.gmra.mrb[0].mxu0 %v2936
        %v3010 = vpop.f32.mrb[0].mxu0
        %v3011 = vadd.f32 0.0, %v3010
        %v3012 = vpop.f32.mrb[0].mxu0
        %3013 = vmatprep.mubr.f32.mxu0 0.0
        %3014 = vmatmul.mubr.f32.gmra.mrb[0].mxu0 %v2939
        %v3015 = vpop.f32.mrb[0].mxu0
        %v3016 = vadd.f32 0.0, %v3015
        %v3017 = vpop.f32.mrb[0].mxu0
        %3018 = vdwg.mxu0
        %s3019 = scalar_lea.vmem %s8, 16
        %v3020 = vld [vmem:[%s3019] sm:$0xff]
        %v3021 = vld [vmem:[%s3019 + $0x8] sm:$0x3]
        %v3023 = vsel %vm2934, %v3020, 0
        %v3026 = vsel %vm2934, %v3021, 0
        %3028 = vmatprep.subr.mxu0 0.0
        %3029 = vmatpush1.msra.mxu0 %v2928
        %3030 = vmatprep.subr.mxu0 0.0
        %3031 = vmatpush1.msra.mxu0 %v2929
        %3032 = vmatprep.subr.mxu0 0.0
        %3033 = vmatpush1.msra.mxu0 %v2930
        %3034 = vmatprep.subr.mxu0 0.0
        %3035 = vmatpush1.msra.mxu0 %v2942
        %3036 = vmatprep.subr.mxu0 0.0
        %3037 = vmatpush1.msra.mxu0 0.0
        %3038 = vmatprep.subr.mxu0 0.0
        %3039 = vmatpush1.msra.mxu0 0.0
        %3040 = vmatprep.subr.mxu0 0.0
        %3041 = vmatpush1.msra.mxu0 0.0
        %3042 = vmatprep.subr.mxu0 0.0
        %3043 = vmatpush1.msra.mxu0 0.0
        %3044 = vmatprep.subr.mxu0 0.0
        %3045 = vmatpush1.msra.mxu0 0.0
        %3046 = vmatprep.subr.mxu0 0.0
        %3047 = vmatpush1.msra.mxu0 0.0
        %3048 = vmatprep.subr.mxu0 0.0
        %3049 = vmatpush1.msra.mxu0 0.0
        %3050 = vmatprep.subr.mxu0 0.0
        %3051 = vmatpush1.msra.mxu0 0.0
        %3052 = vmatprep.subr.mxu0 0.0
        %3053 = vmatpush1.msra.mxu0 0.0
        %3054 = vmatprep.subr.mxu0 0.0
        %3055 = vmatpush1.msra.mxu0 0.0
        %3056 = vmatprep.subr.mxu0 0.0
        %3057 = vmatpush1.msra.mxu0 0.0
        %3058 = vmatprep.subr.mxu0 0.0
        %3059 = vmatpush1.msra.mxu0 0.0
        %3060 = vmatprep.subr.mxu0 0.0
        %3061 = vmatpush1.msra.mxu0 0.0
        %3062 = vmatprep.subr.mxu0 0.0
        %3063 = vmatpush1.msra.mxu0 0.0
        %3064 = vmatprep.subr.mxu0 0.0
        %3065 = vmatpush1.msra.mxu0 0.0
        %3066 = vmatprep.subr.mxu0 0.0
        %3067 = vmatpush1.msra.mxu0 0.0
        %3068 = vmatprep.subr.mxu0 0.0
        %3069 = vmatpush1.msra.mxu0 0.0
        %3070 = vmatprep.subr.mxu0 0.0
        %3071 = vmatpush1.msra.mxu0 0.0
        %3072 = vmatprep.subr.mxu0 0.0
        %3073 = vmatpush1.msra.mxu0 0.0
        %3074 = vmatprep.subr.mxu0 0.0
        %3075 = vmatpush1.msra.mxu0 0.0
        %3076 = vmatprep.subr.mxu0 0.0
        %3077 = vmatpush1.msra.mxu0 0.0
        %3078 = vmatprep.subr.mxu0 0.0
        %3079 = vmatpush1.msra.mxu0 0.0
        %3080 = vmatprep.subr.mxu0 0.0
        %3081 = vmatpush1.msra.mxu0 0.0
        %3082 = vmatprep.subr.mxu0 0.0
        %3083 = vmatpush1.msra.mxu0 0.0
        %3084 = vmatprep.subr.mxu0 0.0
        %3085 = vmatpush1.msra.mxu0 0.0
        %3086 = vmatprep.subr.mxu0 0.0
        %3087 = vmatpush1.msra.mxu0 0.0
        %3088 = vmatprep.subr.mxu0 0.0
        %3089 = vmatpush1.msra.mxu0 0.0
        %3090 = vmatprep.subr.mxu0 0.0
        %3091 = vmatpush1.msra.mxu0 0.0
        %3092 = vmatprep.mubr.f32.mxu0 0.0
        %3093 = vmatmul.mubr.f32.gmra.mrb[0].mxu0 %v3023
        %v3094 = vpop.f32.mrb[0].mxu0
        %v3095 = vadd.f32 0.0, %v3094
        %v3096 = vpop.f32.mrb[0].mxu0
        %3097 = vmatprep.mubr.f32.mxu0 0.0
        %3098 = vmatmul.mubr.f32.gmra.mrb[0].mxu0 %v3026
        %v3099 = vpop.f32.mrb[0].mxu0
        %v3100 = vadd.f32 0.0, %v3099
        %v3101 = vpop.f32.mrb[0].mxu0
        %3102 = vdwg.mxu0
        %v3103 = vmax.f32 %v3011, %v3095
        %v3104 = vmax.f32 %v3016, %v3100
        %v3105 = vld [vmem:[%s9] sm:$0x3]
        %vm3106 = vcmask 80896
        %v3108 = vsel %vm3106, %v3105, 0
        %vm3110 = vcmask 1041408
        %v3112 = vsel %vm3110, %v3104, 0
        %3114 = vmatprep.subr.mxu0 0.0
        %3115 = vmatpush1.msra.mxu0 %v3103
        %3116 = vmatprep.subr.mxu0 0.0
        %3117 = vmatpush1.msra.mxu0 %v3112
        %3118 = vmatprep.subr.mxu0 0.0
        %3119 = vmatpush1.msra.mxu0 0.0
        %3120 = vmatprep.subr.mxu0 0.0
        %3121 = vmatpush1.msra.mxu0 0.0
        %3122 = vmatprep.subr.mxu0 0.0
        %3123 = vmatpush1.msra.mxu0 0.0
        %3124 = vmatprep.subr.mxu0 0.0
        %3125 = vmatpush1.msra.mxu0 0.0
        %3126 = vmatprep.subr.mxu0 0.0
        %3127 = vmatpush1.msra.mxu0 0.0
        %3128 = vmatprep.subr.mxu0 0.0
        %3129 = vmatpush1.msra.mxu0 0.0
        %3130 = vmatprep.subr.mxu0 0.0
        %3131 = vmatpush1.msra.mxu0 0.0
        %3132 = vmatprep.subr.mxu0 0.0
        %3133 = vmatpush1.msra.mxu0 0.0
        %3134 = vmatprep.subr.mxu0 0.0
        %3135 = vmatpush1.msra.mxu0 0.0
        %3136 = vmatprep.subr.mxu0 0.0
        %3137 = vmatpush1.msra.mxu0 0.0
        %3138 = vmatprep.subr.mxu0 0.0
        %3139 = vmatpush1.msra.mxu0 0.0
        %3140 = vmatprep.subr.mxu0 0.0
        %3141 = vmatpush1.msra.mxu0 0.0
        %3142 = vmatprep.subr.mxu0 0.0
        %3143 = vmatpush1.msra.mxu0 0.0
        %3144 = vmatprep.subr.mxu0 0.0
        %3145 = vmatpush1.msra.mxu0 0.0
        %3146 = vmatprep.subr.mxu0 0.0
        %3147 = vmatpush1.msra.mxu0 0.0
        %3148 = vmatprep.subr.mxu0 0.0
        %3149 = vmatpush1.msra.mxu0 0.0
        %3150 = vmatprep.subr.mxu0 0.0
        %3151 = vmatpush1.msra.mxu0 0.0
        %3152 = vmatprep.subr.mxu0 0.0
        %3153 = vmatpush1.msra.mxu0 0.0
        %3154 = vmatprep.subr.mxu0 0.0
        %3155 = vmatpush1.msra.mxu0 0.0
        %3156 = vmatprep.subr.mxu0 0.0
        %3157 = vmatpush1.msra.mxu0 0.0
        %3158 = vmatprep.subr.mxu0 0.0
        %3159 = vmatpush1.msra.mxu0 0.0
        %3160 = vmatprep.subr.mxu0 0.0
        %3161 = vmatpush1.msra.mxu0 0.0
        %3162 = vmatprep.subr.mxu0 0.0
        %3163 = vmatpush1.msra.mxu0 0.0
        %3164 = vmatprep.subr.mxu0 0.0
        %3165 = vmatpush1.msra.mxu0 0.0
        %3166 = vmatprep.subr.mxu0 0.0
        %3167 = vmatpush1.msra.mxu0 0.0
        %3168 = vmatprep.subr.mxu0 0.0
        %3169 = vmatpush1.msra.mxu0 0.0
        %3170 = vmatprep.subr.mxu0 0.0
        %3171 = vmatpush1.msra.mxu0 0.0
        %3172 = vmatprep.subr.mxu0 0.0
        %3173 = vmatpush1.msra.mxu0 0.0
        %3174 = vmatprep.subr.mxu0 0.0
        %3175 = vmatpush1.msra.mxu0 0.0
        %3176 = vmatprep.subr.mxu0 0.0
        %3177 = vmatpush1.msra.mxu0 0.0
        %3178 = vmatprep.mubr.f32.mxu0 0.0
        %3179 = vmatmul.mubr.f32.gmra.mrb[0].mxu0 %v3108
        %v3180 = vpop.f32.mrb[0].mxu0
        %v3181 = vadd.f32 0.0, %v3180
        %v3182 = vpop.f32.mrb[0].mxu0
        %3183 = vdwg.mxu0
        %v3184 = vld [vmem:[%s10] sm:$0xff]
        %v3185 = vld [vmem:[%s10 + $0x8] sm:$0xff]
        %v3186 = vld [vmem:[%s10 + $0x10] sm:$0xff]
        %v3187 = vld [vmem:[%s10 + $0x18] sm:$0xff]
        %v3188 = vld [vmem:[%s10 + $0x20] sm:$0xff]
        %v3189 = vld [vmem:[%s10 + $0x28] sm:$0xff]
        %v3190 = vld [vmem:[%s10 + $0x30] sm:$0xff]
        %v3191 = vld [vmem:[%s10 + $0x38] sm:$0xff]
        %v3192 = vld [vmem:[%s10 + $0x40] sm:$0xff]
        %v3193 = vld [vmem:[%s10 + $0x48] sm:$0xff]
        %s3194 = scalar_lea.vmem %s9, 2
        %v3195 = vld [vmem:[%s3194] sm:$0x3]
        %v3197 = vsel %vm3106, %v3195, 0
        %3199 = vmatprep.subr.mxu0 0.0
        %3200 = vmatpush1.msra.mxu0 %v3103
        %3201 = vmatprep.subr.mxu0 0.0
        %3202 = vmatpush1.msra.mxu0 %v3112
        %3203 = vmatprep.subr.mxu0 0.0
        %3204 = vmatpush1.msra.mxu0 0.0
        %3205 = vmatprep.subr.mxu0 0.0
        %3206 = vmatpush1.msra.mxu0 0.0
        %3207 = vmatprep.subr.mxu0 0.0
        %3208 = vmatpush1.msra.mxu0 0.0
        %3209 = vmatprep.subr.mxu0 0.0
        %3210 = vmatpush1.msra.mxu0 0.0
        %3211 = vmatprep.subr.mxu0 0.0
        %3212 = vmatpush1.msra.mxu0 0.0
        %3213 = vmatprep.subr.mxu0 0.0
        %3214 = vmatpush1.msra.mxu0 0.0
        %3215 = vmatprep.subr.mxu0 0.0
        %3216 = vmatpush1.msra.mxu0 0.0
        %3217 = vmatprep.subr.mxu0 0.0
        %3218 = vmatpush1.msra.mxu0 0.0
        %3219 = vmatprep.subr.mxu0 0.0
        %3220 = vmatpush1.msra.mxu0 0.0
        %3221 = vmatprep.subr.mxu0 0.0
        %3222 = vmatpush1.msra.mxu0 0.0
        %3223 = vmatprep.subr.mxu0 0.0
        %3224 = vmatpush1.msra.mxu0 0.0
        %3225 = vmatprep.subr.mxu0 0.0
        %3226 = vmatpush1.msra.mxu0 0.0
        %3227 = vmatprep.subr.mxu0 0.0
        %3228 = vmatpush1.msra.mxu0 0.0
        %3229 = vmatprep.subr.mxu0 0.0
        %3230 = vmatpush1.msra.mxu0 0.0
        %3231 = vmatprep.subr.mxu0 0.0
        %3232 = vmatpush1.msra.mxu0 0.0
        %3233 = vmatprep.subr.mxu0 0.0
        %3234 = vmatpush1.msra.mxu0 0.0
        %3235 = vmatprep.subr.mxu0 0.0
        %3236 = vmatpush1.msra.mxu0 0.0
        %3237 = vmatprep.subr.mxu0 0.0
        %3238 = vmatpush1.msra.mxu0 0.0
        %3239 = vmatprep.subr.mxu0 0.0
        %3240 = vmatpush1.msra.mxu0 0.0
        %3241 = vmatprep.subr.mxu0 0.0
        %3242 = vmatpush1.msra.mxu0 0.0
        %3243 = vmatprep.subr.mxu0 0.0
        %3244 = vmatpush1.msra.mxu0 0.0
        %3245 = vmatprep.subr.mxu0 0.0
        %3246 = vmatpush1.msra.mxu0 0.0
        %3247 = vmatprep.subr.mxu0 0.0
        %3248 = vmatpush1.msra.mxu0 0.0
        %3249 = vmatprep.subr.mxu0 0.0
        %3250 = vmatpush1.msra.mxu0 0.0
        %3251 = vmatprep.subr.mxu0 0.0
        %3252 = vmatpush1.msra.mxu0 0.0
        %3253 = vmatprep.subr.mxu0 0.0
        %3254 = vmatpush1.msra.mxu0 0.0
        %3255 = vmatprep.subr.mxu0 0.0
        %3256 = vmatpush1.msra.mxu0 0.0
        %3257 = vmatprep.subr.mxu0 0.0
        %3258 = vmatpush1.msra.mxu0 0.0
        %3259 = vmatprep.subr.mxu0 0.0
        %3260 = vmatpush1.msra.mxu0 0.0
        %3261 = vmatprep.subr.mxu0 0.0
        %3262 = vmatpush1.msra.mxu0 0.0
        %3263 = vmatprep.mubr.f32.mxu0 0.0
        %3264 = vmatmul.mubr.f32.gmra.mrb[0].mxu0 %v3197
        %v3265 = vpop.f32.mrb[0].mxu0
        %v3266 = vadd.f32 0.0, %v3265
        %v3267 = vpop.f32.mrb[0].mxu0
        %3268 = vdwg.mxu0
        %s3269 = scalar_lea.vmem %s10, 80
        %v3270 = vld [vmem:[%s3269] sm:$0xff]
        %v3271 = vld [vmem:[%s3269 + $0x8] sm:$0xff]
        %v3272 = vld [vmem:[%s3269 + $0x10] sm:$0xff]
        %v3273 = vld [vmem:[%s3269 + $0x18] sm:$0xff]
        %v3274 = vld [vmem:[%s3269 + $0x20] sm:$0xff]
        %v3275 = vld [vmem:[%s3269 + $0x28] sm:$0xff]
        %v3276 = vld [vmem:[%s3269 + $0x30] sm:$0xff]
        %v3277 = vld [vmem:[%s3269 + $0x38] sm:$0xff]
        %v3278 = vld [vmem:[%s3269 + $0x40] sm:$0xff]
        %v3279 = vld [vmem:[%s3269 + $0x48] sm:$0xff]
        %vm3280 = vcmask 654336
        %v3282 = vsel %vm3280, %v3266, 0
        %3284 = vmatprep.subr.mxu0 0.0
        %3285 = vmatpush1.msra.mxu0 %v3270
        %3286 = vmatprep.subr.mxu0 0.0
        %3287 = vmatpush1.msra.mxu0 %v3271
        %3288 = vmatprep.subr.mxu0 0.0
        %3289 = vmatpush1.msra.mxu0 %v3272
        %3290 = vmatprep.subr.mxu0 0.0
        %3291 = vmatpush1.msra.mxu0 %v3273
        %3292 = vmatprep.subr.mxu0 0.0
        %3293 = vmatpush1.msra.mxu0 %v3274
        %3294 = vmatprep.subr.mxu0 0.0
        %3295 = vmatpush1.msra.mxu0 %v3275
        %3296 = vmatprep.subr.mxu0 0.0
        %3297 = vmatpush1.msra.mxu0 %v3276
        %3298 = vmatprep.subr.mxu0 0.0
        %3299 = vmatpush1.msra.mxu0 %v3277
        %3300 = vmatprep.subr.mxu0 0.0
        %3301 = vmatpush1.msra.mxu0 %v3278
        %3302 = vmatprep.subr.mxu0 0.0
        %3303 = vmatpush1.msra.mxu0 %v3279
        %3304 = vmatprep.subr.mxu0 0.0
        %3305 = vmatpush1.msra.mxu0 0.0
        %3306 = vmatprep.subr.mxu0 0.0
        %3307 = vmatpush1.msra.mxu0 0.0
        %3308 = vmatprep.subr.mxu0 0.0
        %3309 = vmatpush1.msra.mxu0 0.0
        %3310 = vmatprep.subr.mxu0 0.0
        %3311 = vmatpush1.msra.mxu0 0.0
        %3312 = vmatprep.subr.mxu0 0.0
        %3313 = vmatpush1.msra.mxu0 0.0
        %3314 = vmatprep.subr.mxu0 0.0
        %3315 = vmatpush1.msra.mxu0 0.0
        %3316 = vmatprep.subr.mxu0 0.0
        %3317 = vmatpush1.msra.mxu0 0.0
        %3318 = vmatprep.subr.mxu0 0.0
        %3319 = vmatpush1.msra.mxu0 0.0
        %3320 = vmatprep.subr.mxu0 0.0
        %3321 = vmatpush1.msra.mxu0 0.0
        %3322 = vmatprep.subr.mxu0 0.0
        %3323 = vmatpush1.msra.mxu0 0.0
        %3324 = vmatprep.subr.mxu0 0.0
        %3325 = vmatpush1.msra.mxu0 0.0
        %3326 = vmatprep.subr.mxu0 0.0
        %3327 = vmatpush1.msra.mxu0 0.0
        %3328 = vmatprep.subr.mxu0 0.0
        %3329 = vmatpush1.msra.mxu0 0.0
        %3330 = vmatprep.subr.mxu0 0.0
        %3331 = vmatpush1.msra.mxu0 0.0
        %3332 = vmatprep.subr.mxu0 0.0
        %3333 = vmatpush1.msra.mxu0 0.0
        %3334 = vmatprep.subr.mxu0 0.0
        %3335 = vmatpush1.msra.mxu0 0.0
        %3336 = vmatprep.subr.mxu0 0.0
        %3337 = vmatpush1.msra.mxu0 0.0
        %3338 = vmatprep.subr.mxu0 0.0
        %3339 = vmatpush1.msra.mxu0 0.0
        %3340 = vmatprep.subr.mxu0 0.0
        %3341 = vmatpush1.msra.mxu0 0.0
        %3342 = vmatprep.subr.mxu0 0.0
        %3343 = vmatpush1.msra.mxu0 0.0
        %3344 = vmatprep.subr.mxu0 0.0
        %3345 = vmatpush1.msra.mxu0 0.0
        %3346 = vmatprep.subr.mxu0 0.0
        %3347 = vmatpush1.msra.mxu0 0.0
        %3348 = vmatprep.mubr.f32.mxu0 0.0
        %3349 = vmatmul.mubr.f32.gmra.mrb[0].mxu0 %v3282
        %v3350 = vpop.f32.mrb[0].mxu0
        %v3351 = vadd.f32 0.0, %v3350
        %v3352 = vpop.f32.mrb[0].mxu0
        %3353 = vdwg.mxu0
        %v3355 = vsel %vm3280, %v3181, 0
        %3357 = vmatprep.subr.mxu0 0.0
        %3358 = vmatpush1.msra.mxu0 %v3184
        %3359 = vmatprep.subr.mxu0 0.0
        %3360 = vmatpush1.msra.mxu0 %v3185
        %3361 = vmatprep.subr.mxu0 0.0
        %3362 = vmatpush1.msra.mxu0 %v3186
        %3363 = vmatprep.subr.mxu0 0.0
        %3364 = vmatpush1.msra.mxu0 %v3187
        %3365 = vmatprep.subr.mxu0 0.0
        %3366 = vmatpush1.msra.mxu0 %v3188
        %3367 = vmatprep.subr.mxu0 0.0
        %3368 = vmatpush1.msra.mxu0 %v3189
        %3369 = vmatprep.subr.mxu0 0.0
        %3370 = vmatpush1.msra.mxu0 %v3190
        %3371 = vmatprep.subr.mxu0 0.0
        %3372 = vmatpush1.msra.mxu0 %v3191
        %3373 = vmatprep.subr.mxu0 0.0
        %3374 = vmatpush1.msra.mxu0 %v3192
        %3375 = vmatprep.subr.mxu0 0.0
        %3376 = vmatpush1.msra.mxu0 %v3193
        %3377 = vmatprep.subr.mxu0 0.0
        %3378 = vmatpush1.msra.mxu0 0.0
        %3379 = vmatprep.subr.mxu0 0.0
        %3380 = vmatpush1.msra.mxu0 0.0
        %3381 = vmatprep.subr.mxu0 0.0
        %3382 = vmatpush1.msra.mxu0 0.0
        %3383 = vmatprep.subr.mxu0 0.0
        %3384 = vmatpush1.msra.mxu0 0.0
        %3385 = vmatprep.subr.mxu0 0.0
        %3386 = vmatpush1.msra.mxu0 0.0
        %3387 = vmatprep.subr.mxu0 0.0
        %3388 = vmatpush1.msra.mxu0 0.0
        %3389 = vmatprep.subr.mxu0 0.0
        %3390 = vmatpush1.msra.mxu0 0.0
        %3391 = vmatprep.subr.mxu0 0.0
        %3392 = vmatpush1.msra.mxu0 0.0
        %3393 = vmatprep.subr.mxu0 0.0
        %3394 = vmatpush1.msra.mxu0 0.0
        %3395 = vmatprep.subr.mxu0 0.0
        %3396 = vmatpush1.msra.mxu0 0.0
        %3397 = vmatprep.subr.mxu0 0.0
        %3398 = vmatpush1.msra.mxu0 0.0
        %3399 = vmatprep.subr.mxu0 0.0
        %3400 = vmatpush1.msra.mxu0 0.0
        %3401 = vmatprep.subr.mxu0 0.0
        %3402 = vmatpush1.msra.mxu0 0.0
        %3403 = vmatprep.subr.mxu0 0.0
        %3404 = vmatpush1.msra.mxu0 0.0
        %3405 = vmatprep.subr.mxu0 0.0
        %3406 = vmatpush1.msra.mxu0 0.0
        %3407 = vmatprep.subr.mxu0 0.0
        %3408 = vmatpush1.msra.mxu0 0.0
        %3409 = vmatprep.subr.mxu0 0.0
        %3410 = vmatpush1.msra.mxu0 0.0
        %3411 = vmatprep.subr.mxu0 0.0
        %3412 = vmatpush1.msra.mxu0 0.0
        %3413 = vmatprep.subr.mxu0 0.0
        %3414 = vmatpush1.msra.mxu0 0.0
        %3415 = vmatprep.subr.mxu0 0.0
        %3416 = vmatpush1.msra.mxu0 0.0
        %3417 = vmatprep.subr.mxu0 0.0
        %3418 = vmatpush1.msra.mxu0 0.0
        %3419 = vmatprep.subr.mxu0 0.0
        %3420 = vmatpush1.msra.mxu0 0.0
        %3421 = vmatprep.mubr.f32.mxu0 0.0
        %3422 = vmatmul.mubr.f32.gmra.mrb[0].mxu0 %v3355
        %v3423 = vpop.f32.mrb[0].mxu0
        %v3424 = vadd.f32 %v3351, %v3423
        %v3425 = vpop.f32.mrb[0].mxu0
        %3426 = vdwg.mxu0
        %s3427 = scalar_lea.vmem %s9, 4
        %v3428 = vld [vmem:[%s3427] sm:$0x3]
        %v3430 = vsel %vm3106, %v3428, 0
        %3432 = vmatprep.subr.mxu0 0.0
        %3433 = vmatpush1.msra.mxu0 %v3103
        %3434 = vmatprep.subr.mxu0 0.0
        %3435 = vmatpush1.msra.mxu0 %v3112
        %3436 = vmatprep.subr.mxu0 0.0
        %3437 = vmatpush1.msra.mxu0 0.0
        %3438 = vmatprep.subr.mxu0 0.0
        %3439 = vmatpush1.msra.mxu0 0.0
        %3440 = vmatprep.subr.mxu0 0.0
        %3441 = vmatpush1.msra.mxu0 0.0
        %3442 = vmatprep.subr.mxu0 0.0
        %3443 = vmatpush1.msra.mxu0 0.0
        %3444 = vmatprep.subr.mxu0 0.0
        %3445 = vmatpush1.msra.mxu0 0.0
        %3446 = vmatprep.subr.mxu0 0.0
        %3447 = vmatpush1.msra.mxu0 0.0
        %3448 = vmatprep.subr.mxu0 0.0
        %3449 = vmatpush1.msra.mxu0 0.0
        %3450 = vmatprep.subr.mxu0 0.0
        %3451 = vmatpush1.msra.mxu0 0.0
        %3452 = vmatprep.subr.mxu0 0.0
        %3453 = vmatpush1.msra.mxu0 0.0
        %3454 = vmatprep.subr.mxu0 0.0
        %3455 = vmatpush1.msra.mxu0 0.0
        %3456 = vmatprep.subr.mxu0 0.0
        %3457 = vmatpush1.msra.mxu0 0.0
        %3458 = vmatprep.subr.mxu0 0.0
        %3459 = vmatpush1.msra.mxu0 0.0
        %3460 = vmatprep.subr.mxu0 0.0
        %3461 = vmatpush1.msra.mxu0 0.0
        %3462 = vmatprep.subr.mxu0 0.0
        %3463 = vmatpush1.msra.mxu0 0.0
        %3464 = vmatprep.subr.mxu0 0.0
        %3465 = vmatpush1.msra.mxu0 0.0
        %3466 = vmatprep.subr.mxu0 0.0
        %3467 = vmatpush1.msra.mxu0 0.0
        %3468 = vmatprep.subr.mxu0 0.0
        %3469 = vmatpush1.msra.mxu0 0.0
        %3470 = vmatprep.subr.mxu0 0.0
        %3471 = vmatpush1.msra.mxu0 0.0
        %3472 = vmatprep.subr.mxu0 0.0
        %3473 = vmatpush1.msra.mxu0 0.0
        %3474 = vmatprep.subr.mxu0 0.0
        %3475 = vmatpush1.msra.mxu0 0.0
        %3476 = vmatprep.subr.mxu0 0.0
        %3477 = vmatpush1.msra.mxu0 0.0
        %3478 = vmatprep.subr.mxu0 0.0
        %3479 = vmatpush1.msra.mxu0 0.0
        %3480 = vmatprep.subr.mxu0 0.0
        %3481 = vmatpush1.msra.mxu0 0.0
        %3482 = vmatprep.subr.mxu0 0.0
        %3483 = vmatpush1.msra.mxu0 0.0
        %3484 = vmatprep.subr.mxu0 0.0
        %3485 = vmatpush1.msra.mxu0 0.0
        %3486 = vmatprep.subr.mxu0 0.0
        %3487 = vmatpush1.msra.mxu0 0.0
        %3488 = vmatprep.subr.mxu0 0.0
        %3489 = vmatpush1.msra.mxu0 0.0
        %3490 = vmatprep.subr.mxu0 0.0
        %3491 = vmatpush1.msra.mxu0 0.0
        %3492 = vmatprep.subr.mxu0 0.0
        %3493 = vmatpush1.msra.mxu0 0.0
        %3494 = vmatprep.subr.mxu0 0.0
        %3495 = vmatpush1.msra.mxu0 0.0
        %3496 = vmatprep.mubr.f32.mxu0 0.0
        %3497 = vmatmul.mubr.f32.gmra.mrb[0].mxu0 %v3430
        %v3498 = vpop.f32.mrb[0].mxu0
        %v3499 = vadd.f32 0.0, %v3498
        %v3500 = vpop.f32.mrb[0].mxu0
        %3501 = vdwg.mxu0
        %s3502 = scalar_lea.vmem %s10, 160
        %v3503 = vld [vmem:[%s3502] sm:$0xff]
        %v3504 = vld [vmem:[%s3502 + $0x8] sm:$0xff]
        %v3505 = vld [vmem:[%s3502 + $0x10] sm:$0xff]
        %v3506 = vld [vmem:[%s3502 + $0x18] sm:$0xff]
        %v3507 = vld [vmem:[%s3502 + $0x20] sm:$0xff]
        %v3508 = vld [vmem:[%s3502 + $0x28] sm:$0xff]
        %v3509 = vld [vmem:[%s3502 + $0x30] sm:$0xff]
        %v3510 = vld [vmem:[%s3502 + $0x38] sm:$0xff]
        %v3511 = vld [vmem:[%s3502 + $0x40] sm:$0xff]
        %v3512 = vld [vmem:[%s3502 + $0x48] sm:$0xff]
        %v3514 = vsel %vm3280, %v3499, 0
        %3516 = vmatprep.subr.mxu0 0.0
        %3517 = vmatpush1.msra.mxu0 %v3503
        %3518 = vmatprep.subr.mxu0 0.0
        %3519 = vmatpush1.msra.mxu0 %v3504
        %3520 = vmatprep.subr.mxu0 0.0
        %3521 = vmatpush1.msra.mxu0 %v3505
        %3522 = vmatprep.subr.mxu0 0.0
        %3523 = vmatpush1.msra.mxu0 %v3506
        %3524 = vmatprep.subr.mxu0 0.0
        %3525 = vmatpush1.msra.mxu0 %v3507
        %3526 = vmatprep.subr.mxu0 0.0
        %3527 = vmatpush1.msra.mxu0 %v3508
        %3528 = vmatprep.subr.mxu0 0.0
        %3529 = vmatpush1.msra.mxu0 %v3509
        %3530 = vmatprep.subr.mxu0 0.0
        %3531 = vmatpush1.msra.mxu0 %v3510
        %3532 = vmatprep.subr.mxu0 0.0
        %3533 = vmatpush1.msra.mxu0 %v3511
        %3534 = vmatprep.subr.mxu0 0.0
        %3535 = vmatpush1.msra.mxu0 %v3512
        %3536 = vmatprep.subr.mxu0 0.0
        %3537 = vmatpush1.msra.mxu0 0.0
        %3538 = vmatprep.subr.mxu0 0.0
        %3539 = vmatpush1.msra.mxu0 0.0
        %3540 = vmatprep.subr.mxu0 0.0
        %3541 = vmatpush1.msra.mxu0 0.0
        %3542 = vmatprep.subr.mxu0 0.0
        %3543 = vmatpush1.msra.mxu0 0.0
        %3544 = vmatprep.subr.mxu0 0.0
        %3545 = vmatpush1.msra.mxu0 0.0
        %3546 = vmatprep.subr.mxu0 0.0
        %3547 = vmatpush1.msra.mxu0 0.0
        %3548 = vmatprep.subr.mxu0 0.0
        %3549 = vmatpush1.msra.mxu0 0.0
        %3550 = vmatprep.subr.mxu0 0.0
        %3551 = vmatpush1.msra.mxu0 0.0
        %3552 = vmatprep.subr.mxu0 0.0
        %3553 = vmatpush1.msra.mxu0 0.0
        %3554 = vmatprep.subr.mxu0 0.0
        %3555 = vmatpush1.msra.mxu0 0.0
        %3556 = vmatprep.subr.mxu0 0.0
        %3557 = vmatpush1.msra.mxu0 0.0
        %3558 = vmatprep.subr.mxu0 0.0
        %3559 = vmatpush1.msra.mxu0 0.0
        %3560 = vmatprep.subr.mxu0 0.0
        %3561 = vmatpush1.msra.mxu0 0.0
        %3562 = vmatprep.subr.mxu0 0.0
        %3563 = vmatpush1.msra.mxu0 0.0
        %3564 = vmatprep.subr.mxu0 0.0
        %3565 = vmatpush1.msra.mxu0 0.0
        %3566 = vmatprep.subr.mxu0 0.0
        %3567 = vmatpush1.msra.mxu0 0.0
        %3568 = vmatprep.subr.mxu0 0.0
        %3569 = vmatpush1.msra.mxu0 0.0
        %3570 = vmatprep.subr.mxu0 0.0
        %3571 = vmatpush1.msra.mxu0 0.0
        %3572 = vmatprep.subr.mxu0 0.0
        %3573 = vmatpush1.msra.mxu0 0.0
        %3574 = vmatprep.subr.mxu0 0.0
        %3575 = vmatpush1.msra.mxu0 0.0
        %3576 = vmatprep.subr.mxu0 0.0
        %3577 = vmatpush1.msra.mxu0 0.0
        %3578 = vmatprep.subr.mxu0 0.0
        %3579 = vmatpush1.msra.mxu0 0.0
        %3580 = vmatprep.mubr.f32.mxu0 0.0
        %3581 = vmatmul.mubr.f32.gmra.mrb[0].mxu0 %v3514
        %v3582 = vpop.f32.mrb[0].mxu0
        %v3583 = vadd.f32 0.0, %v3582
        %v3584 = vpop.f32.mrb[0].mxu0
        %3585 = vdwg.mxu0
        %v3586 = vadd.f32 %v3424, %v3583
        %s3587 = scalar_lea.vmem %s9, 6
        %v3588 = vld [vmem:[%s3587] sm:$0x3]
        %v3590 = vsel %vm3106, %v3588, 0
        %3592 = vmatprep.subr.mxu0 0.0
        %3593 = vmatpush1.msra.mxu0 %v3103
        %3594 = vmatprep.subr.mxu0 0.0
        %3595 = vmatpush1.msra.mxu0 %v3112
        %3596 = vmatprep.subr.mxu0 0.0
        %3597 = vmatpush1.msra.mxu0 0.0
        %3598 = vmatprep.subr.mxu0 0.0
        %3599 = vmatpush1.msra.mxu0 0.0
        %3600 = vmatprep.subr.mxu0 0.0
        %3601 = vmatpush1.msra.mxu0 0.0
        %3602 = vmatprep.subr.mxu0 0.0
        %3603 = vmatpush1.msra.mxu0 0.0
        %3604 = vmatprep.subr.mxu0 0.0
        %3605 = vmatpush1.msra.mxu0 0.0
        %3606 = vmatprep.subr.mxu0 0.0
        %3607 = vmatpush1.msra.mxu0 0.0
        %3608 = vmatprep.subr.mxu0 0.0
        %3609 = vmatpush1.msra.mxu0 0.0
        %3610 = vmatprep.subr.mxu0 0.0
        %3611 = vmatpush1.msra.mxu0 0.0
        %3612 = vmatprep.subr.mxu0 0.0
        %3613 = vmatpush1.msra.mxu0 0.0
        %3614 = vmatprep.subr.mxu0 0.0
        %3615 = vmatpush1.msra.mxu0 0.0
        %3616 = vmatprep.subr.mxu0 0.0
        %3617 = vmatpush1.msra.mxu0 0.0
        %3618 = vmatprep.subr.mxu0 0.0
        %3619 = vmatpush1.msra.mxu0 0.0
        %3620 = vmatprep.subr.mxu0 0.0
        %3621 = vmatpush1.msra.mxu0 0.0
        %3622 = vmatprep.subr.mxu0 0.0
        %3623 = vmatpush1.msra.mxu0 0.0
        %3624 = vmatprep.subr.mxu0 0.0
        %3625 = vmatpush1.msra.mxu0 0.0
        %3626 = vmatprep.subr.mxu0 0.0
        %3627 = vmatpush1.msra.mxu0 0.0
        %3628 = vmatprep.subr.mxu0 0.0
        %3629 = vmatpush1.msra.mxu0 0.0
        %3630 = vmatprep.subr.mxu0 0.0
        %3631 = vmatpush1.msra.mxu0 0.0
        %3632 = vmatprep.subr.mxu0 0.0
        %3633 = vmatpush1.msra.mxu0 0.0
        %3634 = vmatprep.subr.mxu0 0.0
        %3635 = vmatpush1.msra.mxu0 0.0
        %3636 = vmatprep.subr.mxu0 0.0
        %3637 = vmatpush1.msra.mxu0 0.0
        %3638 = vmatprep.subr.mxu0 0.0
        %3639 = vmatpush1.msra.mxu0 0.0
        %3640 = vmatprep.subr.mxu0 0.0
        %3641 = vmatpush1.msra.mxu0 0.0
        %3642 = vmatprep.subr.mxu0 0.0
        %3643 = vmatpush1.msra.mxu0 0.0
        %3644 = vmatprep.subr.mxu0 0.0
        %3645 = vmatpush1.msra.mxu0 0.0
        %3646 = vmatprep.subr.mxu0 0.0
        %3647 = vmatpush1.msra.mxu0 0.0
        %3648 = vmatprep.subr.mxu0 0.0
        %3649 = vmatpush1.msra.mxu0 0.0
        %3650 = vmatprep.subr.mxu0 0.0
        %3651 = vmatpush1.msra.mxu0 0.0
        %3652 = vmatprep.subr.mxu0 0.0
        %3653 = vmatpush1.msra.mxu0 0.0
        %3654 = vmatprep.subr.mxu0 0.0
        %3655 = vmatpush1.msra.mxu0 0.0
        %3656 = vmatprep.mubr.f32.mxu0 0.0
        %3657 = vmatmul.mubr.f32.gmra.mrb[0].mxu0 %v3590
        %v3658 = vpop.f32.mrb[0].mxu0
        %v3659 = vadd.f32 0.0, %v3658
        %v3660 = vpop.f32.mrb[0].mxu0
        %3661 = vdwg.mxu0
        %s3662 = scalar_lea.vmem %s10, 240
        %v3663 = vld [vmem:[%s3662] sm:$0xff]
        %v3664 = vld [vmem:[%s3662 + $0x8] sm:$0xff]
        %v3665 = vld [vmem:[%s3662 + $0x10] sm:$0xff]
        %v3666 = vld [vmem:[%s3662 + $0x18] sm:$0xff]
        %v3667 = vld [vmem:[%s3662 + $0x20] sm:$0xff]
        %v3668 = vld [vmem:[%s3662 + $0x28] sm:$0xff]
        %v3669 = vld [vmem:[%s3662 + $0x30] sm:$0xff]
        %v3670 = vld [vmem:[%s3662 + $0x38] sm:$0xff]
        %v3671 = vld [vmem:[%s3662 + $0x40] sm:$0xff]
        %v3672 = vld [vmem:[%s3662 + $0x48] sm:$0xff]
        %v3674 = vsel %vm3280, %v3659, 0
        %3676 = vmatprep.subr.mxu0 0.0
        %3677 = vmatpush1.msra.mxu0 %v3663
        %3678 = vmatprep.subr.mxu0 0.0
        %3679 = vmatpush1.msra.mxu0 %v3664
        %3680 = vmatprep.subr.mxu0 0.0
        %3681 = vmatpush1.msra.mxu0 %v3665
        %3682 = vmatprep.subr.mxu0 0.0
        %3683 = vmatpush1.msra.mxu0 %v3666
        %3684 = vmatprep.subr.mxu0 0.0
        %3685 = vmatpush1.msra.mxu0 %v3667
        %3686 = vmatprep.subr.mxu0 0.0
        %3687 = vmatpush1.msra.mxu0 %v3668
        %3688 = vmatprep.subr.mxu0 0.0
        %3689 = vmatpush1.msra.mxu0 %v3669
        %3690 = vmatprep.subr.mxu0 0.0
        %3691 = vmatpush1.msra.mxu0 %v3670
        %3692 = vmatprep.subr.mxu0 0.0
        %3693 = vmatpush1.msra.mxu0 %v3671
        %3694 = vmatprep.subr.mxu0 0.0
        %3695 = vmatpush1.msra.mxu0 %v3672
        %3696 = vmatprep.subr.mxu0 0.0
        %3697 = vmatpush1.msra.mxu0 0.0
        %3698 = vmatprep.subr.mxu0 0.0
        %3699 = vmatpush1.msra.mxu0 0.0
        %3700 = vmatprep.subr.mxu0 0.0
        %3701 = vmatpush1.msra.mxu0 0.0
        %3702 = vmatprep.subr.mxu0 0.0
        %3703 = vmatpush1.msra.mxu0 0.0
        %3704 = vmatprep.subr.mxu0 0.0
        %3705 = vmatpush1.msra.mxu0 0.0
        %3706 = vmatprep.subr.mxu0 0.0
        %3707 = vmatpush1.msra.mxu0 0.0
        %3708 = vmatprep.subr.mxu0 0.0
        %3709 = vmatpush1.msra.mxu0 0.0
        %3710 = vmatprep.subr.mxu0 0.0
        %3711 = vmatpush1.msra.mxu0 0.0
        %3712 = vmatprep.subr.mxu0 0.0
        %3713 = vmatpush1.msra.mxu0 0.0
        %3714 = vmatprep.subr.mxu0 0.0
        %3715 = vmatpush1.msra.mxu0 0.0
        %3716 = vmatprep.subr.mxu0 0.0
        %3717 = vmatpush1.msra.mxu0 0.0
        %3718 = vmatprep.subr.mxu0 0.0
        %3719 = vmatpush1.msra.mxu0 0.0
        %3720 = vmatprep.subr.mxu0 0.0
        %3721 = vmatpush1.msra.mxu0 0.0
        %3722 = vmatprep.subr.mxu0 0.0
        %3723 = vmatpush1.msra.mxu0 0.0
        %3724 = vmatprep.subr.mxu0 0.0
        %3725 = vmatpush1.msra.mxu0 0.0
        %3726 = vmatprep.subr.mxu0 0.0
        %3727 = vmatpush1.msra.mxu0 0.0
        %3728 = vmatprep.subr.mxu0 0.0
        %3729 = vmatpush1.msra.mxu0 0.0
        %3730 = vmatprep.subr.mxu0 0.0
        %3731 = vmatpush1.msra.mxu0 0.0
        %3732 = vmatprep.subr.mxu0 0.0
        %3733 = vmatpush1.msra.mxu0 0.0
        %3734 = vmatprep.subr.mxu0 0.0
        %3735 = vmatpush1.msra.mxu0 0.0
        %3736 = vmatprep.subr.mxu0 0.0
        %3737 = vmatpush1.msra.mxu0 0.0
        %3738 = vmatprep.subr.mxu0 0.0
        %3739 = vmatpush1.msra.mxu0 0.0
        %3740 = vmatprep.mubr.f32.mxu0 0.0
        %3741 = vmatmul.mubr.f32.gmra.mrb[0].mxu0 %v3674
        %v3742 = vpop.f32.mrb[0].mxu0
        %v3743 = vadd.f32 0.0, %v3742
        %v3744 = vpop.f32.mrb[0].mxu0
        %3745 = vdwg.mxu0
        %v3746 = vadd.f32 %v3586, %v3743
        %s3747 = scalar_lea.vmem %s9, 8
        %v3748 = vld [vmem:[%s3747] sm:$0x3]
        %v3750 = vsel %vm3106, %v3748, 0
        %3752 = vmatprep.subr.mxu0 0.0
        %3753 = vmatpush1.msra.mxu0 %v3103
        %3754 = vmatprep.subr.mxu0 0.0
        %3755 = vmatpush1.msra.mxu0 %v3112
        %3756 = vmatprep.subr.mxu0 0.0
        %3757 = vmatpush1.msra.mxu0 0.0
        %3758 = vmatprep.subr.mxu0 0.0
        %3759 = vmatpush1.msra.mxu0 0.0
        %3760 = vmatprep.subr.mxu0 0.0
        %3761 = vmatpush1.msra.mxu0 0.0
        %3762 = vmatprep.subr.mxu0 0.0
        %3763 = vmatpush1.msra.mxu0 0.0
        %3764 = vmatprep.subr.mxu0 0.0
        %3765 = vmatpush1.msra.mxu0 0.0
        %3766 = vmatprep.subr.mxu0 0.0
        %3767 = vmatpush1.msra.mxu0 0.0
        %3768 = vmatprep.subr.mxu0 0.0
        %3769 = vmatpush1.msra.mxu0 0.0
        %3770 = vmatprep.subr.mxu0 0.0
        %3771 = vmatpush1.msra.mxu0 0.0
        %3772 = vmatprep.subr.mxu0 0.0
        %3773 = vmatpush1.msra.mxu0 0.0
        %3774 = vmatprep.subr.mxu0 0.0
        %3775 = vmatpush1.msra.mxu0 0.0
        %3776 = vmatprep.subr.mxu0 0.0
        %3777 = vmatpush1.msra.mxu0 0.0
        %3778 = vmatprep.subr.mxu0 0.0
        %3779 = vmatpush1.msra.mxu0 0.0
        %3780 = vmatprep.subr.mxu0 0.0
        %3781 = vmatpush1.msra.mxu0 0.0
        %3782 = vmatprep.subr.mxu0 0.0
        %3783 = vmatpush1.msra.mxu0 0.0
        %3784 = vmatprep.subr.mxu0 0.0
        %3785 = vmatpush1.msra.mxu0 0.0
        %3786 = vmatprep.subr.mxu0 0.0
        %3787 = vmatpush1.msra.mxu0 0.0
        %3788 = vmatprep.subr.mxu0 0.0
        %3789 = vmatpush1.msra.mxu0 0.0
        %3790 = vmatprep.subr.mxu0 0.0
        %3791 = vmatpush1.msra.mxu0 0.0
        %3792 = vmatprep.subr.mxu0 0.0
        %3793 = vmatpush1.msra.mxu0 0.0
        %3794 = vmatprep.subr.mxu0 0.0
        %3795 = vmatpush1.msra.mxu0 0.0
        %3796 = vmatprep.subr.mxu0 0.0
        %3797 = vmatpush1.msra.mxu0 0.0
        %3798 = vmatprep.subr.mxu0 0.0
        %3799 = vmatpush1.msra.mxu0 0.0
        %3800 = vmatprep.subr.mxu0 0.0
        %3801 = vmatpush1.msra.mxu0 0.0
        %3802 = vmatprep.subr.mxu0 0.0
        %3803 = vmatpush1.msra.mxu0 0.0
        %3804 = vmatprep.subr.mxu0 0.0
        %3805 = vmatpush1.msra.mxu0 0.0
        %3806 = vmatprep.subr.mxu0 0.0
        %3807 = vmatpush1.msra.mxu0 0.0
        %3808 = vmatprep.subr.mxu0 0.0
        %3809 = vmatpush1.msra.mxu0 0.0
        %3810 = vmatprep.subr.mxu0 0.0
        %3811 = vmatpush1.msra.mxu0 0.0
        %3812 = vmatprep.subr.mxu0 0.0
        %3813 = vmatpush1.msra.mxu0 0.0
        %3814 = vmatprep.subr.mxu0 0.0
        %3815 = vmatpush1.msra.mxu0 0.0
        %3816 = vmatprep.mubr.f32.mxu0 0.0
        %3817 = vmatmul.mubr.f32.gmra.mrb[0].mxu0 %v3750
        %v3818 = vpop.f32.mrb[0].mxu0
        %v3819 = vadd.f32 0.0, %v3818
        %v3820 = vpop.f32.mrb[0].mxu0
        %3821 = vdwg.mxu0
        %s3822 = scalar_lea.vmem %s10, 320
        %v3823 = vld [vmem:[%s3822] sm:$0xff]
        %v3824 = vld [vmem:[%s3822 + $0x8] sm:$0xff]
        %v3825 = vld [vmem:[%s3822 + $0x10] sm:$0xff]
        %v3826 = vld [vmem:[%s3822 + $0x18] sm:$0xff]
        %v3827 = vld [vmem:[%s3822 + $0x20] sm:$0xff]
        %v3828 = vld [vmem:[%s3822 + $0x28] sm:$0xff]
        %v3829 = vld [vmem:[%s3822 + $0x30] sm:$0xff]
        %v3830 = vld [vmem:[%s3822 + $0x38] sm:$0xff]
        %v3831 = vld [vmem:[%s3822 + $0x40] sm:$0xff]
        %v3832 = vld [vmem:[%s3822 + $0x48] sm:$0xff]
        %v3834 = vsel %vm3280, %v3819, 0
        %3836 = vmatprep.subr.mxu0 0.0
        %3837 = vmatpush1.msra.mxu0 %v3823
        %3838 = vmatprep.subr.mxu0 0.0
        %3839 = vmatpush1.msra.mxu0 %v3824
        %3840 = vmatprep.subr.mxu0 0.0
        %3841 = vmatpush1.msra.mxu0 %v3825
        %3842 = vmatprep.subr.mxu0 0.0
        %3843 = vmatpush1.msra.mxu0 %v3826
        %3844 = vmatprep.subr.mxu0 0.0
        %3845 = vmatpush1.msra.mxu0 %v3827
        %3846 = vmatprep.subr.mxu0 0.0
        %3847 = vmatpush1.msra.mxu0 %v3828
        %3848 = vmatprep.subr.mxu0 0.0
        %3849 = vmatpush1.msra.mxu0 %v3829
        %3850 = vmatprep.subr.mxu0 0.0
        %3851 = vmatpush1.msra.mxu0 %v3830
        %3852 = vmatprep.subr.mxu0 0.0
        %3853 = vmatpush1.msra.mxu0 %v3831
        %3854 = vmatprep.subr.mxu0 0.0
        %3855 = vmatpush1.msra.mxu0 %v3832
        %3856 = vmatprep.subr.mxu0 0.0
        %3857 = vmatpush1.msra.mxu0 0.0
        %3858 = vmatprep.subr.mxu0 0.0
        %3859 = vmatpush1.msra.mxu0 0.0
        %3860 = vmatprep.subr.mxu0 0.0
        %3861 = vmatpush1.msra.mxu0 0.0
        %3862 = vmatprep.subr.mxu0 0.0
        %3863 = vmatpush1.msra.mxu0 0.0
        %3864 = vmatprep.subr.mxu0 0.0
        %3865 = vmatpush1.msra.mxu0 0.0
        %3866 = vmatprep.subr.mxu0 0.0
        %3867 = vmatpush1.msra.mxu0 0.0
        %3868 = vmatprep.subr.mxu0 0.0
        %3869 = vmatpush1.msra.mxu0 0.0
        %3870 = vmatprep.subr.mxu0 0.0
        %3871 = vmatpush1.msra.mxu0 0.0
        %3872 = vmatprep.subr.mxu0 0.0
        %3873 = vmatpush1.msra.mxu0 0.0
        %3874 = vmatprep.subr.mxu0 0.0
        %3875 = vmatpush1.msra.mxu0 0.0
        %3876 = vmatprep.subr.mxu0 0.0
        %3877 = vmatpush1.msra.mxu0 0.0
        %3878 = vmatprep.subr.mxu0 0.0
        %3879 = vmatpush1.msra.mxu0 0.0
        %3880 = vmatprep.subr.mxu0 0.0
        %3881 = vmatpush1.msra.mxu0 0.0
        %3882 = vmatprep.subr.mxu0 0.0
        %3883 = vmatpush1.msra.mxu0 0.0
        %3884 = vmatprep.subr.mxu0 0.0
        %3885 = vmatpush1.msra.mxu0 0.0
        %3886 = vmatprep.subr.mxu0 0.0
        %3887 = vmatpush1.msra.mxu0 0.0
        %3888 = vmatprep.subr.mxu0 0.0
        %3889 = vmatpush1.msra.mxu0 0.0
        %3890 = vmatprep.subr.mxu0 0.0
        %3891 = vmatpush1.msra.mxu0 0.0
        %3892 = vmatprep.subr.mxu0 0.0
        %3893 = vmatpush1.msra.mxu0 0.0
        %3894 = vmatprep.subr.mxu0 0.0
        %3895 = vmatpush1.msra.mxu0 0.0
        %3896 = vmatprep.subr.mxu0 0.0
        %3897 = vmatpush1.msra.mxu0 0.0
        %3898 = vmatprep.subr.mxu0 0.0
        %3899 = vmatpush1.msra.mxu0 0.0
        %3900 = vmatprep.mubr.f32.mxu0 0.0
        %3901 = vmatmul.mubr.f32.gmra.mrb[0].mxu0 %v3834
        %v3902 = vpop.f32.mrb[0].mxu0
        %v3903 = vadd.f32 0.0, %v3902
        %v3904 = vpop.f32.mrb[0].mxu0
        %3905 = vdwg.mxu0
        %v3906 = vadd.f32 %v3746, %v3903
        %v3907 = vld [vmem:[%s11] sm:$0x1]
        %v3909 = vlaneseq
        %v3910 = vshrl.u32 %v3909, 7
        %v3911 = vsub.s32 0, %v3910
        %v3912 = vrot.slane %v3907, %v3911
        %v3914 = vadd.f32 %v3906, %v3912
        %v3915 = vmax.f32 %v3914, 0.0
        %v3916 = vld [vmem:[%s12] sm:$0xff]
        %v3917 = vld [vmem:[%s12 + $0x8] sm:$0xff]
        %v3918 = vld [vmem:[%s12 + $0x10] sm:$0xff]
        %v3919 = vld [vmem:[%s12 + $0x18] sm:$0xff]
        %v3920 = vld [vmem:[%s12 + $0x20] sm:$0xff]
        %v3921 = vld [vmem:[%s12 + $0x28] sm:$0xff]
        %v3922 = vld [vmem:[%s12 + $0x30] sm:$0xff]
        %v3923 = vld [vmem:[%s12 + $0x38] sm:$0xff]
        %v3924 = vld [vmem:[%s12 + $0x40] sm:$0xff]
        %v3925 = vld [vmem:[%s12 + $0x48] sm:$0xff]
        %v3926 = vld [vmem:[%s12 + $0x50] sm:$0xff]
        %v3927 = vld [vmem:[%s12 + $0x58] sm:$0xff]
        %v3928 = vld [vmem:[%s12 + $0x60] sm:$0xff]
        %v3929 = vld [vmem:[%s12 + $0x68] sm:$0xff]
        %v3930 = vld [vmem:[%s12 + $0x70] sm:$0xff]
        %v3931 = vld [vmem:[%s13] sm:$0x1]
        %v3933 = vlaneseq
        %v3934 = vshrl.u32 %v3933, 7
        %v3935 = vsub.s32 0, %v3934
        %v3936 = vrot.slane %v3931, %v3935
        %vm3938 = vcmask 982016
        %v3940 = vsel %vm3938, %v3915, 0
        %3942 = vmatprep.subr.mxu0 0.0
        %3943 = vmatpush1.msra.mxu0 %v3916
        %3944 = vmatprep.subr.mxu0 0.0
        %3945 = vmatpush1.msra.mxu0 %v3917
        %3946 = vmatprep.subr.mxu0 0.0
        %3947 = vmatpush1.msra.mxu0 %v3918
        %3948 = vmatprep.subr.mxu0 0.0
        %3949 = vmatpush1.msra.mxu0 %v3919
        %3950 = vmatprep.subr.mxu0 0.0
        %3951 = vmatpush1.msra.mxu0 %v3920
        %3952 = vmatprep.subr.mxu0 0.0
        %3953 = vmatpush1.msra.mxu0 %v3921
        %3954 = vmatprep.subr.mxu0 0.0
        %3955 = vmatpush1.msra.mxu0 %v3922
        %3956 = vmatprep.subr.mxu0 0.0
        %3957 = vmatpush1.msra.mxu0 %v3923
        %3958 = vmatprep.subr.mxu0 0.0
        %3959 = vmatpush1.msra.mxu0 %v3924
        %3960 = vmatprep.subr.mxu0 0.0
        %3961 = vmatpush1.msra.mxu0 %v3925
        %3962 = vmatprep.subr.mxu0 0.0
        %3963 = vmatpush1.msra.mxu0 %v3926
        %3964 = vmatprep.subr.mxu0 0.0
        %3965 = vmatpush1.msra.mxu0 %v3927
        %3966 = vmatprep.subr.mxu0 0.0
        %3967 = vmatpush1.msra.mxu0 %v3928
        %3968 = vmatprep.subr.mxu0 0.0
        %3969 = vmatpush1.msra.mxu0 %v3929
        %3970 = vmatprep.subr.mxu0 0.0
        %3971 = vmatpush1.msra.mxu0 %v3930
        %3972 = vmatprep.subr.mxu0 0.0
        %3973 = vmatpush1.msra.mxu0 0.0
        %3974 = vmatprep.subr.mxu0 0.0
        %3975 = vmatpush1.msra.mxu0 0.0
        %3976 = vmatprep.subr.mxu0 0.0
        %3977 = vmatpush1.msra.mxu0 0.0
        %3978 = vmatprep.subr.mxu0 0.0
        %3979 = vmatpush1.msra.mxu0 0.0
        %3980 = vmatprep.subr.mxu0 0.0
        %3981 = vmatpush1.msra.mxu0 0.0
        %3982 = vmatprep.subr.mxu0 0.0
        %3983 = vmatpush1.msra.mxu0 0.0
        %3984 = vmatprep.subr.mxu0 0.0
        %3985 = vmatpush1.msra.mxu0 0.0
        %3986 = vmatprep.subr.mxu0 0.0
        %3987 = vmatpush1.msra.mxu0 0.0
        %3988 = vmatprep.subr.mxu0 0.0
        %3989 = vmatpush1.msra.mxu0 0.0
        %3990 = vmatprep.subr.mxu0 0.0
        %3991 = vmatpush1.msra.mxu0 0.0
        %3992 = vmatprep.subr.mxu0 0.0
        %3993 = vmatpush1.msra.mxu0 0.0
        %3994 = vmatprep.subr.mxu0 0.0
        %3995 = vmatpush1.msra.mxu0 0.0
        %3996 = vmatprep.subr.mxu0 0.0
        %3997 = vmatpush1.msra.mxu0 0.0
        %3998 = vmatprep.subr.mxu0 0.0
        %3999 = vmatpush1.msra.mxu0 0.0
        %4000 = vmatprep.subr.mxu0 0.0
        %4001 = vmatpush1.msra.mxu0 0.0
        %4002 = vmatprep.subr.mxu0 0.0
        %4003 = vmatpush1.msra.mxu0 0.0
        %4004 = vmatprep.subr.mxu0 0.0
        %4005 = vmatpush1.msra.mxu0 0.0
        %4006 = vmatprep.mubr.f32.mxu0 0.0
        %4007 = vmatmul.mubr.f32.gmra.mrb[0].mxu0 %v3940
        %v4008 = vpop.f32.mrb[0].mxu0
        %v4009 = vadd.f32 %v3936, %v4008
        %v4010 = vpop.f32.mrb[0].mxu0
        %4011 = vdwg.mxu0
        %v4012 = vmax.f32 %v4009, 0.0
        %v4013 = vld [vmem:[%s14] sm:$0xff]
        %v4014 = vld [vmem:[%s14 + $0x8] sm:$0xff]
        %v4015 = vld [vmem:[%s14 + $0x10] sm:$0xff]
        %v4016 = vld [vmem:[%s14 + $0x18] sm:$0xff]
        %v4017 = vld [vmem:[%s14 + $0x20] sm:$0xff]
        %v4018 = vld [vmem:[%s14 + $0x28] sm:$0xff]
        %v4019 = vld [vmem:[%s14 + $0x30] sm:$0xff]
        %v4020 = vld [vmem:[%s14 + $0x38] sm:$0xff]
        %v4021 = vld [vmem:[%s14 + $0x40] sm:$0xff]
        %v4022 = vld [vmem:[%s14 + $0x48] sm:$0xff]
        %v4023 = vld [vmem:[%s14 + $0x50] sm:$0xf]
        %v4024 = vld [vmem:[%s15] sm:$0x1]
        %v4026 = vlaneseq
        %v4027 = vshrl.u32 %v4026, 7
        %v4028 = vsub.s32 0, %v4027
        %v4029 = vrot.slane %v4024, %v4028
        %v4032 = vsel %vm1975, %v4012, 0
        %v4035 = vsel %vm2047, %v4023, 0
        %4037 = vmatprep.subr.mxu0 0.0
        %4038 = vmatpush1.msra.mxu0 %v4013
        %4039 = vmatprep.subr.mxu0 0.0
        %4040 = vmatpush1.msra.mxu0 %v4014
        %4041 = vmatprep.subr.mxu0 0.0
        %4042 = vmatpush1.msra.mxu0 %v4015
        %4043 = vmatprep.subr.mxu0 0.0
        %4044 = vmatpush1.msra.mxu0 %v4016
        %4045 = vmatprep.subr.mxu0 0.0
        %4046 = vmatpush1.msra.mxu0 %v4017
        %4047 = vmatprep.subr.mxu0 0.0
        %4048 = vmatpush1.msra.mxu0 %v4018
        %4049 = vmatprep.subr.mxu0 0.0
        %4050 = vmatpush1.msra.mxu0 %v4019
        %4051 = vmatprep.subr.mxu0 0.0
        %4052 = vmatpush1.msra.mxu0 %v4020
        %4053 = vmatprep.subr.mxu0 0.0
        %4054 = vmatpush1.msra.mxu0 %v4021
        %4055 = vmatprep.subr.mxu0 0.0
        %4056 = vmatpush1.msra.mxu0 %v4022
        %4057 = vmatprep.subr.mxu0 0.0
        %4058 = vmatpush1.msra.mxu0 %v4035
        %4059 = vmatprep.subr.mxu0 0.0
        %4060 = vmatpush1.msra.mxu0 0.0
        %4061 = vmatprep.subr.mxu0 0.0
        %4062 = vmatpush1.msra.mxu0 0.0
        %4063 = vmatprep.subr.mxu0 0.0
        %4064 = vmatpush1.msra.mxu0 0.0
        %4065 = vmatprep.subr.mxu0 0.0
        %4066 = vmatpush1.msra.mxu0 0.0
        %4067 = vmatprep.subr.mxu0 0.0
        %4068 = vmatpush1.msra.mxu0 0.0
        %4069 = vmatprep.subr.mxu0 0.0
        %4070 = vmatpush1.msra.mxu0 0.0
        %4071 = vmatprep.subr.mxu0 0.0
        %4072 = vmatpush1.msra.mxu0 0.0
        %4073 = vmatprep.subr.mxu0 0.0
        %4074 = vmatpush1.msra.mxu0 0.0
        %4075 = vmatprep.subr.mxu0 0.0
        %4076 = vmatpush1.msra.mxu0 0.0
        %4077 = vmatprep.subr.mxu0 0.0
        %4078 = vmatpush1.msra.mxu0 0.0
        %4079 = vmatprep.subr.mxu0 0.0
        %4080 = vmatpush1.msra.mxu0 0.0
        %4081 = vmatprep.subr.mxu0 0.0
        %4082 = vmatpush1.msra.mxu0 0.0
        %4083 = vmatprep.subr.mxu0 0.0
        %4084 = vmatpush1.msra.mxu0 0.0
        %4085 = vmatprep.subr.mxu0 0.0
        %4086 = vmatpush1.msra.mxu0 0.0
        %4087 = vmatprep.subr.mxu0 0.0
        %4088 = vmatpush1.msra.mxu0 0.0
        %4089 = vmatprep.subr.mxu0 0.0
        %4090 = vmatpush1.msra.mxu0 0.0
        %4091 = vmatprep.subr.mxu0 0.0
        %4092 = vmatpush1.msra.mxu0 0.0
        %4093 = vmatprep.subr.mxu0 0.0
        %4094 = vmatpush1.msra.mxu0 0.0
        %4095 = vmatprep.subr.mxu0 0.0
        %4096 = vmatpush1.msra.mxu0 0.0
        %4097 = vmatprep.subr.mxu0 0.0
        %4098 = vmatpush1.msra.mxu0 0.0
        %4099 = vmatprep.subr.mxu0 0.0
        %4100 = vmatpush1.msra.mxu0 0.0
        %4101 = vmatprep.mubr.f32.mxu0 0.0
        %4102 = vmatmul.mubr.f32.gmra.mrb[0].mxu0 %v4032
        %v4103 = vpop.f32.mrb[0].mxu0
        %v4104 = vadd.f32 %v4029, %v4103
        %v4105 = vpop.f32.mrb[0].mxu0
        %4106 = vdwg.mxu0
        %4107 = vst [vmem:[%s515] sm:$0x3] %v4104
        %s4108 = sand.u32 %s379, 1
        %s4109 = scalar_lea.sflag [#allocation5], %s4108
        %s4110 = sand.u32 %s379, 1
        %s4111 = smul.addr %s4110, 2
        %s4112 = scalar_lea.vmem [#allocation4], %s4111
        // Predicated region
        $region85: #{net_forward.1} parent=83 // pred_check
          %p4113 = pneg %p389
        $region86: #{net_forward.1} parent=83 // pred_check_branch
          %4115 = sbr.rel (%p4113) target = $region88
        $region87: #{net_forward.1} parent=83 // pred_region
          %s4117 = ssub.s32 32, 32
          %4118 = vsyncadd %s4109, %s4117
          %s4119 = smul.addr %s30, 32
          %s4120 = scalar_lea.hbm %s16, %s4119
          %s4122 = sshll.u32 %s4112, 4
          %s4123 = int_to_ptr.vmem [resolvable:$true] %s4122
          %4125 = dma.vmem_to_hbm [thread:$0]  %s4123, 32, %s4120, %s4109
        $region88: #{net_forward.1} parent=83 // pred_fallthru
          _
      $region84: #{net_forward.1} parent=5 // pred_fallthru
        _
      %p4126 = scmp.le.s32.totalorder 2, %s25
      // Predicated region
      $region89: #{net_forward.1} parent=5 // pred_check
        %p4127 = pneg %p4126
      $region90: #{net_forward.1} parent=5 // pred_check_branch
        %4129 = sbr.rel (%p4127) target = $region92
      $region91: #{net_forward.1} parent=5 // pred_region
        %s4130 = ssub.s32 %s25, 2
        // Predicated region
        $region93: #{net_forward.1} parent=91 // pred_check
          %p4131 = pneg %p395
        $region94: #{net_forward.1} parent=91 // pred_check_branch
          %4133 = sbr.rel (%p4131) target = $region96
        $region95: #{net_forward.1} parent=91 // pred_region
          %s4134 = sand.u32 %s380, 1
          %s4135 = scalar_lea.sflag [#allocation5], %s4134
          %s4136 = sand.u32 %s380, 1
          %s4137 = smul.addr %s4136, 2
          %s4138 = scalar_lea.vmem [#allocation4], %s4137
          %4139 = dma.done %s4135, 32
        $region96: #{net_forward.1} parent=91 // pred_fallthru
          _
      $region92: #{net_forward.1} parent=5 // pred_fallthru
        _
    $region6: #{net_forward.1} parent=1 // loop_footer
      %s29 = sadd.s32 1, %s25
    $region7: #{net_forward.1} parent=1 // loop_footer_branch
      %24 = sbr.rel target = $region3
    $region8: #{net_forward.1} parent=1 // loop_exit
      _
    %4140 = vsyncpa [#allocation5], 1
    %s4141 = scalar_lea.sflag [#allocation5], 1
    %4142 = vsyncpa %s4141, 1

</llo_original>
